<compile_context>
chip_gen: v5e
topology: v5e:2x2
jax: 0.10.0
libtpu: 0.0.40
codegen_flags: <defaults>
</compile_context>

<pallas_src>
import math

import jax
import jax.numpy as jnp
from jax.experimental import pallas as pl
from jax.experimental.pallas import tpu as pltpu

LANE = 128          # pad output-channel dims to this -> lane-dense MXU tiles / stores
MAX_ROW_TILE = 512  # row tile for all Pallas kernels


def _round_up(x, m):
    return (x + m - 1) // m * m


# ----------------------------------------------------------------------------
# In-kernel helpers
# ----------------------------------------------------------------------------
def _gelu_tanh(x):
    # tanh-based GELU: jnp.tanh lowers to the EUP transcendental unit, keeping
    # the VPU free.  |tanh-GELU - erf-GELU| <= ~3e-4 (well inside tolerance).
    c = 0.7978845608028654  # sqrt(2/pi)
    return 0.5 * x * (1.0 + jnp.tanh(c * (x + 0.044715 * x * x * x)))


# ----------------------------------------------------------------------------
# Pallas kernels
# ----------------------------------------------------------------------------
def _make_offmask_kernel(n_off, max_off):
    """Merged offset+mask conv epilogue: clip for cols < n_off, 2*sigmoid after."""
    def kernel(a_ref, w_ref, b_ref, o_ref):
        y = jnp.dot(a_ref[...], w_ref[...], preferred_element_type=jnp.float32)
        y = y + b_ref[...]
        col = jax.lax.broadcasted_iota(jnp.int32, y.shape, 1)
        o_ref[...] = jnp.where(col < n_off,
                               jnp.clip(y, -max_off, max_off),
                               2.0 * jax.nn.sigmoid(y))
    return kernel


def _make_proj_stats_kernel(m_valid, tm):
    """Projection matmul + bias with fused per-tile BN partial statistics (f32)."""
    def kernel(a_ref, w_ref, b_ref, y_ref, s_ref, q_ref):
        y = jnp.dot(a_ref[...], w_ref[...], preferred_element_type=jnp.float32)
        y = y + b_ref[...]
        y_ref[...] = y
        # Mask padded tail rows (their y equals the bias) so they do not corrupt
        # the BatchNorm batch statistics; stats stay in f32.
        rows = pl.program_id(0) * tm + jax.lax.broadcasted_iota(jnp.int32, y.shape, 0)
        ym = jnp.where(rows < m_valid, y, 0.0)
        ym3 = ym.reshape(8, tm // 8, ym.shape[-1])       # cheap row-group view
        s_ref[...] = jnp.sum(ym3, axis=1)                # (8, Np) partial sum
        q_ref[...] = jnp.sum(ym3 * ym3, axis=1)          # (8, Np) partial sum of squares
    return kernel


def _bn_gelu_kernel(y_ref, scale_ref, shift_ref, o_ref):
    # BN folded to a single FMA (scale/shift precomputed in the wrapper) + GELU.
    o_ref[...] = _gelu_tanh(y_ref[...] * scale_ref[...] + shift_ref[...])


# ----------------------------------------------------------------------------
# Pallas wrappers
# ----------------------------------------------------------------------------
def offmask_matmul(cols, w, b, n_off, max_off, tm):
    """(Mp,K)@(K,Nout) with a column-split clip / 2*sigmoid epilogue.  cols is a
    bf16, already Mp-row-padded slab; output stays (Mp, 128)-padded."""
    Mp, K = cols.shape
    n_out = w.shape[1]
    Np = _round_up(n_out, LANE)
    w_p = jnp.pad(w, ((0, 0), (0, Np - n_out))).astype(jnp.bfloat16)
    b_p = jnp.pad(b, (0, Np - n_out)).astype(jnp.float32).reshape(1, Np)
    return pl.pallas_call(
        _make_offmask_kernel(n_off, max_off),
        out_shape=jax.ShapeDtypeStruct((Mp, Np), jnp.float32),
        grid=(Mp // tm,),
        in_specs=[
            pl.BlockSpec((tm, K), lambda i: (i, 0)),      # K un-padded (full-dim block)
            pl.BlockSpec((K, Np), lambda i: (0, 0)),
            pl.BlockSpec((1, Np), lambda i: (0, 0)),
        ],
        out_specs=pl.BlockSpec((tm, Np), lambda i: (i, 0)),
        compiler_params=pltpu.CompilerParams(dimension_semantics=("parallel",)),
    )(cols, w_p, b_p)


def proj_matmul_with_stats(cols, w, b, m_valid, tm):
    """Projection matmul with fused BN partial statistics.  Returns the padded
    (Mp, Np) f32 output plus (G*8, Np) partial sum / sum-of-squares slabs."""
    Mp, K = cols.shape
    n_out = w.shape[1]
    Np = _round_up(n_out, LANE)
    G = Mp // tm
    w_p = jnp.pad(w, ((0, 0), (0, Np - n_out))).astype(jnp.bfloat16)
    b_p = jnp.pad(b, (0, Np - n_out)).astype(jnp.float32).reshape(1, Np)
    # TODO(synk): for production channel counts (Cin=Cout=768) add a K grid axis
    # ("arbitrary", accumulator scratch) and a 256-wide N tile so the resident
    # weight fits v7x's 64 MiB VMEM; unnecessary at these shapes.
    y, ps, pq = pl.pallas_call(
        _make_proj_stats_kernel(m_valid, tm),
        out_shape=(jax.ShapeDtypeStruct((Mp, Np), jnp.float32),
                   jax.ShapeDtypeStruct((G * 8, Np), jnp.float32),
                   jax.ShapeDtypeStruct((G * 8, Np), jnp.float32)),
        grid=(G,),
        in_specs=[
            pl.BlockSpec((tm, K), lambda i: (i, 0)),
            pl.BlockSpec((K, Np), lambda i: (0, 0)),
            pl.BlockSpec((1, Np), lambda i: (0, 0)),
        ],
        out_specs=(pl.BlockSpec((tm, Np), lambda i: (i, 0)),
                   pl.BlockSpec((8, Np), lambda i: (i, 0)),
                   pl.BlockSpec((8, Np), lambda i: (i, 0))),
        compiler_params=pltpu.CompilerParams(dimension_semantics=("parallel",)),
    )(cols, w_p, b_p)
    return y, ps, pq


def bn_gelu(y, scale, shift, tm):
    """Elementwise y*scale+shift followed by GELU on the padded (Mp, Np) slab."""
    Mp, Np = y.shape
    return pl.pallas_call(
        _bn_gelu_kernel,
        out_shape=jax.ShapeDtypeStruct((Mp, Np), jnp.float32),
        grid=(Mp // tm,),
        in_specs=[
            pl.BlockSpec((tm, Np), lambda i: (i, 0)),
            pl.BlockSpec((1, Np), lambda i: (0, 0)),
            pl.BlockSpec((1, Np), lambda i: (0, 0)),
        ],
        out_specs=pl.BlockSpec((tm, Np), lambda i: (i, 0)),
        compiler_params=pltpu.CompilerParams(dimension_semantics=("parallel",)),
    )(y, scale, shift)


# ----------------------------------------------------------------------------
# Plain-JAX glue: im2col / deformable bilinear sampling (data-dependent gather)
# ----------------------------------------------------------------------------
def conv3x3_im2col(x, pad=1, k=3):
    # x: [N, Cin, H, W] -> [N*H*W, k*k*Cin] patches, zero padded border.
    N, C, H, W = x.shape
    xp = jnp.pad(x, ((0, 0), (0, 0), (pad, pad), (pad, pad)))
    taps = []
    for ky in range(k):
        for kx in range(k):
            taps.append(xp[:, :, ky:ky + H, kx:kx + W])
    cols = jnp.stack(taps, axis=1)                         # [N, k*k, C, H, W]
    return cols.transpose(0, 3, 4, 1, 2).reshape(N * H * W, k * k * C)


def _bilinear_sample(x, py, px):
    # x: [N, C, H, W]; py/px: [N, H, W] float sample coords; zero outside image.
    N, C, H, W = x.shape
    xf = x.reshape(N, C, H * W)
    y0 = jnp.floor(py)
    x0 = jnp.floor(px)
    out = jnp.zeros((N, C, H, W), jnp.float32)
    for dy in (0.0, 1.0):
        for dx in (0.0, 1.0):
            yi = y0 + dy
            xi = x0 + dx
            wy = 1.0 - jnp.abs(py - yi)
            wx = 1.0 - jnp.abs(px - xi)
            valid = (yi >= 0) & (yi <= H - 1) & (xi >= 0) & (xi <= W - 1)
            w = wy * wx * valid.astype(jnp.float32)        # [N, H, W]
            yc = jnp.clip(yi, 0, H - 1).astype(jnp.int32)
            xc = jnp.clip(xi, 0, W - 1).astype(jnp.int32)
            flat = (yc * W + xc).reshape(N, 1, H * W)
            flat = jnp.broadcast_to(flat, (N, C, H * W))
            g = jnp.take_along_axis(xf, flat, axis=2).reshape(N, C, H, W)
            out = out + w[:, None] * g
    return out


def deform_im2col(x, offset, mask, pad=1, k=3):
    # offset: [N, 2*k*k, H, W] (dy, dx per tap); mask: [N, k*k, H, W]
    # Returns a bf16 [N*H*W, k*k*Cin] slab (downstream matmul is bf16 anyway).
    # TODO(synk): move the 4-tap gather into a Pallas kernel (pl.ANY HBM refs +
    # manual make_async_copy) for non-trivial H*W; kept in plain JAX here.
    N, C, H, W = x.shape
    hh = jnp.arange(H, dtype=jnp.float32)[None, :, None]
    ww = jnp.arange(W, dtype=jnp.float32)[None, None, :]
    taps = []
    for t in range(k * k):
        ky, kx = t // k, t % k
        py = hh + (ky - pad) + offset[:, 2 * t]
        px = ww + (kx - pad) + offset[:, 2 * t + 1]
        val = _bilinear_sample(x, py, px)                  # [N, C, H, W] f32
        taps.append((val * mask[:, t][:, None]).astype(jnp.bfloat16))
    cols = jnp.stack(taps, axis=1)                         # [N, k*k, C, H, W]
    return cols.transpose(0, 3, 4, 1, 2).reshape(N * H * W, k * k * C)


# ----------------------------------------------------------------------------
# DFT forward
# ----------------------------------------------------------------------------
def dft_forward(x, params, kernel_size=3):
    N, Cin, H, W = x.shape
    pad = (kernel_size - 1) // 2
    k2 = kernel_size * kernel_size
    max_off = float(min(H, W) // 4)
    M = N * H * W
    tm = min(MAX_ROW_TILE, _round_up(M, 128))
    Mp = _round_up(M, tm)

    def to_mat(w):  # [Cout, Cin, kh, kw] -> [kh*kw*Cin, Cout] (matches im2col order)
        return w.transpose(2, 3, 1, 0).reshape(k2 * w.shape[1], w.shape[0])

    # Regular im2col (bf16 slab), padded once to Mp rows.
    # TODO(synk): for production Cin (768) avoid materializing this 9x slab
    # (build it lazily per-tap inside a Pallas kernel or use lax.conv directly).
    cols = conv3x3_im2col(x.astype(jnp.bfloat16), pad, kernel_size)            # [M, k2*Cin]
    cols = jnp.pad(cols, ((0, Mp - M), (0, 0)))

    # Merged offset + modulation-mask conv: a single Pallas matmul over the slab
    # with a fused column-split clip / 2*sigmoid epilogue.
    w_om = jnp.concatenate([to_mat(params["w_off"]), to_mat(params["w_msk"])], axis=1)
    b_om = jnp.concatenate([params["b_off"], params["b_msk"]])
    om = offmask_matmul(cols, w_om, b_om, 2 * k2, max_off, tm)                 # [Mp, 128]
    om = om[:M, :3 * k2]
    off_nchw = om[:, :2 * k2].reshape(N, H, W, 2 * k2).transpose(0, 3, 1, 2)
    msk_nchw = om[:, 2 * k2:].reshape(N, H, W, k2).transpose(0, 3, 1, 2)

    # Deformable (bilinear) im2col in JAX glue; projection matmul in Pallas with
    # fused BN partial statistics (padded rows masked inside the kernel).
    dcols = deform_im2col(x, off_nchw, msk_nchw, pad, kernel_size)             # [M, k2*Cin] bf16
    dcols = jnp.pad(dcols, ((0, Mp - M), (0, 0)))
    Cout = params["w_proj"].shape[0]
    y, ps, pq = proj_matmul_with_stats(dcols, to_mat(params["w_proj"]),
                                       params["b_proj"], M, tm)                # [Mp, Np] + partials

    # Reduce tiny partials in JAX; fold BN into scale/shift (biased variance,
    # training-mode batch statistics, eps=1e-5), clamp var against f32 cancellation.
    s = jnp.sum(ps, axis=0)[:Cout]
    sq = jnp.sum(pq, axis=0)[:Cout]
    mean = s / M
    var = jnp.maximum(sq / M - mean * mean, 0.0)
    scale = params["gamma"] * jax.lax.rsqrt(var + 1e-5)
    shift = params["beta"] - mean * scale
    Np = y.shape[1]
    scale_p = jnp.pad(scale, (0, Np - Cout)).reshape(1, Np)
    shift_p = jnp.pad(shift, (0, Np - Cout)).reshape(1, Np)

    # BN (single FMA) + GELU on the padded lane-dense slab; slice once at the end.
    out = bn_gelu(y, scale_p, shift_p, tm)
    return out[:M, :Cout].reshape(N, H, W, Cout).transpose(0, 3, 1, 2)         # NCHW


def init_params(key, in_chans, out_chans, kernel_size=3):
    k2 = kernel_size * kernel_size
    fan_in = in_chans * k2
    bound = 1.0 / math.sqrt(fan_in)
    kw, kb = jax.random.split(key)
    return dict(
        # proj conv: PyTorch default Conv2d init (uniform +-1/sqrt(fan_in))
        w_proj=jax.random.uniform(kw, (out_chans, in_chans, kernel_size, kernel_size),
                                  jnp.float32, -bound, bound),
        b_proj=jax.random.uniform(kb, (out_chans,), jnp.float32, -bound, bound),
        # offset / mask convs are zero-initialised by the module's _init_weights()
        w_off=jnp.zeros((2 * k2, in_chans, kernel_size, kernel_size), jnp.float32),
        b_off=jnp.zeros((2 * k2,), jnp.float32),
        w_msk=jnp.zeros((k2, in_chans, kernel_size, kernel_size), jnp.float32),
        b_msk=jnp.zeros((k2,), jnp.float32),
        # BatchNorm2d affine params (default init)
        gamma=jnp.ones((out_chans,), jnp.float32),
        beta=jnp.zeros((out_chans,), jnp.float32),
    )


if __name__ == "__main__":
    key = jax.random.PRNGKey(0)
    kx, kp = jax.random.split(key)
    N, Cin, Cout, H, W = 2, 4, 8, 16, 16

    x = jax.random.normal(kx, (N, Cin, H, W), jnp.float32)
    params = init_params(kp, Cin, Cout)

    out = jax.jit(dft_forward)(x, params)
    out = jax.block_until_ready(out)
    assert out.shape == (N, Cout, H, W)

    # Sanity reference: zero-initialised offset/mask convs => deform_conv2d == conv2d.
    # Match the kernel's bf16 MXU inputs by rounding x / w_proj to bf16 first.
    xr = x.astype(jnp.bfloat16).astype(jnp.float32)
    wr = params["w_proj"].astype(jnp.bfloat16).astype(jnp.float32)
    ref = jax.lax.conv_general_dilated(
        xr, wr, (1, 1), ((1, 1), (1, 1)),
        dimension_numbers=("NCHW", "OIHW", "NCHW"),
        precision=jax.lax.Precision.HIGHEST) + params["b_proj"][None, :, None, None]
    mu = ref.mean(axis=(0, 2, 3), keepdims=True)
    va = ref.var(axis=(0, 2, 3), keepdims=True)
    xh = (ref - mu) / jnp.sqrt(va + 1e-5)
    ref_out = 0.5 * xh * (1.0 + jax.scipy.special.erf(xh / math.sqrt(2.0)))
    assert float(jnp.max(jnp.abs(out - ref_out))) < 2e-2

    print("KERNEL_OK")
</pallas_src>

<mosaic_0001>
module attributes {stable_mosaic.version = 11 : i64} {
  func.func @kernel(%arg0: i32, %arg1: memref<512x36xbf16, #tpu.memory_space<vmem>>, %arg2: memref<36x128xbf16, #tpu.memory_space<vmem>>, %arg3: memref<1x128xf32, #tpu.memory_space<vmem>>, %arg4: memref<512x128xf32, #tpu.memory_space<vmem>>) attributes {dimension_semantics = [#tpu.dimension_semantics<parallel>], iteration_bounds = array<i64: 1>, scalar_prefetch = 0 : i64, scratch_operands = 0 : i64, tpu.core_type = #tpu.core_type<tc>, window_params = [{transform_indices = @transform_0, window_bounds = array<i64: 512, 36>}, {pipeline_mode = #tpu.pipeline_mode<synchronous>, transform_indices = @transform_1, window_bounds = array<i64: 36, 128>}, {pipeline_mode = #tpu.pipeline_mode<synchronous>, transform_indices = @transform_2, window_bounds = array<i64: 1, 128>}, {transform_indices = @transform_3, window_bounds = array<i64: 512, 128>}]} {
    %c0 = arith.constant 0 : index
    %c0_0 = arith.constant 0 : index
    %0 = vector.load %arg1[%c0, %c0_0] : memref<512x36xbf16, #tpu.memory_space<vmem>>, vector<512x36xbf16>
    %c0_1 = arith.constant 0 : index
    %c0_2 = arith.constant 0 : index
    %1 = vector.load %arg2[%c0_1, %c0_2] : memref<36x128xbf16, #tpu.memory_space<vmem>>, vector<36x128xbf16>
    %cst = arith.constant dense<0.000000e+00> : vector<512x128xf32>
    %2 = tpu.matmul %0, %1, %cst {dimension_numbers = #tpu.dot_dimension_numbers<[1], [0], [0], [1], [0, 0, 1, 1], [], []>} : vector<512x36xbf16>, vector<36x128xbf16>, vector<512x128xf32> -> vector<512x128xf32>
    %c0_3 = arith.constant 0 : index
    %c0_4 = arith.constant 0 : index
    %3 = vector.load %arg3[%c0_3, %c0_4] : memref<1x128xf32, #tpu.memory_space<vmem>>, vector<1x128xf32>
    %4 = vector.broadcast %3 : vector<1x128xf32> to vector<512x128xf32>
    %5 = arith.addf %2, %4 : vector<512x128xf32>
    %6 = tpu.iota {dimensions = array<i32: 1>} : vector<512x128xi32>
    %c18_i32 = arith.constant 18 : i32
    %7 = vector.broadcast %c18_i32 : i32 to vector<512x128xi32>
    %8 = arith.cmpi slt, %6, %7 : vector<512x128xi32>
    %cst_5 = arith.constant -4.000000e+00 : f32
    %cst_6 = arith.constant 4.000000e+00 : f32
    %9 = vector.broadcast %cst_5 : f32 to vector<512x128xf32>
    %10 = arith.maximumf %9, %5 : vector<512x128xf32>
    %11 = vector.broadcast %cst_6 : f32 to vector<512x128xf32>
    %12 = arith.minimumf %11, %10 : vector<512x128xf32>
    %13 = arith.negf %5 : vector<512x128xf32>
    %14 = math.exp %13 : vector<512x128xf32>
    %cst_7 = arith.constant 1.000000e+00 : f32
    %15 = vector.broadcast %cst_7 : f32 to vector<512x128xf32>
    %16 = arith.addf %15, %14 : vector<512x128xf32>
    %17 = arith.divf %15, %16 : vector<512x128xf32>
    %cst_8 = arith.constant 2.000000e+00 : f32
    %18 = vector.broadcast %cst_8 : f32 to vector<512x128xf32>
    %19 = arith.mulf %18, %17 : vector<512x128xf32>
    %20 = arith.select %8, %12, %19 : vector<512x128xi1>, vector<512x128xf32>
    %c0_9 = arith.constant 0 : index
    %c0_10 = arith.constant 0 : index
    %21 = vector.load %arg4[%c0_9, %c0_10] : memref<512x128xf32, #tpu.memory_space<vmem>>, vector<512x128xf32>
    tpu.vector_store %arg4[%c0_9, %c0_10], %20 {strides = array<i32>} : memref<512x128xf32, #tpu.memory_space<vmem>>, vector<512x128xf32>,
    return
  }
  func.func @transform_0(%arg0: i32) -> (i32, i32) {
    %c0_i32 = arith.constant 0 : i32
    %c0_i32_0 = arith.constant 0 : i32
    return %arg0, %c0_i32 : i32, i32
  }
  func.func @transform_1(%arg0: i32) -> (i32, i32) {
    %c0_i32 = arith.constant 0 : i32
    %c0_i32_0 = arith.constant 0 : i32
    %c0_i32_1 = arith.constant 0 : i32
    return %c0_i32, %c0_i32_0 : i32, i32
  }
  func.func @transform_2(%arg0: i32) -> (i32, i32) {
    %c0_i32 = arith.constant 0 : i32
    %c0_i32_0 = arith.constant 0 : i32
    %c0_i32_1 = arith.constant 0 : i32
    return %c0_i32, %c0_i32_0 : i32, i32
  }
  func.func @transform_3(%arg0: i32) -> (i32, i32) {
    %c0_i32 = arith.constant 0 : i32
    %c0_i32_0 = arith.constant 0 : i32
    return %arg0, %c0_i32 : i32, i32
  }
}

module attributes {stable_mosaic.version = 11 : i64} {
  func.func @kernel(%arg0: i32, %arg1: memref<512x36xbf16, #tpu.memory_space<vmem>>, %arg2: memref<36x128xbf16, #tpu.memory_space<vmem>>, %arg3: memref<1x128xf32, #tpu.memory_space<vmem>>, %arg4: memref<512x128xf32, #tpu.memory_space<vmem>>, %arg5: memref<8x128xf32, #tpu.memory_space<vmem>>, %arg6: memref<8x128xf32, #tpu.memory_space<vmem>>) attributes {dimension_semantics = [#tpu.dimension_semantics<parallel>], iteration_bounds = array<i64: 1>, scalar_prefetch = 0 : i64, scratch_operands = 0 : i64, tpu.core_type = #tpu.core_type<tc>, window_params = [{transform_indices = @transform_0, window_bounds = array<i64: 512, 36>}, {pipeline_mode = #tpu.pipeline_mode<synchronous>, transform_indices = @transform_1, window_bounds = array<i64: 36, 128>}, {pipeline_mode = #tpu.pipeline_mode<synchronous>, transform_indices = @transform_2, window_bounds = array<i64: 1, 128>}, {transform_indices = @transform_3, window_bounds = array<i64: 512, 128>}, {transform_indices = @transform_4, window_bounds = array<i64: 8, 128>}, {transform_indices = @transform_5, window_bounds = array<i64: 8, 128>}]} {
    %c0 = arith.constant 0 : index
    %c0_0 = arith.constant 0 : index
    %0 = vector.load %arg1[%c0, %c0_0] : memref<512x36xbf16, #tpu.memory_space<vmem>>, vector<512x36xbf16>
    %c0_1 = arith.constant 0 : index
    %c0_2 = arith.constant 0 : index
    %1 = vector.load %arg2[%c0_1, %c0_2] : memref<36x128xbf16, #tpu.memory_space<vmem>>, vector<36x128xbf16>
    %cst = arith.constant dense<0.000000e+00> : vector<512x128xf32>
    %2 = tpu.matmul %0, %1, %cst {dimension_numbers = #tpu.dot_dimension_numbers<[1], [0], [0], [1], [0, 0, 1, 1], [], []>} : vector<512x36xbf16>, vector<36x128xbf16>, vector<512x128xf32> -> vector<512x128xf32>
    %c0_3 = arith.constant 0 : index
    %c0_4 = arith.constant 0 : index
    %3 = vector.load %arg3[%c0_3, %c0_4] : memref<1x128xf32, #tpu.memory_space<vmem>>, vector<1x128xf32>
    %4 = vector.broadcast %3 : vector<1x128xf32> to vector<512x128xf32>
    %5 = arith.addf %2, %4 : vector<512x128xf32>
    %c0_5 = arith.constant 0 : index
    %c0_6 = arith.constant 0 : index
    %6 = vector.load %arg4[%c0_5, %c0_6] : memref<512x128xf32, #tpu.memory_space<vmem>>, vector<512x128xf32>
    tpu.vector_store %arg4[%c0_5, %c0_6], %5 {strides = array<i32>} : memref<512x128xf32, #tpu.memory_space<vmem>>, vector<512x128xf32>,
    %c512_i32 = arith.constant 512 : i32
    %7 = arith.muli %arg0, %c512_i32 : i32
    %8 = tpu.iota {dimensions = array<i32: 0>} : vector<512x128xi32>
    %9 = vector.broadcast %7 : i32 to vector<512x128xi32>
    %10 = arith.addi %9, %8 : vector<512x128xi32>
    %c512_i32_7 = arith.constant 512 : i32
    %11 = vector.broadcast %c512_i32_7 : i32 to vector<512x128xi32>
    %12 = arith.cmpi slt, %10, %11 : vector<512x128xi32>
    %cst_8 = arith.constant 0.000000e+00 : f32
    %13 = vector.broadcast %cst_8 : f32 to vector<512x128xf32>
    %14 = arith.select %12, %5, %13 : vector<512x128xi1>, vector<512x128xf32>
    %15 = vector.shape_cast %14 : vector<512x128xf32> to vector<8x64x128xf32>
    %cst_9 = arith.constant dense<0.000000e+00> : vector<8x128xf32>
    %16 = vector.multi_reduction <add>, %15, %cst_9 [1] : vector<8x64x128xf32> to vector<8x128xf32>
    %c0_10 = arith.constant 0 : index
    %c0_11 = arith.constant 0 : index
    %17 = vector.load %arg5[%c0_10, %c0_11] : memref<8x128xf32, #tpu.memory_space<vmem>>, vector<8x128xf32>
    tpu.vector_store %arg5[%c0_10, %c0_11], %16 {strides = array<i32>} : memref<8x128xf32, #tpu.memory_space<vmem>>, vector<8x128xf32>,
    %18 = arith.mulf %15, %15 : vector<8x64x128xf32>
    %cst_12 = arith.constant dense<0.000000e+00> : vector<8x128xf32>
    %19 = vector.multi_reduction <add>, %18, %cst_12 [1] : vector<8x64x128xf32> to vector<8x128xf32>
    %c0_13 = arith.constant 0 : index
    %c0_14 = arith.constant 0 : index
    %20 = vector.load %arg6[%c0_13, %c0_14] : memref<8x128xf32, #tpu.memory_space<vmem>>, vector<8x128xf32>
    tpu.vector_store %arg6[%c0_13, %c0_14], %19 {strides = array<i32>} : memref<8x128xf32, #tpu.memory_space<vmem>>, vector<8x128xf32>,
    return
  }
  func.func @transform_0(%arg0: i32) -> (i32, i32) {
    %c0_i32 = arith.constant 0 : i32
    %c0_i32_0 = arith.constant 0 : i32
    return %arg0, %c0_i32 : i32, i32
  }
  func.func @transform_1(%arg0: i32) -> (i32, i32) {
    %c0_i32 = arith.constant 0 : i32
    %c0_i32_0 = arith.constant 0 : i32
    %c0_i32_1 = arith.constant 0 : i32
    return %c0_i32, %c0_i32_0 : i32, i32
  }
  func.func @transform_2(%arg0: i32) -> (i32, i32) {
    %c0_i32 = arith.constant 0 : i32
    %c0_i32_0 = arith.constant 0 : i32
    %c0_i32_1 = arith.constant 0 : i32
    return %c0_i32, %c0_i32_0 : i32, i32
  }
  func.func @transform_3(%arg0: i32) -> (i32, i32) {
    %c0_i32 = arith.constant 0 : i32
    %c0_i32_0 = arith.constant 0 : i32
    return %arg0, %c0_i32 : i32, i32
  }
  func.func @transform_4(%arg0: i32) -> (i32, i32) {
    %c0_i32 = arith.constant 0 : i32
    %c0_i32_0 = arith.constant 0 : i32
    return %arg0, %c0_i32 : i32, i32
  }
  func.func @transform_5(%arg0: i32) -> (i32, i32) {
    %c0_i32 = arith.constant 0 : i32
    %c0_i32_0 = arith.constant 0 : i32
    return %arg0, %c0_i32 : i32, i32
  }
}

module attributes {stable_mosaic.version = 11 : i64} {
  func.func @_bn_gelu_kernel(%arg0: i32, %arg1: memref<512x128xf32, #tpu.memory_space<vmem>>, %arg2: memref<1x128xf32, #tpu.memory_space<vmem>>, %arg3: memref<1x128xf32, #tpu.memory_space<vmem>>, %arg4: memref<512x128xf32, #tpu.memory_space<vmem>>) attributes {dimension_semantics = [#tpu.dimension_semantics<parallel>], iteration_bounds = array<i64: 1>, scalar_prefetch = 0 : i64, scratch_operands = 0 : i64, tpu.core_type = #tpu.core_type<tc>, window_params = [{transform_indices = @transform_0, window_bounds = array<i64: 512, 128>}, {pipeline_mode = #tpu.pipeline_mode<synchronous>, transform_indices = @transform_1, window_bounds = array<i64: 1, 128>}, {pipeline_mode = #tpu.pipeline_mode<synchronous>, transform_indices = @transform_2, window_bounds = array<i64: 1, 128>}, {transform_indices = @transform_3, window_bounds = array<i64: 512, 128>}]} {
    %c0 = arith.constant 0 : index
    %c0_0 = arith.constant 0 : index
    %0 = vector.load %arg1[%c0, %c0_0] : memref<512x128xf32, #tpu.memory_space<vmem>>, vector<512x128xf32>
    %c0_1 = arith.constant 0 : index
    %c0_2 = arith.constant 0 : index
    %1 = vector.load %arg2[%c0_1, %c0_2] : memref<1x128xf32, #tpu.memory_space<vmem>>, vector<1x128xf32>
    %2 = vector.broadcast %1 : vector<1x128xf32> to vector<512x128xf32>
    %3 = arith.mulf %0, %2 : vector<512x128xf32>
    %c0_3 = arith.constant 0 : index
    %c0_4 = arith.constant 0 : index
    %4 = vector.load %arg3[%c0_3, %c0_4] : memref<1x128xf32, #tpu.memory_space<vmem>>, vector<1x128xf32>
    %5 = vector.broadcast %4 : vector<1x128xf32> to vector<512x128xf32>
    %6 = arith.addf %3, %5 : vector<512x128xf32>
    %cst = arith.constant 5.000000e-01 : f32
    %7 = vector.broadcast %cst : f32 to vector<512x128xf32>
    %8 = arith.mulf %7, %6 : vector<512x128xf32>
    %cst_5 = arith.constant 4.471500e-02 : f32
    %9 = vector.broadcast %cst_5 : f32 to vector<512x128xf32>
    %10 = arith.mulf %9, %6 : vector<512x128xf32>
    %11 = arith.mulf %10, %6 : vector<512x128xf32>
    %12 = arith.mulf %11, %6 : vector<512x128xf32>
    %13 = arith.addf %6, %12 : vector<512x128xf32>
    %cst_6 = arith.constant 0.797884583 : f32
    %14 = vector.broadcast %cst_6 : f32 to vector<512x128xf32>
    %15 = arith.mulf %14, %13 : vector<512x128xf32>
    %16 = math.tanh %15 : vector<512x128xf32>
    %cst_7 = arith.constant 1.000000e+00 : f32
    %17 = vector.broadcast %cst_7 : f32 to vector<512x128xf32>
    %18 = arith.addf %17, %16 : vector<512x128xf32>
    %19 = arith.mulf %8, %18 : vector<512x128xf32>
    %c0_8 = arith.constant 0 : index
    %c0_9 = arith.constant 0 : index
    %20 = vector.load %arg4[%c0_8, %c0_9] : memref<512x128xf32, #tpu.memory_space<vmem>>, vector<512x128xf32>
    tpu.vector_store %arg4[%c0_8, %c0_9], %19 {strides = array<i32>} : memref<512x128xf32, #tpu.memory_space<vmem>>, vector<512x128xf32>,
    return
  }
  func.func @transform_0(%arg0: i32) -> (i32, i32) {
    %c0_i32 = arith.constant 0 : i32
    %c0_i32_0 = arith.constant 0 : i32
    return %arg0, %c0_i32 : i32, i32
  }
  func.func @transform_1(%arg0: i32) -> (i32, i32) {
    %c0_i32 = arith.constant 0 : i32
    %c0_i32_0 = arith.constant 0 : i32
    %c0_i32_1 = arith.constant 0 : i32
    return %c0_i32, %c0_i32_0 : i32, i32
  }
  func.func @transform_2(%arg0: i32) -> (i32, i32) {
    %c0_i32 = arith.constant 0 : i32
    %c0_i32_0 = arith.constant 0 : i32
    %c0_i32_1 = arith.constant 0 : i32
    return %c0_i32, %c0_i32_0 : i32, i32
  }
  func.func @transform_3(%arg0: i32) -> (i32, i32) {
    %c0_i32 = arith.constant 0 : i32
    %c0_i32_0 = arith.constant 0 : i32
    return %arg0, %c0_i32 : i32, i32
  }
}

</mosaic_0001>

<llo_original>
// kernel: dft_forward.3
$region0: #{dft_forward.3}
  #allocation0 [shape = 'u32[]', space=smem, size = 0x4, offset = 0x4, fixed_abs, tag = 'smem constant byte address 0x4 - core index']
  #allocation1 [shape = 'u32[72,128]{1,0:T(1,128)}', space=vmem, size = 0x9000, scoped, tag = 'internal scratch']
  %s0 = inlined_call_operand.vmem [shape: bf16[512,36], index: 0, kind: input, shape index: {}]
  %s1 = inlined_call_operand.vmem [shape: bf16[36,128], index: 1, kind: input, shape index: {}]
  %s2 = inlined_call_operand.vmem [shape: f32[1,128], index: 2, kind: input, shape index: {}]
  %s3 = inlined_call_operand.vmem [shape: f32[512,128], index: 3, kind: output, shape index: {}]
  %s4 = sld [smem:[#allocation0]]
  $region22: #{dft_forward.3} parent=0
    _
  %s6 = ssub.s32 1, %s4
  %s7 = scalar_select 0, %s6, %s4
  // Predicated region
  $region2: #{dft_forward.3} parent=0 // pred_check
    _
  $region3: #{dft_forward.3} parent=0 // pred_check_branch
    %9 = sbr.rel (0) target = $region5
  $region4: #{dft_forward.3} parent=0 // pred_region
    _
  $region5: #{dft_forward.3} parent=0 // pred_fallthru
    _
  // Predicated region
  $region6: #{dft_forward.3} parent=0 // pred_check
    _
  $region7: #{dft_forward.3} parent=0 // pred_check_branch
    %11 = sbr.rel (0) target = $region9
  $region8: #{dft_forward.3} parent=0 // pred_region
    _
  $region9: #{dft_forward.3} parent=0 // pred_fallthru
    _
  // Predicated region
  $region10: #{dft_forward.3} parent=0 // pred_check
    _
  $region11: #{dft_forward.3} parent=0 // pred_check_branch
    %13 = sbr.rel (0) target = $region13
  $region12: #{dft_forward.3} parent=0 // pred_region
    _
  $region13: #{dft_forward.3} parent=0 // pred_fallthru
    _
  %v15 = vld [vmem:[%s0] sm:$0xf]
  %v16 = vld [vmem:[%s0 + $0x4] sm:$0xf]
  %v17 = vld [vmem:[%s0 + $0x8] sm:$0xf]
  %v18 = vld [vmem:[%s0 + $0xc] sm:$0xf]
  %v19 = vld [vmem:[%s0 + $0x10] sm:$0xf]
  %v20 = vld [vmem:[%s0 + $0x14] sm:$0xf]
  %v21 = vld [vmem:[%s0 + $0x18] sm:$0xf]
  %v22 = vld [vmem:[%s0 + $0x1c] sm:$0xf]
  %v23 = vld [vmem:[%s0 + $0x20] sm:$0xf]
  %v24 = vld [vmem:[%s0 + $0x24] sm:$0xf]
  %v25 = vld [vmem:[%s0 + $0x28] sm:$0xf]
  %v26 = vld [vmem:[%s0 + $0x2c] sm:$0xf]
  %v27 = vld [vmem:[%s0 + $0x30] sm:$0xf]
  %v28 = vld [vmem:[%s0 + $0x34] sm:$0xf]
  %v29 = vld [vmem:[%s0 + $0x38] sm:$0xf]
  %v30 = vld [vmem:[%s0 + $0x3c] sm:$0xf]
  %v31 = vld [vmem:[%s0 + $0x40] sm:$0xf]
  %v32 = vld [vmem:[%s0 + $0x44] sm:$0xf]
  %v33 = vld [vmem:[%s0 + $0x48] sm:$0xf]
  %v34 = vld [vmem:[%s0 + $0x4c] sm:$0xf]
  %v35 = vld [vmem:[%s0 + $0x50] sm:$0xf]
  %v36 = vld [vmem:[%s0 + $0x54] sm:$0xf]
  %v37 = vld [vmem:[%s0 + $0x58] sm:$0xf]
  %v38 = vld [vmem:[%s0 + $0x5c] sm:$0xf]
  %v39 = vld [vmem:[%s0 + $0x60] sm:$0xf]
  %v40 = vld [vmem:[%s0 + $0x64] sm:$0xf]
  %v41 = vld [vmem:[%s0 + $0x68] sm:$0xf]
  %v42 = vld [vmem:[%s0 + $0x6c] sm:$0xf]
  %v43 = vld [vmem:[%s0 + $0x70] sm:$0xf]
  %v44 = vld [vmem:[%s0 + $0x74] sm:$0xf]
  %v45 = vld [vmem:[%s0 + $0x78] sm:$0xf]
  %v46 = vld [vmem:[%s0 + $0x7c] sm:$0xf]
  %v47 = vld [vmem:[%s0 + $0x80] sm:$0xf]
  %v48 = vld [vmem:[%s0 + $0x84] sm:$0xf]
  %v49 = vld [vmem:[%s0 + $0x88] sm:$0xf]
  %v50 = vld [vmem:[%s0 + $0x8c] sm:$0xf]
  %v51 = vld [vmem:[%s0 + $0x90] sm:$0xf]
  %v52 = vld [vmem:[%s0 + $0x94] sm:$0xf]
  %v53 = vld [vmem:[%s0 + $0x98] sm:$0xf]
  %v54 = vld [vmem:[%s0 + $0x9c] sm:$0xf]
  %v55 = vld [vmem:[%s0 + $0xa0] sm:$0xf]
  %v56 = vld [vmem:[%s0 + $0xa4] sm:$0xf]
  %v57 = vld [vmem:[%s0 + $0xa8] sm:$0xf]
  %v58 = vld [vmem:[%s0 + $0xac] sm:$0xf]
  %v59 = vld [vmem:[%s0 + $0xb0] sm:$0xf]
  %v60 = vld [vmem:[%s0 + $0xb4] sm:$0xf]
  %v61 = vld [vmem:[%s0 + $0xb8] sm:$0xf]
  %v62 = vld [vmem:[%s0 + $0xbc] sm:$0xf]
  %v63 = vld [vmem:[%s0 + $0xc0] sm:$0xf]
  %v64 = vld [vmem:[%s0 + $0xc4] sm:$0xf]
  %v65 = vld [vmem:[%s0 + $0xc8] sm:$0xf]
  %v66 = vld [vmem:[%s0 + $0xcc] sm:$0xf]
  %v67 = vld [vmem:[%s0 + $0xd0] sm:$0xf]
  %v68 = vld [vmem:[%s0 + $0xd4] sm:$0xf]
  %v69 = vld [vmem:[%s0 + $0xd8] sm:$0xf]
  %v70 = vld [vmem:[%s0 + $0xdc] sm:$0xf]
  %v71 = vld [vmem:[%s0 + $0xe0] sm:$0xf]
  %v72 = vld [vmem:[%s0 + $0xe4] sm:$0xf]
  %v73 = vld [vmem:[%s0 + $0xe8] sm:$0xf]
  %v74 = vld [vmem:[%s0 + $0xec] sm:$0xf]
  %v75 = vld [vmem:[%s0 + $0xf0] sm:$0xf]
  %v76 = vld [vmem:[%s0 + $0xf4] sm:$0xf]
  %v77 = vld [vmem:[%s0 + $0xf8] sm:$0xf]
  %v78 = vld [vmem:[%s0 + $0xfc] sm:$0xf]
  %v79 = vld [vmem:[%s1] sm:$0xf]
  %v80 = vld [vmem:[%s1 + $0x4] sm:$0xf]
  %v81 = vld [vmem:[%s1 + $0x8] sm:$0xf]
  %v82 = vld [vmem:[%s1 + $0xc] sm:$0xf]
  %v83 = vld [vmem:[%s1 + $0x10] sm:$0x3]
  %v84 = vld [vmem:[%s2] sm:$0x1]
  %v86 = vperm.slane %v84, 0
  %v152 = vunpack.c.l.b16 %v15
  %v153 = vunpack.c.l.b16 %v16
  %v154 = vunpack.c.l.b16 %v17
  %v155 = vunpack.c.l.b16 %v18
  %v156 = vunpack.c.l.b16 %v19
  %v157 = vunpack.c.l.b16 %v20
  %v158 = vunpack.c.l.b16 %v21
  %v159 = vunpack.c.l.b16 %v22
  %v160 = vunpack.c.l.b16 %v23
  %v161 = vunpack.c.l.b16 %v24
  %v162 = vunpack.c.l.b16 %v25
  %v163 = vunpack.c.l.b16 %v26
  %v164 = vunpack.c.l.b16 %v27
  %v165 = vunpack.c.l.b16 %v28
  %v166 = vunpack.c.l.b16 %v29
  %v167 = vunpack.c.l.b16 %v30
  %v168 = vunpack.c.l.b16 %v31
  %v169 = vunpack.c.l.b16 %v32
  %v170 = vunpack.c.l.b16 %v33
  %v171 = vunpack.c.l.b16 %v34
  %v172 = vunpack.c.l.b16 %v35
  %v173 = vunpack.c.l.b16 %v36
  %v174 = vunpack.c.l.b16 %v37
  %v175 = vunpack.c.l.b16 %v38
  %v176 = vunpack.c.l.b16 %v39
  %v177 = vunpack.c.l.b16 %v40
  %v178 = vunpack.c.l.b16 %v41
  %v179 = vunpack.c.l.b16 %v42
  %v180 = vunpack.c.l.b16 %v43
  %v181 = vunpack.c.l.b16 %v44
  %v182 = vunpack.c.l.b16 %v45
  %v183 = vunpack.c.l.b16 %v46
  %v184 = vunpack.c.l.b16 %v47
  %v185 = vunpack.c.l.b16 %v48
  %v186 = vunpack.c.l.b16 %v49
  %v187 = vunpack.c.l.b16 %v50
  %v188 = vunpack.c.l.b16 %v51
  %v189 = vunpack.c.l.b16 %v52
  %v190 = vunpack.c.l.b16 %v53
  %v191 = vunpack.c.l.b16 %v54
  %v192 = vunpack.c.l.b16 %v55
  %v193 = vunpack.c.l.b16 %v56
  %v194 = vunpack.c.l.b16 %v57
  %v195 = vunpack.c.l.b16 %v58
  %v196 = vunpack.c.l.b16 %v59
  %v197 = vunpack.c.l.b16 %v60
  %v198 = vunpack.c.l.b16 %v61
  %v199 = vunpack.c.l.b16 %v62
  %v200 = vunpack.c.l.b16 %v63
  %v201 = vunpack.c.l.b16 %v64
  %v202 = vunpack.c.l.b16 %v65
  %v203 = vunpack.c.l.b16 %v66
  %v204 = vunpack.c.l.b16 %v67
  %v205 = vunpack.c.l.b16 %v68
  %v206 = vunpack.c.l.b16 %v69
  %v207 = vunpack.c.l.b16 %v70
  %v208 = vunpack.c.l.b16 %v71
  %v209 = vunpack.c.l.b16 %v72
  %v210 = vunpack.c.l.b16 %v73
  %v211 = vunpack.c.l.b16 %v74
  %v212 = vunpack.c.l.b16 %v75
  %v213 = vunpack.c.l.b16 %v76
  %v214 = vunpack.c.l.b16 %v77
  %v215 = vunpack.c.l.b16 %v78
  %v216 = vpack.c.b16 %v153, %v152
  %v217 = vpack.c.b16 %v155, %v154
  %v218 = vpack.c.b16 %v157, %v156
  %v219 = vpack.c.b16 %v159, %v158
  %v220 = vpack.c.b16 %v161, %v160
  %v221 = vpack.c.b16 %v163, %v162
  %v222 = vpack.c.b16 %v165, %v164
  %v223 = vpack.c.b16 %v167, %v166
  %v224 = vpack.c.b16 %v169, %v168
  %v225 = vpack.c.b16 %v171, %v170
  %v226 = vpack.c.b16 %v173, %v172
  %v227 = vpack.c.b16 %v175, %v174
  %v228 = vpack.c.b16 %v177, %v176
  %v229 = vpack.c.b16 %v179, %v178
  %v230 = vpack.c.b16 %v181, %v180
  %v231 = vpack.c.b16 %v183, %v182
  %v232 = vpack.c.b16 %v185, %v184
  %v233 = vpack.c.b16 %v187, %v186
  %v234 = vpack.c.b16 %v189, %v188
  %v235 = vpack.c.b16 %v191, %v190
  %v236 = vpack.c.b16 %v193, %v192
  %v237 = vpack.c.b16 %v195, %v194
  %v238 = vpack.c.b16 %v197, %v196
  %v239 = vpack.c.b16 %v199, %v198
  %v240 = vpack.c.b16 %v201, %v200
  %v241 = vpack.c.b16 %v203, %v202
  %v242 = vpack.c.b16 %v205, %v204
  %v243 = vpack.c.b16 %v207, %v206
  %v244 = vpack.c.b16 %v209, %v208
  %v245 = vpack.c.b16 %v211, %v210
  %v246 = vpack.c.b16 %v213, %v212
  %v247 = vpack.c.b16 %v215, %v214
  %v253 = vunpack.c.l.b16 %v79
  %v254 = vunpack.c.l.b16 %v80
  %v255 = vunpack.c.l.b16 %v81
  %v256 = vunpack.c.l.b16 %v82
  %v257 = vunpack.c.l.b16 %v83
  %v258 = vpack.c.b16 %v254, %v253
  %v259 = vpack.c.b16 %v256, %v255
  %v260 = vpack.c.b16 %v257, %v257
  %vm263 = vcmask 293888
  %v265 = vsel %vm263, %v216, 0
  %v268 = vsel %vm263, %v217, 0
  %v271 = vsel %vm263, %v218, 0
  %v274 = vsel %vm263, %v219, 0
  %v277 = vsel %vm263, %v220, 0
  %v280 = vsel %vm263, %v221, 0
  %v283 = vsel %vm263, %v222, 0
  %v286 = vsel %vm263, %v223, 0
  %v289 = vsel %vm263, %v224, 0
  %v292 = vsel %vm263, %v225, 0
  %v295 = vsel %vm263, %v226, 0
  %v298 = vsel %vm263, %v227, 0
  %v301 = vsel %vm263, %v228, 0
  %v304 = vsel %vm263, %v229, 0
  %v307 = vsel %vm263, %v230, 0
  %v310 = vsel %vm263, %v231, 0
  %v313 = vsel %vm263, %v232, 0
  %v316 = vsel %vm263, %v233, 0
  %v319 = vsel %vm263, %v234, 0
  %v322 = vsel %vm263, %v235, 0
  %v325 = vsel %vm263, %v236, 0
  %v328 = vsel %vm263, %v237, 0
  %v331 = vsel %vm263, %v238, 0
  %v334 = vsel %vm263, %v239, 0
  %v337 = vsel %vm263, %v240, 0
  %v340 = vsel %vm263, %v241, 0
  %v343 = vsel %vm263, %v242, 0
  %v346 = vsel %vm263, %v243, 0
  %v349 = vsel %vm263, %v244, 0
  %v352 = vsel %vm263, %v245, 0
  %v355 = vsel %vm263, %v246, 0
  %v358 = vsel %vm263, %v247, 0
  %vm360 = vcmask 1041408
  %v362 = vsel %vm360, %v260, 0
  %364 = vmatpush.bf16.msra.mxu0 0
  %365 = vmatpush.bf16.msra.mxu0 0
  %366 = vmatpush.bf16.msra.mxu0 0
  %367 = vmatpush.bf16.msra.mxu0 0
  %368 = vmatpush.bf16.msra.mxu0 0
  %369 = vmatpush.bf16.msra.mxu0 %v362
  %370 = vmatpush.bf16.msra.mxu0 %v259
  %371 = vmatpush.bf16.msra.mxu0 %v258
  %372 = vmatmul.bf16.gmra.mxu0 %v265
  %v373 = vpop.f32.mrf.mxu0
  %v374 = vadd.f32 %v86, %v373
  %v375 = vpop.f32.mrf.mxu0
  %v376 = vadd.f32 %v86, %v375
  %377 = vmatmul.bf16.gmra.mxu0 %v268
  %v378 = vpop.f32.mrf.mxu0
  %v379 = vadd.f32 %v86, %v378
  %v380 = vpop.f32.mrf.mxu0
  %v381 = vadd.f32 %v86, %v380
  %382 = vmatmul.bf16.gmra.mxu0 %v271
  %v383 = vpop.f32.mrf.mxu0
  %v384 = vadd.f32 %v86, %v383
  %v385 = vpop.f32.mrf.mxu0
  %v386 = vadd.f32 %v86, %v385
  %387 = vmatmul.bf16.gmra.mxu0 %v274
  %v388 = vpop.f32.mrf.mxu0
  %v389 = vadd.f32 %v86, %v388
  %v390 = vpop.f32.mrf.mxu0
  %v391 = vadd.f32 %v86, %v390
  %392 = vmatmul.bf16.gmra.mxu0 %v277
  %v393 = vpop.f32.mrf.mxu0
  %v394 = vadd.f32 %v86, %v393
  %v395 = vpop.f32.mrf.mxu0
  %v396 = vadd.f32 %v86, %v395
  %397 = vmatmul.bf16.gmra.mxu0 %v280
  %v398 = vpop.f32.mrf.mxu0
  %v399 = vadd.f32 %v86, %v398
  %v400 = vpop.f32.mrf.mxu0
  %v401 = vadd.f32 %v86, %v400
  %402 = vmatmul.bf16.gmra.mxu0 %v283
  %v403 = vpop.f32.mrf.mxu0
  %v404 = vadd.f32 %v86, %v403
  %v405 = vpop.f32.mrf.mxu0
  %v406 = vadd.f32 %v86, %v405
  %407 = vmatmul.bf16.gmra.mxu0 %v286
  %v408 = vpop.f32.mrf.mxu0
  %v409 = vadd.f32 %v86, %v408
  %v410 = vpop.f32.mrf.mxu0
  %v411 = vadd.f32 %v86, %v410
  %412 = vmatmul.bf16.gmra.mxu0 %v289
  %v413 = vpop.f32.mrf.mxu0
  %v414 = vadd.f32 %v86, %v413
  %v415 = vpop.f32.mrf.mxu0
  %v416 = vadd.f32 %v86, %v415
  %417 = vmatmul.bf16.gmra.mxu0 %v292
  %v418 = vpop.f32.mrf.mxu0
  %v419 = vadd.f32 %v86, %v418
  %v420 = vpop.f32.mrf.mxu0
  %v421 = vadd.f32 %v86, %v420
  %422 = vmatmul.bf16.gmra.mxu0 %v295
  %v423 = vpop.f32.mrf.mxu0
  %v424 = vadd.f32 %v86, %v423
  %v425 = vpop.f32.mrf.mxu0
  %v426 = vadd.f32 %v86, %v425
  %427 = vmatmul.bf16.gmra.mxu0 %v298
  %v428 = vpop.f32.mrf.mxu0
  %v429 = vadd.f32 %v86, %v428
  %v430 = vpop.f32.mrf.mxu0
  %v431 = vadd.f32 %v86, %v430
  %432 = vmatmul.bf16.gmra.mxu0 %v301
  %v433 = vpop.f32.mrf.mxu0
  %v434 = vadd.f32 %v86, %v433
  %v435 = vpop.f32.mrf.mxu0
  %v436 = vadd.f32 %v86, %v435
  %437 = vmatmul.bf16.gmra.mxu0 %v304
  %v438 = vpop.f32.mrf.mxu0
  %v439 = vadd.f32 %v86, %v438
  %v440 = vpop.f32.mrf.mxu0
  %v441 = vadd.f32 %v86, %v440
  %442 = vmatmul.bf16.gmra.mxu0 %v307
  %v443 = vpop.f32.mrf.mxu0
  %v444 = vadd.f32 %v86, %v443
  %v445 = vpop.f32.mrf.mxu0
  %v446 = vadd.f32 %v86, %v445
  %447 = vmatmul.bf16.gmra.mxu0 %v310
  %v448 = vpop.f32.mrf.mxu0
  %v449 = vadd.f32 %v86, %v448
  %v450 = vpop.f32.mrf.mxu0
  %v451 = vadd.f32 %v86, %v450
  %452 = vmatmul.bf16.gmra.mxu0 %v313
  %v453 = vpop.f32.mrf.mxu0
  %v454 = vadd.f32 %v86, %v453
  %v455 = vpop.f32.mrf.mxu0
  %v456 = vadd.f32 %v86, %v455
  %457 = vmatmul.bf16.gmra.mxu0 %v316
  %v458 = vpop.f32.mrf.mxu0
  %v459 = vadd.f32 %v86, %v458
  %v460 = vpop.f32.mrf.mxu0
  %v461 = vadd.f32 %v86, %v460
  %462 = vmatmul.bf16.gmra.mxu0 %v319
  %v463 = vpop.f32.mrf.mxu0
  %v464 = vadd.f32 %v86, %v463
  %v465 = vpop.f32.mrf.mxu0
  %v466 = vadd.f32 %v86, %v465
  %467 = vmatmul.bf16.gmra.mxu0 %v322
  %v468 = vpop.f32.mrf.mxu0
  %v469 = vadd.f32 %v86, %v468
  %v470 = vpop.f32.mrf.mxu0
  %v471 = vadd.f32 %v86, %v470
  %472 = vmatmul.bf16.gmra.mxu0 %v325
  %v473 = vpop.f32.mrf.mxu0
  %v474 = vadd.f32 %v86, %v473
  %v475 = vpop.f32.mrf.mxu0
  %v476 = vadd.f32 %v86, %v475
  %477 = vmatmul.bf16.gmra.mxu0 %v328
  %v478 = vpop.f32.mrf.mxu0
  %v479 = vadd.f32 %v86, %v478
  %v480 = vpop.f32.mrf.mxu0
  %v481 = vadd.f32 %v86, %v480
  %482 = vmatmul.bf16.gmra.mxu0 %v331
  %v483 = vpop.f32.mrf.mxu0
  %v484 = vadd.f32 %v86, %v483
  %v485 = vpop.f32.mrf.mxu0
  %v486 = vadd.f32 %v86, %v485
  %487 = vmatmul.bf16.gmra.mxu0 %v334
  %v488 = vpop.f32.mrf.mxu0
  %v489 = vadd.f32 %v86, %v488
  %v490 = vpop.f32.mrf.mxu0
  %v491 = vadd.f32 %v86, %v490
  %492 = vmatmul.bf16.gmra.mxu0 %v337
  %v493 = vpop.f32.mrf.mxu0
  %v494 = vadd.f32 %v86, %v493
  %v495 = vpop.f32.mrf.mxu0
  %v496 = vadd.f32 %v86, %v495
  %497 = vmatmul.bf16.gmra.mxu0 %v340
  %v498 = vpop.f32.mrf.mxu0
  %v499 = vadd.f32 %v86, %v498
  %v500 = vpop.f32.mrf.mxu0
  %v501 = vadd.f32 %v86, %v500
  %502 = vmatmul.bf16.gmra.mxu0 %v343
  %v503 = vpop.f32.mrf.mxu0
  %v504 = vadd.f32 %v86, %v503
  %v505 = vpop.f32.mrf.mxu0
  %v506 = vadd.f32 %v86, %v505
  %507 = vmatmul.bf16.gmra.mxu0 %v346
  %v508 = vpop.f32.mrf.mxu0
  %v509 = vadd.f32 %v86, %v508
  %v510 = vpop.f32.mrf.mxu0
  %v511 = vadd.f32 %v86, %v510
  %512 = vmatmul.bf16.gmra.mxu0 %v349
  %v513 = vpop.f32.mrf.mxu0
  %v514 = vadd.f32 %v86, %v513
  %v515 = vpop.f32.mrf.mxu0
  %v516 = vadd.f32 %v86, %v515
  %517 = vmatmul.bf16.gmra.mxu0 %v352
  %v518 = vpop.f32.mrf.mxu0
  %v519 = vadd.f32 %v86, %v518
  %v520 = vpop.f32.mrf.mxu0
  %v521 = vadd.f32 %v86, %v520
  %522 = vmatmul.bf16.gmra.mxu0 %v355
  %v523 = vpop.f32.mrf.mxu0
  %v524 = vadd.f32 %v86, %v523
  %v525 = vpop.f32.mrf.mxu0
  %v526 = vadd.f32 %v86, %v525
  %527 = vmatmul.bf16.gmra.mxu0 %v358
  %v528 = vpop.f32.mrf.mxu0
  %v529 = vadd.f32 %v86, %v528
  %v530 = vpop.f32.mrf.mxu0
  %v531 = vadd.f32 %v86, %v530
  %532 = vdwg.mxu0
  %v533 = vlaneseq
  %v534 = vand.u32 %v533, 127
  %vm535 = vcmp.lt.s32.totalorder %v534, 18
  %v536 = vmax.f32 %v374, -4.0
  %v537 = vmax.f32 %v376, -4.0
  %v538 = vmax.f32 %v379, -4.0
  %v539 = vmax.f32 %v381, -4.0
  %v540 = vmax.f32 %v384, -4.0
  %v541 = vmax.f32 %v386, -4.0
  %v542 = vmax.f32 %v389, -4.0
  %v543 = vmax.f32 %v391, -4.0
  %v544 = vmax.f32 %v394, -4.0
  %v545 = vmax.f32 %v396, -4.0
  %v546 = vmax.f32 %v399, -4.0
  %v547 = vmax.f32 %v401, -4.0
  %v548 = vmax.f32 %v404, -4.0
  %v549 = vmax.f32 %v406, -4.0
  %v550 = vmax.f32 %v409, -4.0
  %v551 = vmax.f32 %v411, -4.0
  %v552 = vmax.f32 %v414, -4.0
  %v553 = vmax.f32 %v416, -4.0
  %v554 = vmax.f32 %v419, -4.0
  %v555 = vmax.f32 %v421, -4.0
  %v556 = vmax.f32 %v424, -4.0
  %v557 = vmax.f32 %v426, -4.0
  %v558 = vmax.f32 %v429, -4.0
  %v559 = vmax.f32 %v431, -4.0
  %v560 = vmax.f32 %v434, -4.0
  %v561 = vmax.f32 %v436, -4.0
  %v562 = vmax.f32 %v439, -4.0
  %v563 = vmax.f32 %v441, -4.0
  %v564 = vmax.f32 %v444, -4.0
  %v565 = vmax.f32 %v446, -4.0
  %v566 = vmax.f32 %v449, -4.0
  %v567 = vmax.f32 %v451, -4.0
  %v568 = vmax.f32 %v454, -4.0
  %v569 = vmax.f32 %v456, -4.0
  %v570 = vmax.f32 %v459, -4.0
  %v571 = vmax.f32 %v461, -4.0
  %v572 = vmax.f32 %v464, -4.0
  %v573 = vmax.f32 %v466, -4.0
  %v574 = vmax.f32 %v469, -4.0
  %v575 = vmax.f32 %v471, -4.0
  %v576 = vmax.f32 %v474, -4.0
  %v577 = vmax.f32 %v476, -4.0
  %v578 = vmax.f32 %v479, -4.0
  %v579 = vmax.f32 %v481, -4.0
  %v580 = vmax.f32 %v484, -4.0
  %v581 = vmax.f32 %v486, -4.0
  %v582 = vmax.f32 %v489, -4.0
  %v583 = vmax.f32 %v491, -4.0
  %v584 = vmax.f32 %v494, -4.0
  %v585 = vmax.f32 %v496, -4.0
  %v586 = vmax.f32 %v499, -4.0
  %v587 = vmax.f32 %v501, -4.0
  %v588 = vmax.f32 %v504, -4.0
  %v589 = vmax.f32 %v506, -4.0
  %v590 = vmax.f32 %v509, -4.0
  %v591 = vmax.f32 %v511, -4.0
  %v592 = vmax.f32 %v514, -4.0
  %v593 = vmax.f32 %v516, -4.0
  %v594 = vmax.f32 %v519, -4.0
  %v595 = vmax.f32 %v521, -4.0
  %v596 = vmax.f32 %v524, -4.0
  %v597 = vmax.f32 %v526, -4.0
  %v598 = vmax.f32 %v529, -4.0
  %v599 = vmax.f32 %v531, -4.0
  %v600 = vmin.f32 %v536, 4.0
  %v601 = vmin.f32 %v537, 4.0
  %v602 = vmin.f32 %v538, 4.0
  %v603 = vmin.f32 %v539, 4.0
  %v604 = vmin.f32 %v540, 4.0
  %v605 = vmin.f32 %v541, 4.0
  %v606 = vmin.f32 %v542, 4.0
  %v607 = vmin.f32 %v543, 4.0
  %v608 = vmin.f32 %v544, 4.0
  %v609 = vmin.f32 %v545, 4.0
  %v610 = vmin.f32 %v546, 4.0
  %v611 = vmin.f32 %v547, 4.0
  %v612 = vmin.f32 %v548, 4.0
  %v613 = vmin.f32 %v549, 4.0
  %v614 = vmin.f32 %v550, 4.0
  %v615 = vmin.f32 %v551, 4.0
  %v616 = vmin.f32 %v552, 4.0
  %v617 = vmin.f32 %v553, 4.0
  %v618 = vmin.f32 %v554, 4.0
  %v619 = vmin.f32 %v555, 4.0
  %v620 = vmin.f32 %v556, 4.0
  %v621 = vmin.f32 %v557, 4.0
  %v622 = vmin.f32 %v558, 4.0
  %v623 = vmin.f32 %v559, 4.0
  %v624 = vmin.f32 %v560, 4.0
  %v625 = vmin.f32 %v561, 4.0
  %v626 = vmin.f32 %v562, 4.0
  %v627 = vmin.f32 %v563, 4.0
  %v628 = vmin.f32 %v564, 4.0
  %v629 = vmin.f32 %v565, 4.0
  %v630 = vmin.f32 %v566, 4.0
  %v631 = vmin.f32 %v567, 4.0
  %v632 = vmin.f32 %v568, 4.0
  %v633 = vmin.f32 %v569, 4.0
  %v634 = vmin.f32 %v570, 4.0
  %v635 = vmin.f32 %v571, 4.0
  %v636 = vmin.f32 %v572, 4.0
  %v637 = vmin.f32 %v573, 4.0
  %v638 = vmin.f32 %v574, 4.0
  %v639 = vmin.f32 %v575, 4.0
  %v640 = vmin.f32 %v576, 4.0
  %v641 = vmin.f32 %v577, 4.0
  %v642 = vmin.f32 %v578, 4.0
  %v643 = vmin.f32 %v579, 4.0
  %v644 = vmin.f32 %v580, 4.0
  %v645 = vmin.f32 %v581, 4.0
  %v646 = vmin.f32 %v582, 4.0
  %v647 = vmin.f32 %v583, 4.0
  %v648 = vmin.f32 %v584, 4.0
  %v649 = vmin.f32 %v585, 4.0
  %v650 = vmin.f32 %v586, 4.0
  %v651 = vmin.f32 %v587, 4.0
  %v652 = vmin.f32 %v588, 4.0
  %v653 = vmin.f32 %v589, 4.0
  %v654 = vmin.f32 %v590, 4.0
  %v655 = vmin.f32 %v591, 4.0
  %v656 = vmin.f32 %v592, 4.0
  %v657 = vmin.f32 %v593, 4.0
  %v658 = vmin.f32 %v594, 4.0
  %v659 = vmin.f32 %v595, 4.0
  %v660 = vmin.f32 %v596, 4.0
  %v661 = vmin.f32 %v597, 4.0
  %v662 = vmin.f32 %v598, 4.0
  %v663 = vmin.f32 %v599, 4.0
  %v664 = vxor.u32 %v374, 2147483648
  %v665 = vxor.u32 %v376, 2147483648
  %v666 = vxor.u32 %v379, 2147483648
  %v667 = vxor.u32 %v381, 2147483648
  %v668 = vxor.u32 %v384, 2147483648
  %v669 = vxor.u32 %v386, 2147483648
  %v670 = vxor.u32 %v389, 2147483648
  %v671 = vxor.u32 %v391, 2147483648
  %v672 = vxor.u32 %v394, 2147483648
  %v673 = vxor.u32 %v396, 2147483648
  %v674 = vxor.u32 %v399, 2147483648
  %v675 = vxor.u32 %v401, 2147483648
  %v676 = vxor.u32 %v404, 2147483648
  %v677 = vxor.u32 %v406, 2147483648
  %v678 = vxor.u32 %v409, 2147483648
  %v679 = vxor.u32 %v411, 2147483648
  %v680 = vxor.u32 %v414, 2147483648
  %v681 = vxor.u32 %v416, 2147483648
  %v682 = vxor.u32 %v419, 2147483648
  %v683 = vxor.u32 %v421, 2147483648
  %v684 = vxor.u32 %v424, 2147483648
  %v685 = vxor.u32 %v426, 2147483648
  %v686 = vxor.u32 %v429, 2147483648
  %v687 = vxor.u32 %v431, 2147483648
  %v688 = vxor.u32 %v434, 2147483648
  %v689 = vxor.u32 %v436, 2147483648
  %v690 = vxor.u32 %v439, 2147483648
  %v691 = vxor.u32 %v441, 2147483648
  %v692 = vxor.u32 %v444, 2147483648
  %v693 = vxor.u32 %v446, 2147483648
  %v694 = vxor.u32 %v449, 2147483648
  %v695 = vxor.u32 %v451, 2147483648
  %v696 = vxor.u32 %v454, 2147483648
  %v697 = vxor.u32 %v456, 2147483648
  %v698 = vxor.u32 %v459, 2147483648
  %v699 = vxor.u32 %v461, 2147483648
  %v700 = vxor.u32 %v464, 2147483648
  %v701 = vxor.u32 %v466, 2147483648
  %v702 = vxor.u32 %v469, 2147483648
  %v703 = vxor.u32 %v471, 2147483648
  %v704 = vxor.u32 %v474, 2147483648
  %v705 = vxor.u32 %v476, 2147483648
  %v706 = vxor.u32 %v479, 2147483648
  %v707 = vxor.u32 %v481, 2147483648
  %v708 = vxor.u32 %v484, 2147483648
  %v709 = vxor.u32 %v486, 2147483648
  %v710 = vxor.u32 %v489, 2147483648
  %v711 = vxor.u32 %v491, 2147483648
  %v712 = vxor.u32 %v494, 2147483648
  %v713 = vxor.u32 %v496, 2147483648
  %v714 = vxor.u32 %v499, 2147483648
  %v715 = vxor.u32 %v501, 2147483648
  %v716 = vxor.u32 %v504, 2147483648
  %v717 = vxor.u32 %v506, 2147483648
  %v718 = vxor.u32 %v509, 2147483648
  %v719 = vxor.u32 %v511, 2147483648
  %v720 = vxor.u32 %v514, 2147483648
  %v721 = vxor.u32 %v516, 2147483648
  %v722 = vxor.u32 %v519, 2147483648
  %v723 = vxor.u32 %v521, 2147483648
  %v724 = vxor.u32 %v524, 2147483648
  %v725 = vxor.u32 %v526, 2147483648
  %v726 = vxor.u32 %v529, 2147483648
  %v727 = vxor.u32 %v531, 2147483648
  %v728 = vmul.f32 %v664, 1.442695
  %v729 = vpow.pop %v728
  %v730 = vmul.f32 %v665, 1.442695
  %v731 = vpow.pop %v730
  %v732 = vmul.f32 %v666, 1.442695
  %v733 = vpow.pop %v732
  %v734 = vmul.f32 %v667, 1.442695
  %v735 = vpow.pop %v734
  %v736 = vmul.f32 %v668, 1.442695
  %v737 = vpow.pop %v736
  %v738 = vmul.f32 %v669, 1.442695
  %v739 = vpow.pop %v738
  %v740 = vmul.f32 %v670, 1.442695
  %v741 = vpow.pop %v740
  %v742 = vmul.f32 %v671, 1.442695
  %v743 = vpow.pop %v742
  %v744 = vmul.f32 %v672, 1.442695
  %v745 = vpow.pop %v744
  %v746 = vmul.f32 %v673, 1.442695
  %v747 = vpow.pop %v746
  %v748 = vmul.f32 %v674, 1.442695
  %v749 = vpow.pop %v748
  %v750 = vmul.f32 %v675, 1.442695
  %v751 = vpow.pop %v750
  %v752 = vmul.f32 %v676, 1.442695
  %v753 = vpow.pop %v752
  %v754 = vmul.f32 %v677, 1.442695
  %v755 = vpow.pop %v754
  %v756 = vmul.f32 %v678, 1.442695
  %v757 = vpow.pop %v756
  %v758 = vmul.f32 %v679, 1.442695
  %v759 = vpow.pop %v758
  %v760 = vmul.f32 %v680, 1.442695
  %v761 = vpow.pop %v760
  %v762 = vmul.f32 %v681, 1.442695
  %v763 = vpow.pop %v762
  %v764 = vmul.f32 %v682, 1.442695
  %v765 = vpow.pop %v764
  %v766 = vmul.f32 %v683, 1.442695
  %v767 = vpow.pop %v766
  %v768 = vmul.f32 %v684, 1.442695
  %v769 = vpow.pop %v768
  %v770 = vmul.f32 %v685, 1.442695
  %v771 = vpow.pop %v770
  %v772 = vmul.f32 %v686, 1.442695
  %v773 = vpow.pop %v772
  %v774 = vmul.f32 %v687, 1.442695
  %v775 = vpow.pop %v774
  %v776 = vmul.f32 %v688, 1.442695
  %v777 = vpow.pop %v776
  %v778 = vmul.f32 %v689, 1.442695
  %v779 = vpow.pop %v778
  %v780 = vmul.f32 %v690, 1.442695
  %v781 = vpow.pop %v780
  %v782 = vmul.f32 %v691, 1.442695
  %v783 = vpow.pop %v782
  %v784 = vmul.f32 %v692, 1.442695
  %v785 = vpow.pop %v784
  %v786 = vmul.f32 %v693, 1.442695
  %v787 = vpow.pop %v786
  %v788 = vmul.f32 %v694, 1.442695
  %v789 = vpow.pop %v788
  %v790 = vmul.f32 %v695, 1.442695
  %v791 = vpow.pop %v790
  %v792 = vmul.f32 %v696, 1.442695
  %v793 = vpow.pop %v792
  %v794 = vmul.f32 %v697, 1.442695
  %v795 = vpow.pop %v794
  %v796 = vmul.f32 %v698, 1.442695
  %v797 = vpow.pop %v796
  %v798 = vmul.f32 %v699, 1.442695
  %v799 = vpow.pop %v798
  %v800 = vmul.f32 %v700, 1.442695
  %v801 = vpow.pop %v800
  %v802 = vmul.f32 %v701, 1.442695
  %v803 = vpow.pop %v802
  %v804 = vmul.f32 %v702, 1.442695
  %v805 = vpow.pop %v804
  %v806 = vmul.f32 %v703, 1.442695
  %v807 = vpow.pop %v806
  %v808 = vmul.f32 %v704, 1.442695
  %v809 = vpow.pop %v808
  %v810 = vmul.f32 %v705, 1.442695
  %v811 = vpow.pop %v810
  %v812 = vmul.f32 %v706, 1.442695
  %v813 = vpow.pop %v812
  %v814 = vmul.f32 %v707, 1.442695
  %v815 = vpow.pop %v814
  %v816 = vmul.f32 %v708, 1.442695
  %v817 = vpow.pop %v816
  %v818 = vmul.f32 %v709, 1.442695
  %v819 = vpow.pop %v818
  %v820 = vmul.f32 %v710, 1.442695
  %v821 = vpow.pop %v820
  %v822 = vmul.f32 %v711, 1.442695
  %v823 = vpow.pop %v822
  %v824 = vmul.f32 %v712, 1.442695
  %v825 = vpow.pop %v824
  %v826 = vmul.f32 %v713, 1.442695
  %v827 = vpow.pop %v826
  %v828 = vmul.f32 %v714, 1.442695
  %v829 = vpow.pop %v828
  %v830 = vmul.f32 %v715, 1.442695
  %v831 = vpow.pop %v830
  %v832 = vmul.f32 %v716, 1.442695
  %v833 = vpow.pop %v832
  %v834 = vmul.f32 %v717, 1.442695
  %v835 = vpow.pop %v834
  %v836 = vmul.f32 %v718, 1.442695
  %v837 = vpow.pop %v836
  %v838 = vmul.f32 %v719, 1.442695
  %v839 = vpow.pop %v838
  %v840 = vmul.f32 %v720, 1.442695
  %v841 = vpow.pop %v840
  %v842 = vmul.f32 %v721, 1.442695
  %v843 = vpow.pop %v842
  %v844 = vmul.f32 %v722, 1.442695
  %v845 = vpow.pop %v844
  %v846 = vmul.f32 %v723, 1.442695
  %v847 = vpow.pop %v846
  %v848 = vmul.f32 %v724, 1.442695
  %v849 = vpow.pop %v848
  %v850 = vmul.f32 %v725, 1.442695
  %v851 = vpow.pop %v850
  %v852 = vmul.f32 %v726, 1.442695
  %v853 = vpow.pop %v852
  %v854 = vmul.f32 %v727, 1.442695
  %v855 = vpow.pop %v854
  %v856 = vadd.f32 %v729, 1.0
  %v857 = vadd.f32 %v731, 1.0
  %v858 = vadd.f32 %v733, 1.0
  %v859 = vadd.f32 %v735, 1.0
  %v860 = vadd.f32 %v737, 1.0
  %v861 = vadd.f32 %v739, 1.0
  %v862 = vadd.f32 %v741, 1.0
  %v863 = vadd.f32 %v743, 1.0
  %v864 = vadd.f32 %v745, 1.0
  %v865 = vadd.f32 %v747, 1.0
  %v866 = vadd.f32 %v749, 1.0
  %v867 = vadd.f32 %v751, 1.0
  %v868 = vadd.f32 %v753, 1.0
  %v869 = vadd.f32 %v755, 1.0
  %v870 = vadd.f32 %v757, 1.0
  %v871 = vadd.f32 %v759, 1.0
  %v872 = vadd.f32 %v761, 1.0
  %v873 = vadd.f32 %v763, 1.0
  %v874 = vadd.f32 %v765, 1.0
  %v875 = vadd.f32 %v767, 1.0
  %v876 = vadd.f32 %v769, 1.0
  %v877 = vadd.f32 %v771, 1.0
  %v878 = vadd.f32 %v773, 1.0
  %v879 = vadd.f32 %v775, 1.0
  %v880 = vadd.f32 %v777, 1.0
  %v881 = vadd.f32 %v779, 1.0
  %v882 = vadd.f32 %v781, 1.0
  %v883 = vadd.f32 %v783, 1.0
  %v884 = vadd.f32 %v785, 1.0
  %v885 = vadd.f32 %v787, 1.0
  %v886 = vadd.f32 %v789, 1.0
  %v887 = vadd.f32 %v791, 1.0
  %v888 = vadd.f32 %v793, 1.0
  %v889 = vadd.f32 %v795, 1.0
  %v890 = vadd.f32 %v797, 1.0
  %v891 = vadd.f32 %v799, 1.0
  %v892 = vadd.f32 %v801, 1.0
  %v893 = vadd.f32 %v803, 1.0
  %v894 = vadd.f32 %v805, 1.0
  %v895 = vadd.f32 %v807, 1.0
  %v896 = vadd.f32 %v809, 1.0
  %v897 = vadd.f32 %v811, 1.0
  %v898 = vadd.f32 %v813, 1.0
  %v899 = vadd.f32 %v815, 1.0
  %v900 = vadd.f32 %v817, 1.0
  %v901 = vadd.f32 %v819, 1.0
  %v902 = vadd.f32 %v821, 1.0
  %v903 = vadd.f32 %v823, 1.0
  %v904 = vadd.f32 %v825, 1.0
  %v905 = vadd.f32 %v827, 1.0
  %v906 = vadd.f32 %v829, 1.0
  %v907 = vadd.f32 %v831, 1.0
  %v908 = vadd.f32 %v833, 1.0
  %v909 = vadd.f32 %v835, 1.0
  %v910 = vadd.f32 %v837, 1.0
  %v911 = vadd.f32 %v839, 1.0
  %v912 = vadd.f32 %v841, 1.0
  %v913 = vadd.f32 %v843, 1.0
  %v914 = vadd.f32 %v845, 1.0
  %v915 = vadd.f32 %v847, 1.0
  %v916 = vadd.f32 %v849, 1.0
  %v917 = vadd.f32 %v851, 1.0
  %v918 = vadd.f32 %v853, 1.0
  %v919 = vadd.f32 %v855, 1.0
  %v920 = vrcp.pop %v856
  %v921 = vmul.f32 %v856, %v920
  %v922 = vsub.f32 1.0, %v921
  %v923 = vmul.f32 %v920, %v922
  %v924 = vadd.f32 %v920, %v923
  %vm925 = vweird.f32 %v856
  %vm926 = vweird.f32 %v920
  %vm927 = vmor %vm925, %vm926
  %v928 = vsel %vm927, %v920, %v924
  %v929 = vand.u32 2147483647, %v856
  %vm930 = vcmp.eq.f32.partialorder %v929, 8.507059e+37
  %v931 = vand.u32 %v856, 2147483648
  %v932 = vor.u32 1.1754944e-38, %v931
  %v933 = vsel %vm930, %v932, %v928
  %v934 = vmul.f32 1.0, %v933
  %v935 = vrcp.pop %v857
  %v936 = vmul.f32 %v857, %v935
  %v937 = vsub.f32 1.0, %v936
  %v938 = vmul.f32 %v935, %v937
  %v939 = vadd.f32 %v935, %v938
  %vm940 = vweird.f32 %v857
  %vm941 = vweird.f32 %v935
  %vm942 = vmor %vm940, %vm941
  %v943 = vsel %vm942, %v935, %v939
  %v944 = vand.u32 2147483647, %v857
  %vm945 = vcmp.eq.f32.partialorder %v944, 8.507059e+37
  %v946 = vand.u32 %v857, 2147483648
  %v947 = vor.u32 1.1754944e-38, %v946
  %v948 = vsel %vm945, %v947, %v943
  %v949 = vmul.f32 1.0, %v948
  %v950 = vrcp.pop %v858
  %v951 = vmul.f32 %v858, %v950
  %v952 = vsub.f32 1.0, %v951
  %v953 = vmul.f32 %v950, %v952
  %v954 = vadd.f32 %v950, %v953
  %vm955 = vweird.f32 %v858
  %vm956 = vweird.f32 %v950
  %vm957 = vmor %vm955, %vm956
  %v958 = vsel %vm957, %v950, %v954
  %v959 = vand.u32 2147483647, %v858
  %vm960 = vcmp.eq.f32.partialorder %v959, 8.507059e+37
  %v961 = vand.u32 %v858, 2147483648
  %v962 = vor.u32 1.1754944e-38, %v961
  %v963 = vsel %vm960, %v962, %v958
  %v964 = vmul.f32 1.0, %v963
  %v965 = vrcp.pop %v859
  %v966 = vmul.f32 %v859, %v965
  %v967 = vsub.f32 1.0, %v966
  %v968 = vmul.f32 %v965, %v967
  %v969 = vadd.f32 %v965, %v968
  %vm970 = vweird.f32 %v859
  %vm971 = vweird.f32 %v965
  %vm972 = vmor %vm970, %vm971
  %v973 = vsel %vm972, %v965, %v969
  %v974 = vand.u32 2147483647, %v859
  %vm975 = vcmp.eq.f32.partialorder %v974, 8.507059e+37
  %v976 = vand.u32 %v859, 2147483648
  %v977 = vor.u32 1.1754944e-38, %v976
  %v978 = vsel %vm975, %v977, %v973
  %v979 = vmul.f32 1.0, %v978
  %v980 = vrcp.pop %v860
  %v981 = vmul.f32 %v860, %v980
  %v982 = vsub.f32 1.0, %v981
  %v983 = vmul.f32 %v980, %v982
  %v984 = vadd.f32 %v980, %v983
  %vm985 = vweird.f32 %v860
  %vm986 = vweird.f32 %v980
  %vm987 = vmor %vm985, %vm986
  %v988 = vsel %vm987, %v980, %v984
  %v989 = vand.u32 2147483647, %v860
  %vm990 = vcmp.eq.f32.partialorder %v989, 8.507059e+37
  %v991 = vand.u32 %v860, 2147483648
  %v992 = vor.u32 1.1754944e-38, %v991
  %v993 = vsel %vm990, %v992, %v988
  %v994 = vmul.f32 1.0, %v993
  %v995 = vrcp.pop %v861
  %v996 = vmul.f32 %v861, %v995
  %v997 = vsub.f32 1.0, %v996
  %v998 = vmul.f32 %v995, %v997
  %v999 = vadd.f32 %v995, %v998
  %vm1000 = vweird.f32 %v861
  %vm1001 = vweird.f32 %v995
  %vm1002 = vmor %vm1000, %vm1001
  %v1003 = vsel %vm1002, %v995, %v999
  %v1004 = vand.u32 2147483647, %v861
  %vm1005 = vcmp.eq.f32.partialorder %v1004, 8.507059e+37
  %v1006 = vand.u32 %v861, 2147483648
  %v1007 = vor.u32 1.1754944e-38, %v1006
  %v1008 = vsel %vm1005, %v1007, %v1003
  %v1009 = vmul.f32 1.0, %v1008
  %v1010 = vrcp.pop %v862
  %v1011 = vmul.f32 %v862, %v1010
  %v1012 = vsub.f32 1.0, %v1011
  %v1013 = vmul.f32 %v1010, %v1012
  %v1014 = vadd.f32 %v1010, %v1013
  %vm1015 = vweird.f32 %v862
  %vm1016 = vweird.f32 %v1010
  %vm1017 = vmor %vm1015, %vm1016
  %v1018 = vsel %vm1017, %v1010, %v1014
  %v1019 = vand.u32 2147483647, %v862
  %vm1020 = vcmp.eq.f32.partialorder %v1019, 8.507059e+37
  %v1021 = vand.u32 %v862, 2147483648
  %v1022 = vor.u32 1.1754944e-38, %v1021
  %v1023 = vsel %vm1020, %v1022, %v1018
  %v1024 = vmul.f32 1.0, %v1023
  %v1025 = vrcp.pop %v863
  %v1026 = vmul.f32 %v863, %v1025
  %v1027 = vsub.f32 1.0, %v1026
  %v1028 = vmul.f32 %v1025, %v1027
  %v1029 = vadd.f32 %v1025, %v1028
  %vm1030 = vweird.f32 %v863
  %vm1031 = vweird.f32 %v1025
  %vm1032 = vmor %vm1030, %vm1031
  %v1033 = vsel %vm1032, %v1025, %v1029
  %v1034 = vand.u32 2147483647, %v863
  %vm1035 = vcmp.eq.f32.partialorder %v1034, 8.507059e+37
  %v1036 = vand.u32 %v863, 2147483648
  %v1037 = vor.u32 1.1754944e-38, %v1036
  %v1038 = vsel %vm1035, %v1037, %v1033
  %v1039 = vmul.f32 1.0, %v1038
  %v1040 = vrcp.pop %v864
  %v1041 = vmul.f32 %v864, %v1040
  %v1042 = vsub.f32 1.0, %v1041
  %v1043 = vmul.f32 %v1040, %v1042
  %v1044 = vadd.f32 %v1040, %v1043
  %vm1045 = vweird.f32 %v864
  %vm1046 = vweird.f32 %v1040
  %vm1047 = vmor %vm1045, %vm1046
  %v1048 = vsel %vm1047, %v1040, %v1044
  %v1049 = vand.u32 2147483647, %v864
  %vm1050 = vcmp.eq.f32.partialorder %v1049, 8.507059e+37
  %v1051 = vand.u32 %v864, 2147483648
  %v1052 = vor.u32 1.1754944e-38, %v1051
  %v1053 = vsel %vm1050, %v1052, %v1048
  %v1054 = vmul.f32 1.0, %v1053
  %v1055 = vrcp.pop %v865
  %v1056 = vmul.f32 %v865, %v1055
  %v1057 = vsub.f32 1.0, %v1056
  %v1058 = vmul.f32 %v1055, %v1057
  %v1059 = vadd.f32 %v1055, %v1058
  %vm1060 = vweird.f32 %v865
  %vm1061 = vweird.f32 %v1055
  %vm1062 = vmor %vm1060, %vm1061
  %v1063 = vsel %vm1062, %v1055, %v1059
  %v1064 = vand.u32 2147483647, %v865
  %vm1065 = vcmp.eq.f32.partialorder %v1064, 8.507059e+37
  %v1066 = vand.u32 %v865, 2147483648
  %v1067 = vor.u32 1.1754944e-38, %v1066
  %v1068 = vsel %vm1065, %v1067, %v1063
  %v1069 = vmul.f32 1.0, %v1068
  %v1070 = vrcp.pop %v866
  %v1071 = vmul.f32 %v866, %v1070
  %v1072 = vsub.f32 1.0, %v1071
  %v1073 = vmul.f32 %v1070, %v1072
  %v1074 = vadd.f32 %v1070, %v1073
  %vm1075 = vweird.f32 %v866
  %vm1076 = vweird.f32 %v1070
  %vm1077 = vmor %vm1075, %vm1076
  %v1078 = vsel %vm1077, %v1070, %v1074
  %v1079 = vand.u32 2147483647, %v866
  %vm1080 = vcmp.eq.f32.partialorder %v1079, 8.507059e+37
  %v1081 = vand.u32 %v866, 2147483648
  %v1082 = vor.u32 1.1754944e-38, %v1081
  %v1083 = vsel %vm1080, %v1082, %v1078
  %v1084 = vmul.f32 1.0, %v1083
  %v1085 = vrcp.pop %v867
  %v1086 = vmul.f32 %v867, %v1085
  %v1087 = vsub.f32 1.0, %v1086
  %v1088 = vmul.f32 %v1085, %v1087
  %v1089 = vadd.f32 %v1085, %v1088
  %vm1090 = vweird.f32 %v867
  %vm1091 = vweird.f32 %v1085
  %vm1092 = vmor %vm1090, %vm1091
  %v1093 = vsel %vm1092, %v1085, %v1089
  %v1094 = vand.u32 2147483647, %v867
  %vm1095 = vcmp.eq.f32.partialorder %v1094, 8.507059e+37
  %v1096 = vand.u32 %v867, 2147483648
  %v1097 = vor.u32 1.1754944e-38, %v1096
  %v1098 = vsel %vm1095, %v1097, %v1093
  %v1099 = vmul.f32 1.0, %v1098
  %v1100 = vrcp.pop %v868
  %v1101 = vmul.f32 %v868, %v1100
  %v1102 = vsub.f32 1.0, %v1101
  %v1103 = vmul.f32 %v1100, %v1102
  %v1104 = vadd.f32 %v1100, %v1103
  %vm1105 = vweird.f32 %v868
  %vm1106 = vweird.f32 %v1100
  %vm1107 = vmor %vm1105, %vm1106
  %v1108 = vsel %vm1107, %v1100, %v1104
  %v1109 = vand.u32 2147483647, %v868
  %vm1110 = vcmp.eq.f32.partialorder %v1109, 8.507059e+37
  %v1111 = vand.u32 %v868, 2147483648
  %v1112 = vor.u32 1.1754944e-38, %v1111
  %v1113 = vsel %vm1110, %v1112, %v1108
  %v1114 = vmul.f32 1.0, %v1113
  %v1115 = vrcp.pop %v869
  %v1116 = vmul.f32 %v869, %v1115
  %v1117 = vsub.f32 1.0, %v1116
  %v1118 = vmul.f32 %v1115, %v1117
  %v1119 = vadd.f32 %v1115, %v1118
  %vm1120 = vweird.f32 %v869
  %vm1121 = vweird.f32 %v1115
  %vm1122 = vmor %vm1120, %vm1121
  %v1123 = vsel %vm1122, %v1115, %v1119
  %v1124 = vand.u32 2147483647, %v869
  %vm1125 = vcmp.eq.f32.partialorder %v1124, 8.507059e+37
  %v1126 = vand.u32 %v869, 2147483648
  %v1127 = vor.u32 1.1754944e-38, %v1126
  %v1128 = vsel %vm1125, %v1127, %v1123
  %v1129 = vmul.f32 1.0, %v1128
  %v1130 = vrcp.pop %v870
  %v1131 = vmul.f32 %v870, %v1130
  %v1132 = vsub.f32 1.0, %v1131
  %v1133 = vmul.f32 %v1130, %v1132
  %v1134 = vadd.f32 %v1130, %v1133
  %vm1135 = vweird.f32 %v870
  %vm1136 = vweird.f32 %v1130
  %vm1137 = vmor %vm1135, %vm1136
  %v1138 = vsel %vm1137, %v1130, %v1134
  %v1139 = vand.u32 2147483647, %v870
  %vm1140 = vcmp.eq.f32.partialorder %v1139, 8.507059e+37
  %v1141 = vand.u32 %v870, 2147483648
  %v1142 = vor.u32 1.1754944e-38, %v1141
  %v1143 = vsel %vm1140, %v1142, %v1138
  %v1144 = vmul.f32 1.0, %v1143
  %v1145 = vrcp.pop %v871
  %v1146 = vmul.f32 %v871, %v1145
  %v1147 = vsub.f32 1.0, %v1146
  %v1148 = vmul.f32 %v1145, %v1147
  %v1149 = vadd.f32 %v1145, %v1148
  %vm1150 = vweird.f32 %v871
  %vm1151 = vweird.f32 %v1145
  %vm1152 = vmor %vm1150, %vm1151
  %v1153 = vsel %vm1152, %v1145, %v1149
  %v1154 = vand.u32 2147483647, %v871
  %vm1155 = vcmp.eq.f32.partialorder %v1154, 8.507059e+37
  %v1156 = vand.u32 %v871, 2147483648
  %v1157 = vor.u32 1.1754944e-38, %v1156
  %v1158 = vsel %vm1155, %v1157, %v1153
  %v1159 = vmul.f32 1.0, %v1158
  %v1160 = vrcp.pop %v872
  %v1161 = vmul.f32 %v872, %v1160
  %v1162 = vsub.f32 1.0, %v1161
  %v1163 = vmul.f32 %v1160, %v1162
  %v1164 = vadd.f32 %v1160, %v1163
  %vm1165 = vweird.f32 %v872
  %vm1166 = vweird.f32 %v1160
  %vm1167 = vmor %vm1165, %vm1166
  %v1168 = vsel %vm1167, %v1160, %v1164
  %v1169 = vand.u32 2147483647, %v872
  %vm1170 = vcmp.eq.f32.partialorder %v1169, 8.507059e+37
  %v1171 = vand.u32 %v872, 2147483648
  %v1172 = vor.u32 1.1754944e-38, %v1171
  %v1173 = vsel %vm1170, %v1172, %v1168
  %v1174 = vmul.f32 1.0, %v1173
  %v1175 = vrcp.pop %v873
  %v1176 = vmul.f32 %v873, %v1175
  %v1177 = vsub.f32 1.0, %v1176
  %v1178 = vmul.f32 %v1175, %v1177
  %v1179 = vadd.f32 %v1175, %v1178
  %vm1180 = vweird.f32 %v873
  %vm1181 = vweird.f32 %v1175
  %vm1182 = vmor %vm1180, %vm1181
  %v1183 = vsel %vm1182, %v1175, %v1179
  %v1184 = vand.u32 2147483647, %v873
  %vm1185 = vcmp.eq.f32.partialorder %v1184, 8.507059e+37
  %v1186 = vand.u32 %v873, 2147483648
  %v1187 = vor.u32 1.1754944e-38, %v1186
  %v1188 = vsel %vm1185, %v1187, %v1183
  %v1189 = vmul.f32 1.0, %v1188
  %v1190 = vrcp.pop %v874
  %v1191 = vmul.f32 %v874, %v1190
  %v1192 = vsub.f32 1.0, %v1191
  %v1193 = vmul.f32 %v1190, %v1192
  %v1194 = vadd.f32 %v1190, %v1193
  %vm1195 = vweird.f32 %v874
  %vm1196 = vweird.f32 %v1190
  %vm1197 = vmor %vm1195, %vm1196
  %v1198 = vsel %vm1197, %v1190, %v1194
  %v1199 = vand.u32 2147483647, %v874
  %vm1200 = vcmp.eq.f32.partialorder %v1199, 8.507059e+37
  %v1201 = vand.u32 %v874, 2147483648
  %v1202 = vor.u32 1.1754944e-38, %v1201
  %v1203 = vsel %vm1200, %v1202, %v1198
  %v1204 = vmul.f32 1.0, %v1203
  %v1205 = vrcp.pop %v875
  %v1206 = vmul.f32 %v875, %v1205
  %v1207 = vsub.f32 1.0, %v1206
  %v1208 = vmul.f32 %v1205, %v1207
  %v1209 = vadd.f32 %v1205, %v1208
  %vm1210 = vweird.f32 %v875
  %vm1211 = vweird.f32 %v1205
  %vm1212 = vmor %vm1210, %vm1211
  %v1213 = vsel %vm1212, %v1205, %v1209
  %v1214 = vand.u32 2147483647, %v875
  %vm1215 = vcmp.eq.f32.partialorder %v1214, 8.507059e+37
  %v1216 = vand.u32 %v875, 2147483648
  %v1217 = vor.u32 1.1754944e-38, %v1216
  %v1218 = vsel %vm1215, %v1217, %v1213
  %v1219 = vmul.f32 1.0, %v1218
  %v1220 = vrcp.pop %v876
  %v1221 = vmul.f32 %v876, %v1220
  %v1222 = vsub.f32 1.0, %v1221
  %v1223 = vmul.f32 %v1220, %v1222
  %v1224 = vadd.f32 %v1220, %v1223
  %vm1225 = vweird.f32 %v876
  %vm1226 = vweird.f32 %v1220
  %vm1227 = vmor %vm1225, %vm1226
  %v1228 = vsel %vm1227, %v1220, %v1224
  %v1229 = vand.u32 2147483647, %v876
  %vm1230 = vcmp.eq.f32.partialorder %v1229, 8.507059e+37
  %v1231 = vand.u32 %v876, 2147483648
  %v1232 = vor.u32 1.1754944e-38, %v1231
  %v1233 = vsel %vm1230, %v1232, %v1228
  %v1234 = vmul.f32 1.0, %v1233
  %v1235 = vrcp.pop %v877
  %v1236 = vmul.f32 %v877, %v1235
  %v1237 = vsub.f32 1.0, %v1236
  %v1238 = vmul.f32 %v1235, %v1237
  %v1239 = vadd.f32 %v1235, %v1238
  %vm1240 = vweird.f32 %v877
  %vm1241 = vweird.f32 %v1235
  %vm1242 = vmor %vm1240, %vm1241
  %v1243 = vsel %vm1242, %v1235, %v1239
  %v1244 = vand.u32 2147483647, %v877
  %vm1245 = vcmp.eq.f32.partialorder %v1244, 8.507059e+37
  %v1246 = vand.u32 %v877, 2147483648
  %v1247 = vor.u32 1.1754944e-38, %v1246
  %v1248 = vsel %vm1245, %v1247, %v1243
  %v1249 = vmul.f32 1.0, %v1248
  %v1250 = vrcp.pop %v878
  %v1251 = vmul.f32 %v878, %v1250
  %v1252 = vsub.f32 1.0, %v1251
  %v1253 = vmul.f32 %v1250, %v1252
  %v1254 = vadd.f32 %v1250, %v1253
  %vm1255 = vweird.f32 %v878
  %vm1256 = vweird.f32 %v1250
  %vm1257 = vmor %vm1255, %vm1256
  %v1258 = vsel %vm1257, %v1250, %v1254
  %v1259 = vand.u32 2147483647, %v878
  %vm1260 = vcmp.eq.f32.partialorder %v1259, 8.507059e+37
  %v1261 = vand.u32 %v878, 2147483648
  %v1262 = vor.u32 1.1754944e-38, %v1261
  %v1263 = vsel %vm1260, %v1262, %v1258
  %v1264 = vmul.f32 1.0, %v1263
  %v1265 = vrcp.pop %v879
  %v1266 = vmul.f32 %v879, %v1265
  %v1267 = vsub.f32 1.0, %v1266
  %v1268 = vmul.f32 %v1265, %v1267
  %v1269 = vadd.f32 %v1265, %v1268
  %vm1270 = vweird.f32 %v879
  %vm1271 = vweird.f32 %v1265
  %vm1272 = vmor %vm1270, %vm1271
  %v1273 = vsel %vm1272, %v1265, %v1269
  %v1274 = vand.u32 2147483647, %v879
  %vm1275 = vcmp.eq.f32.partialorder %v1274, 8.507059e+37
  %v1276 = vand.u32 %v879, 2147483648
  %v1277 = vor.u32 1.1754944e-38, %v1276
  %v1278 = vsel %vm1275, %v1277, %v1273
  %v1279 = vmul.f32 1.0, %v1278
  %v1280 = vrcp.pop %v880
  %v1281 = vmul.f32 %v880, %v1280
  %v1282 = vsub.f32 1.0, %v1281
  %v1283 = vmul.f32 %v1280, %v1282
  %v1284 = vadd.f32 %v1280, %v1283
  %vm1285 = vweird.f32 %v880
  %vm1286 = vweird.f32 %v1280
  %vm1287 = vmor %vm1285, %vm1286
  %v1288 = vsel %vm1287, %v1280, %v1284
  %v1289 = vand.u32 2147483647, %v880
  %vm1290 = vcmp.eq.f32.partialorder %v1289, 8.507059e+37
  %v1291 = vand.u32 %v880, 2147483648
  %v1292 = vor.u32 1.1754944e-38, %v1291
  %v1293 = vsel %vm1290, %v1292, %v1288
  %v1294 = vmul.f32 1.0, %v1293
  %v1295 = vrcp.pop %v881
  %v1296 = vmul.f32 %v881, %v1295
  %v1297 = vsub.f32 1.0, %v1296
  %v1298 = vmul.f32 %v1295, %v1297
  %v1299 = vadd.f32 %v1295, %v1298
  %vm1300 = vweird.f32 %v881
  %vm1301 = vweird.f32 %v1295
  %vm1302 = vmor %vm1300, %vm1301
  %v1303 = vsel %vm1302, %v1295, %v1299
  %v1304 = vand.u32 2147483647, %v881
  %vm1305 = vcmp.eq.f32.partialorder %v1304, 8.507059e+37
  %v1306 = vand.u32 %v881, 2147483648
  %v1307 = vor.u32 1.1754944e-38, %v1306
  %v1308 = vsel %vm1305, %v1307, %v1303
  %v1309 = vmul.f32 1.0, %v1308
  %v1310 = vrcp.pop %v882
  %v1311 = vmul.f32 %v882, %v1310
  %v1312 = vsub.f32 1.0, %v1311
  %v1313 = vmul.f32 %v1310, %v1312
  %v1314 = vadd.f32 %v1310, %v1313
  %vm1315 = vweird.f32 %v882
  %vm1316 = vweird.f32 %v1310
  %vm1317 = vmor %vm1315, %vm1316
  %v1318 = vsel %vm1317, %v1310, %v1314
  %v1319 = vand.u32 2147483647, %v882
  %vm1320 = vcmp.eq.f32.partialorder %v1319, 8.507059e+37
  %v1321 = vand.u32 %v882, 2147483648
  %v1322 = vor.u32 1.1754944e-38, %v1321
  %v1323 = vsel %vm1320, %v1322, %v1318
  %v1324 = vmul.f32 1.0, %v1323
  %v1325 = vrcp.pop %v883
  %v1326 = vmul.f32 %v883, %v1325
  %v1327 = vsub.f32 1.0, %v1326
  %v1328 = vmul.f32 %v1325, %v1327
  %v1329 = vadd.f32 %v1325, %v1328
  %vm1330 = vweird.f32 %v883
  %vm1331 = vweird.f32 %v1325
  %vm1332 = vmor %vm1330, %vm1331
  %v1333 = vsel %vm1332, %v1325, %v1329
  %v1334 = vand.u32 2147483647, %v883
  %vm1335 = vcmp.eq.f32.partialorder %v1334, 8.507059e+37
  %v1336 = vand.u32 %v883, 2147483648
  %v1337 = vor.u32 1.1754944e-38, %v1336
  %v1338 = vsel %vm1335, %v1337, %v1333
  %v1339 = vmul.f32 1.0, %v1338
  %v1340 = vrcp.pop %v884
  %v1341 = vmul.f32 %v884, %v1340
  %v1342 = vsub.f32 1.0, %v1341
  %v1343 = vmul.f32 %v1340, %v1342
  %v1344 = vadd.f32 %v1340, %v1343
  %vm1345 = vweird.f32 %v884
  %vm1346 = vweird.f32 %v1340
  %vm1347 = vmor %vm1345, %vm1346
  %v1348 = vsel %vm1347, %v1340, %v1344
  %v1349 = vand.u32 2147483647, %v884
  %vm1350 = vcmp.eq.f32.partialorder %v1349, 8.507059e+37
  %v1351 = vand.u32 %v884, 2147483648
  %v1352 = vor.u32 1.1754944e-38, %v1351
  %v1353 = vsel %vm1350, %v1352, %v1348
  %v1354 = vmul.f32 1.0, %v1353
  %v1355 = vrcp.pop %v885
  %v1356 = vmul.f32 %v885, %v1355
  %v1357 = vsub.f32 1.0, %v1356
  %v1358 = vmul.f32 %v1355, %v1357
  %v1359 = vadd.f32 %v1355, %v1358
  %vm1360 = vweird.f32 %v885
  %vm1361 = vweird.f32 %v1355
  %vm1362 = vmor %vm1360, %vm1361
  %v1363 = vsel %vm1362, %v1355, %v1359
  %v1364 = vand.u32 2147483647, %v885
  %vm1365 = vcmp.eq.f32.partialorder %v1364, 8.507059e+37
  %v1366 = vand.u32 %v885, 2147483648
  %v1367 = vor.u32 1.1754944e-38, %v1366
  %v1368 = vsel %vm1365, %v1367, %v1363
  %v1369 = vmul.f32 1.0, %v1368
  %v1370 = vrcp.pop %v886
  %v1371 = vmul.f32 %v886, %v1370
  %v1372 = vsub.f32 1.0, %v1371
  %v1373 = vmul.f32 %v1370, %v1372
  %v1374 = vadd.f32 %v1370, %v1373
  %vm1375 = vweird.f32 %v886
  %vm1376 = vweird.f32 %v1370
  %vm1377 = vmor %vm1375, %vm1376
  %v1378 = vsel %vm1377, %v1370, %v1374
  %v1379 = vand.u32 2147483647, %v886
  %vm1380 = vcmp.eq.f32.partialorder %v1379, 8.507059e+37
  %v1381 = vand.u32 %v886, 2147483648
  %v1382 = vor.u32 1.1754944e-38, %v1381
  %v1383 = vsel %vm1380, %v1382, %v1378
  %v1384 = vmul.f32 1.0, %v1383
  %v1385 = vrcp.pop %v887
  %v1386 = vmul.f32 %v887, %v1385
  %v1387 = vsub.f32 1.0, %v1386
  %v1388 = vmul.f32 %v1385, %v1387
  %v1389 = vadd.f32 %v1385, %v1388
  %vm1390 = vweird.f32 %v887
  %vm1391 = vweird.f32 %v1385
  %vm1392 = vmor %vm1390, %vm1391
  %v1393 = vsel %vm1392, %v1385, %v1389
  %v1394 = vand.u32 2147483647, %v887
  %vm1395 = vcmp.eq.f32.partialorder %v1394, 8.507059e+37
  %v1396 = vand.u32 %v887, 2147483648
  %v1397 = vor.u32 1.1754944e-38, %v1396
  %v1398 = vsel %vm1395, %v1397, %v1393
  %v1399 = vmul.f32 1.0, %v1398
  %v1400 = vrcp.pop %v888
  %v1401 = vmul.f32 %v888, %v1400
  %v1402 = vsub.f32 1.0, %v1401
  %v1403 = vmul.f32 %v1400, %v1402
  %v1404 = vadd.f32 %v1400, %v1403
  %vm1405 = vweird.f32 %v888
  %vm1406 = vweird.f32 %v1400
  %vm1407 = vmor %vm1405, %vm1406
  %v1408 = vsel %vm1407, %v1400, %v1404
  %v1409 = vand.u32 2147483647, %v888
  %vm1410 = vcmp.eq.f32.partialorder %v1409, 8.507059e+37
  %v1411 = vand.u32 %v888, 2147483648
  %v1412 = vor.u32 1.1754944e-38, %v1411
  %v1413 = vsel %vm1410, %v1412, %v1408
  %v1414 = vmul.f32 1.0, %v1413
  %v1415 = vrcp.pop %v889
  %v1416 = vmul.f32 %v889, %v1415
  %v1417 = vsub.f32 1.0, %v1416
  %v1418 = vmul.f32 %v1415, %v1417
  %v1419 = vadd.f32 %v1415, %v1418
  %vm1420 = vweird.f32 %v889
  %vm1421 = vweird.f32 %v1415
  %vm1422 = vmor %vm1420, %vm1421
  %v1423 = vsel %vm1422, %v1415, %v1419
  %v1424 = vand.u32 2147483647, %v889
  %vm1425 = vcmp.eq.f32.partialorder %v1424, 8.507059e+37
  %v1426 = vand.u32 %v889, 2147483648
  %v1427 = vor.u32 1.1754944e-38, %v1426
  %v1428 = vsel %vm1425, %v1427, %v1423
  %v1429 = vmul.f32 1.0, %v1428
  %v1430 = vrcp.pop %v890
  %v1431 = vmul.f32 %v890, %v1430
  %v1432 = vsub.f32 1.0, %v1431
  %v1433 = vmul.f32 %v1430, %v1432
  %v1434 = vadd.f32 %v1430, %v1433
  %vm1435 = vweird.f32 %v890
  %vm1436 = vweird.f32 %v1430
  %vm1437 = vmor %vm1435, %vm1436
  %v1438 = vsel %vm1437, %v1430, %v1434
  %v1439 = vand.u32 2147483647, %v890
  %vm1440 = vcmp.eq.f32.partialorder %v1439, 8.507059e+37
  %v1441 = vand.u32 %v890, 2147483648
  %v1442 = vor.u32 1.1754944e-38, %v1441
  %v1443 = vsel %vm1440, %v1442, %v1438
  %v1444 = vmul.f32 1.0, %v1443
  %v1445 = vrcp.pop %v891
  %v1446 = vmul.f32 %v891, %v1445
  %v1447 = vsub.f32 1.0, %v1446
  %v1448 = vmul.f32 %v1445, %v1447
  %v1449 = vadd.f32 %v1445, %v1448
  %vm1450 = vweird.f32 %v891
  %vm1451 = vweird.f32 %v1445
  %vm1452 = vmor %vm1450, %vm1451
  %v1453 = vsel %vm1452, %v1445, %v1449
  %v1454 = vand.u32 2147483647, %v891
  %vm1455 = vcmp.eq.f32.partialorder %v1454, 8.507059e+37
  %v1456 = vand.u32 %v891, 2147483648
  %v1457 = vor.u32 1.1754944e-38, %v1456
  %v1458 = vsel %vm1455, %v1457, %v1453
  %v1459 = vmul.f32 1.0, %v1458
  %v1460 = vrcp.pop %v892
  %v1461 = vmul.f32 %v892, %v1460
  %v1462 = vsub.f32 1.0, %v1461
  %v1463 = vmul.f32 %v1460, %v1462
  %v1464 = vadd.f32 %v1460, %v1463
  %vm1465 = vweird.f32 %v892
  %vm1466 = vweird.f32 %v1460
  %vm1467 = vmor %vm1465, %vm1466
  %v1468 = vsel %vm1467, %v1460, %v1464
  %v1469 = vand.u32 2147483647, %v892
  %vm1470 = vcmp.eq.f32.partialorder %v1469, 8.507059e+37
  %v1471 = vand.u32 %v892, 2147483648
  %v1472 = vor.u32 1.1754944e-38, %v1471
  %v1473 = vsel %vm1470, %v1472, %v1468
  %v1474 = vmul.f32 1.0, %v1473
  %v1475 = vrcp.pop %v893
  %v1476 = vmul.f32 %v893, %v1475
  %v1477 = vsub.f32 1.0, %v1476
  %v1478 = vmul.f32 %v1475, %v1477
  %v1479 = vadd.f32 %v1475, %v1478
  %vm1480 = vweird.f32 %v893
  %vm1481 = vweird.f32 %v1475
  %vm1482 = vmor %vm1480, %vm1481
  %v1483 = vsel %vm1482, %v1475, %v1479
  %v1484 = vand.u32 2147483647, %v893
  %vm1485 = vcmp.eq.f32.partialorder %v1484, 8.507059e+37
  %v1486 = vand.u32 %v893, 2147483648
  %v1487 = vor.u32 1.1754944e-38, %v1486
  %v1488 = vsel %vm1485, %v1487, %v1483
  %v1489 = vmul.f32 1.0, %v1488
  %v1490 = vrcp.pop %v894
  %v1491 = vmul.f32 %v894, %v1490
  %v1492 = vsub.f32 1.0, %v1491
  %v1493 = vmul.f32 %v1490, %v1492
  %v1494 = vadd.f32 %v1490, %v1493
  %vm1495 = vweird.f32 %v894
  %vm1496 = vweird.f32 %v1490
  %vm1497 = vmor %vm1495, %vm1496
  %v1498 = vsel %vm1497, %v1490, %v1494
  %v1499 = vand.u32 2147483647, %v894
  %vm1500 = vcmp.eq.f32.partialorder %v1499, 8.507059e+37
  %v1501 = vand.u32 %v894, 2147483648
  %v1502 = vor.u32 1.1754944e-38, %v1501
  %v1503 = vsel %vm1500, %v1502, %v1498
  %v1504 = vmul.f32 1.0, %v1503
  %v1505 = vrcp.pop %v895
  %v1506 = vmul.f32 %v895, %v1505
  %v1507 = vsub.f32 1.0, %v1506
  %v1508 = vmul.f32 %v1505, %v1507
  %v1509 = vadd.f32 %v1505, %v1508
  %vm1510 = vweird.f32 %v895
  %vm1511 = vweird.f32 %v1505
  %vm1512 = vmor %vm1510, %vm1511
  %v1513 = vsel %vm1512, %v1505, %v1509
  %v1514 = vand.u32 2147483647, %v895
  %vm1515 = vcmp.eq.f32.partialorder %v1514, 8.507059e+37
  %v1516 = vand.u32 %v895, 2147483648
  %v1517 = vor.u32 1.1754944e-38, %v1516
  %v1518 = vsel %vm1515, %v1517, %v1513
  %v1519 = vmul.f32 1.0, %v1518
  %v1520 = vrcp.pop %v896
  %v1521 = vmul.f32 %v896, %v1520
  %v1522 = vsub.f32 1.0, %v1521
  %v1523 = vmul.f32 %v1520, %v1522
  %v1524 = vadd.f32 %v1520, %v1523
  %vm1525 = vweird.f32 %v896
  %vm1526 = vweird.f32 %v1520
  %vm1527 = vmor %vm1525, %vm1526
  %v1528 = vsel %vm1527, %v1520, %v1524
  %v1529 = vand.u32 2147483647, %v896
  %vm1530 = vcmp.eq.f32.partialorder %v1529, 8.507059e+37
  %v1531 = vand.u32 %v896, 2147483648
  %v1532 = vor.u32 1.1754944e-38, %v1531
  %v1533 = vsel %vm1530, %v1532, %v1528
  %v1534 = vmul.f32 1.0, %v1533
  %v1535 = vrcp.pop %v897
  %v1536 = vmul.f32 %v897, %v1535
  %v1537 = vsub.f32 1.0, %v1536
  %v1538 = vmul.f32 %v1535, %v1537
  %v1539 = vadd.f32 %v1535, %v1538
  %vm1540 = vweird.f32 %v897
  %vm1541 = vweird.f32 %v1535
  %vm1542 = vmor %vm1540, %vm1541
  %v1543 = vsel %vm1542, %v1535, %v1539
  %v1544 = vand.u32 2147483647, %v897
  %vm1545 = vcmp.eq.f32.partialorder %v1544, 8.507059e+37
  %v1546 = vand.u32 %v897, 2147483648
  %v1547 = vor.u32 1.1754944e-38, %v1546
  %v1548 = vsel %vm1545, %v1547, %v1543
  %v1549 = vmul.f32 1.0, %v1548
  %v1550 = vrcp.pop %v898
  %v1551 = vmul.f32 %v898, %v1550
  %v1552 = vsub.f32 1.0, %v1551
  %v1553 = vmul.f32 %v1550, %v1552
  %v1554 = vadd.f32 %v1550, %v1553
  %vm1555 = vweird.f32 %v898
  %vm1556 = vweird.f32 %v1550
  %vm1557 = vmor %vm1555, %vm1556
  %v1558 = vsel %vm1557, %v1550, %v1554
  %v1559 = vand.u32 2147483647, %v898
  %vm1560 = vcmp.eq.f32.partialorder %v1559, 8.507059e+37
  %v1561 = vand.u32 %v898, 2147483648
  %v1562 = vor.u32 1.1754944e-38, %v1561
  %v1563 = vsel %vm1560, %v1562, %v1558
  %v1564 = vmul.f32 1.0, %v1563
  %v1565 = vrcp.pop %v899
  %v1566 = vmul.f32 %v899, %v1565
  %v1567 = vsub.f32 1.0, %v1566
  %v1568 = vmul.f32 %v1565, %v1567
  %v1569 = vadd.f32 %v1565, %v1568
  %vm1570 = vweird.f32 %v899
  %vm1571 = vweird.f32 %v1565
  %vm1572 = vmor %vm1570, %vm1571
  %v1573 = vsel %vm1572, %v1565, %v1569
  %v1574 = vand.u32 2147483647, %v899
  %vm1575 = vcmp.eq.f32.partialorder %v1574, 8.507059e+37
  %v1576 = vand.u32 %v899, 2147483648
  %v1577 = vor.u32 1.1754944e-38, %v1576
  %v1578 = vsel %vm1575, %v1577, %v1573
  %v1579 = vmul.f32 1.0, %v1578
  %v1580 = vrcp.pop %v900
  %v1581 = vmul.f32 %v900, %v1580
  %v1582 = vsub.f32 1.0, %v1581
  %v1583 = vmul.f32 %v1580, %v1582
  %v1584 = vadd.f32 %v1580, %v1583
  %vm1585 = vweird.f32 %v900
  %vm1586 = vweird.f32 %v1580
  %vm1587 = vmor %vm1585, %vm1586
  %v1588 = vsel %vm1587, %v1580, %v1584
  %v1589 = vand.u32 2147483647, %v900
  %vm1590 = vcmp.eq.f32.partialorder %v1589, 8.507059e+37
  %v1591 = vand.u32 %v900, 2147483648
  %v1592 = vor.u32 1.1754944e-38, %v1591
  %v1593 = vsel %vm1590, %v1592, %v1588
  %v1594 = vmul.f32 1.0, %v1593
  %v1595 = vrcp.pop %v901
  %v1596 = vmul.f32 %v901, %v1595
  %v1597 = vsub.f32 1.0, %v1596
  %v1598 = vmul.f32 %v1595, %v1597
  %v1599 = vadd.f32 %v1595, %v1598
  %vm1600 = vweird.f32 %v901
  %vm1601 = vweird.f32 %v1595
  %vm1602 = vmor %vm1600, %vm1601
  %v1603 = vsel %vm1602, %v1595, %v1599
  %v1604 = vand.u32 2147483647, %v901
  %vm1605 = vcmp.eq.f32.partialorder %v1604, 8.507059e+37
  %v1606 = vand.u32 %v901, 2147483648
  %v1607 = vor.u32 1.1754944e-38, %v1606
  %v1608 = vsel %vm1605, %v1607, %v1603
  %v1609 = vmul.f32 1.0, %v1608
  %v1610 = vrcp.pop %v902
  %v1611 = vmul.f32 %v902, %v1610
  %v1612 = vsub.f32 1.0, %v1611
  %v1613 = vmul.f32 %v1610, %v1612
  %v1614 = vadd.f32 %v1610, %v1613
  %vm1615 = vweird.f32 %v902
  %vm1616 = vweird.f32 %v1610
  %vm1617 = vmor %vm1615, %vm1616
  %v1618 = vsel %vm1617, %v1610, %v1614
  %v1619 = vand.u32 2147483647, %v902
  %vm1620 = vcmp.eq.f32.partialorder %v1619, 8.507059e+37
  %v1621 = vand.u32 %v902, 2147483648
  %v1622 = vor.u32 1.1754944e-38, %v1621
  %v1623 = vsel %vm1620, %v1622, %v1618
  %v1624 = vmul.f32 1.0, %v1623
  %v1625 = vrcp.pop %v903
  %v1626 = vmul.f32 %v903, %v1625
  %v1627 = vsub.f32 1.0, %v1626
  %v1628 = vmul.f32 %v1625, %v1627
  %v1629 = vadd.f32 %v1625, %v1628
  %vm1630 = vweird.f32 %v903
  %vm1631 = vweird.f32 %v1625
  %vm1632 = vmor %vm1630, %vm1631
  %v1633 = vsel %vm1632, %v1625, %v1629
  %v1634 = vand.u32 2147483647, %v903
  %vm1635 = vcmp.eq.f32.partialorder %v1634, 8.507059e+37
  %v1636 = vand.u32 %v903, 2147483648
  %v1637 = vor.u32 1.1754944e-38, %v1636
  %v1638 = vsel %vm1635, %v1637, %v1633
  %v1639 = vmul.f32 1.0, %v1638
  %v1640 = vrcp.pop %v904
  %v1641 = vmul.f32 %v904, %v1640
  %v1642 = vsub.f32 1.0, %v1641
  %v1643 = vmul.f32 %v1640, %v1642
  %v1644 = vadd.f32 %v1640, %v1643
  %vm1645 = vweird.f32 %v904
  %vm1646 = vweird.f32 %v1640
  %vm1647 = vmor %vm1645, %vm1646
  %v1648 = vsel %vm1647, %v1640, %v1644
  %v1649 = vand.u32 2147483647, %v904
  %vm1650 = vcmp.eq.f32.partialorder %v1649, 8.507059e+37
  %v1651 = vand.u32 %v904, 2147483648
  %v1652 = vor.u32 1.1754944e-38, %v1651
  %v1653 = vsel %vm1650, %v1652, %v1648
  %v1654 = vmul.f32 1.0, %v1653
  %v1655 = vrcp.pop %v905
  %v1656 = vmul.f32 %v905, %v1655
  %v1657 = vsub.f32 1.0, %v1656
  %v1658 = vmul.f32 %v1655, %v1657
  %v1659 = vadd.f32 %v1655, %v1658
  %vm1660 = vweird.f32 %v905
  %vm1661 = vweird.f32 %v1655
  %vm1662 = vmor %vm1660, %vm1661
  %v1663 = vsel %vm1662, %v1655, %v1659
  %v1664 = vand.u32 2147483647, %v905
  %vm1665 = vcmp.eq.f32.partialorder %v1664, 8.507059e+37
  %v1666 = vand.u32 %v905, 2147483648
  %v1667 = vor.u32 1.1754944e-38, %v1666
  %v1668 = vsel %vm1665, %v1667, %v1663
  %v1669 = vmul.f32 1.0, %v1668
  %v1670 = vrcp.pop %v906
  %v1671 = vmul.f32 %v906, %v1670
  %v1672 = vsub.f32 1.0, %v1671
  %v1673 = vmul.f32 %v1670, %v1672
  %v1674 = vadd.f32 %v1670, %v1673
  %vm1675 = vweird.f32 %v906
  %vm1676 = vweird.f32 %v1670
  %vm1677 = vmor %vm1675, %vm1676
  %v1678 = vsel %vm1677, %v1670, %v1674
  %v1679 = vand.u32 2147483647, %v906
  %vm1680 = vcmp.eq.f32.partialorder %v1679, 8.507059e+37
  %v1681 = vand.u32 %v906, 2147483648
  %v1682 = vor.u32 1.1754944e-38, %v1681
  %v1683 = vsel %vm1680, %v1682, %v1678
  %v1684 = vmul.f32 1.0, %v1683
  %v1685 = vrcp.pop %v907
  %v1686 = vmul.f32 %v907, %v1685
  %v1687 = vsub.f32 1.0, %v1686
  %v1688 = vmul.f32 %v1685, %v1687
  %v1689 = vadd.f32 %v1685, %v1688
  %vm1690 = vweird.f32 %v907
  %vm1691 = vweird.f32 %v1685
  %vm1692 = vmor %vm1690, %vm1691
  %v1693 = vsel %vm1692, %v1685, %v1689
  %v1694 = vand.u32 2147483647, %v907
  %vm1695 = vcmp.eq.f32.partialorder %v1694, 8.507059e+37
  %v1696 = vand.u32 %v907, 2147483648
  %v1697 = vor.u32 1.1754944e-38, %v1696
  %v1698 = vsel %vm1695, %v1697, %v1693
  %v1699 = vmul.f32 1.0, %v1698
  %v1700 = vrcp.pop %v908
  %v1701 = vmul.f32 %v908, %v1700
  %v1702 = vsub.f32 1.0, %v1701
  %v1703 = vmul.f32 %v1700, %v1702
  %v1704 = vadd.f32 %v1700, %v1703
  %vm1705 = vweird.f32 %v908
  %vm1706 = vweird.f32 %v1700
  %vm1707 = vmor %vm1705, %vm1706
  %v1708 = vsel %vm1707, %v1700, %v1704
  %v1709 = vand.u32 2147483647, %v908
  %vm1710 = vcmp.eq.f32.partialorder %v1709, 8.507059e+37
  %v1711 = vand.u32 %v908, 2147483648
  %v1712 = vor.u32 1.1754944e-38, %v1711
  %v1713 = vsel %vm1710, %v1712, %v1708
  %v1714 = vmul.f32 1.0, %v1713
  %v1715 = vrcp.pop %v909
  %v1716 = vmul.f32 %v909, %v1715
  %v1717 = vsub.f32 1.0, %v1716
  %v1718 = vmul.f32 %v1715, %v1717
  %v1719 = vadd.f32 %v1715, %v1718
  %vm1720 = vweird.f32 %v909
  %vm1721 = vweird.f32 %v1715
  %vm1722 = vmor %vm1720, %vm1721
  %v1723 = vsel %vm1722, %v1715, %v1719
  %v1724 = vand.u32 2147483647, %v909
  %vm1725 = vcmp.eq.f32.partialorder %v1724, 8.507059e+37
  %v1726 = vand.u32 %v909, 2147483648
  %v1727 = vor.u32 1.1754944e-38, %v1726
  %v1728 = vsel %vm1725, %v1727, %v1723
  %v1729 = vmul.f32 1.0, %v1728
  %v1730 = vrcp.pop %v910
  %v1731 = vmul.f32 %v910, %v1730
  %v1732 = vsub.f32 1.0, %v1731
  %v1733 = vmul.f32 %v1730, %v1732
  %v1734 = vadd.f32 %v1730, %v1733
  %vm1735 = vweird.f32 %v910
  %vm1736 = vweird.f32 %v1730
  %vm1737 = vmor %vm1735, %vm1736
  %v1738 = vsel %vm1737, %v1730, %v1734
  %v1739 = vand.u32 2147483647, %v910
  %vm1740 = vcmp.eq.f32.partialorder %v1739, 8.507059e+37
  %v1741 = vand.u32 %v910, 2147483648
  %v1742 = vor.u32 1.1754944e-38, %v1741
  %v1743 = vsel %vm1740, %v1742, %v1738
  %v1744 = vmul.f32 1.0, %v1743
  %v1745 = vrcp.pop %v911
  %v1746 = vmul.f32 %v911, %v1745
  %v1747 = vsub.f32 1.0, %v1746
  %v1748 = vmul.f32 %v1745, %v1747
  %v1749 = vadd.f32 %v1745, %v1748
  %vm1750 = vweird.f32 %v911
  %vm1751 = vweird.f32 %v1745
  %vm1752 = vmor %vm1750, %vm1751
  %v1753 = vsel %vm1752, %v1745, %v1749
  %v1754 = vand.u32 2147483647, %v911
  %vm1755 = vcmp.eq.f32.partialorder %v1754, 8.507059e+37
  %v1756 = vand.u32 %v911, 2147483648
  %v1757 = vor.u32 1.1754944e-38, %v1756
  %v1758 = vsel %vm1755, %v1757, %v1753
  %v1759 = vmul.f32 1.0, %v1758
  %v1760 = vrcp.pop %v912
  %v1761 = vmul.f32 %v912, %v1760
  %v1762 = vsub.f32 1.0, %v1761
  %v1763 = vmul.f32 %v1760, %v1762
  %v1764 = vadd.f32 %v1760, %v1763
  %vm1765 = vweird.f32 %v912
  %vm1766 = vweird.f32 %v1760
  %vm1767 = vmor %vm1765, %vm1766
  %v1768 = vsel %vm1767, %v1760, %v1764
  %v1769 = vand.u32 2147483647, %v912
  %vm1770 = vcmp.eq.f32.partialorder %v1769, 8.507059e+37
  %v1771 = vand.u32 %v912, 2147483648
  %v1772 = vor.u32 1.1754944e-38, %v1771
  %v1773 = vsel %vm1770, %v1772, %v1768
  %v1774 = vmul.f32 1.0, %v1773
  %v1775 = vrcp.pop %v913
  %v1776 = vmul.f32 %v913, %v1775
  %v1777 = vsub.f32 1.0, %v1776
  %v1778 = vmul.f32 %v1775, %v1777
  %v1779 = vadd.f32 %v1775, %v1778
  %vm1780 = vweird.f32 %v913
  %vm1781 = vweird.f32 %v1775
  %vm1782 = vmor %vm1780, %vm1781
  %v1783 = vsel %vm1782, %v1775, %v1779
  %v1784 = vand.u32 2147483647, %v913
  %vm1785 = vcmp.eq.f32.partialorder %v1784, 8.507059e+37
  %v1786 = vand.u32 %v913, 2147483648
  %v1787 = vor.u32 1.1754944e-38, %v1786
  %v1788 = vsel %vm1785, %v1787, %v1783
  %v1789 = vmul.f32 1.0, %v1788
  %v1790 = vrcp.pop %v914
  %v1791 = vmul.f32 %v914, %v1790
  %v1792 = vsub.f32 1.0, %v1791
  %v1793 = vmul.f32 %v1790, %v1792
  %v1794 = vadd.f32 %v1790, %v1793
  %vm1795 = vweird.f32 %v914
  %vm1796 = vweird.f32 %v1790
  %vm1797 = vmor %vm1795, %vm1796
  %v1798 = vsel %vm1797, %v1790, %v1794
  %v1799 = vand.u32 2147483647, %v914
  %vm1800 = vcmp.eq.f32.partialorder %v1799, 8.507059e+37
  %v1801 = vand.u32 %v914, 2147483648
  %v1802 = vor.u32 1.1754944e-38, %v1801
  %v1803 = vsel %vm1800, %v1802, %v1798
  %v1804 = vmul.f32 1.0, %v1803
  %v1805 = vrcp.pop %v915
  %v1806 = vmul.f32 %v915, %v1805
  %v1807 = vsub.f32 1.0, %v1806
  %v1808 = vmul.f32 %v1805, %v1807
  %v1809 = vadd.f32 %v1805, %v1808
  %vm1810 = vweird.f32 %v915
  %vm1811 = vweird.f32 %v1805
  %vm1812 = vmor %vm1810, %vm1811
  %v1813 = vsel %vm1812, %v1805, %v1809
  %v1814 = vand.u32 2147483647, %v915
  %vm1815 = vcmp.eq.f32.partialorder %v1814, 8.507059e+37
  %v1816 = vand.u32 %v915, 2147483648
  %v1817 = vor.u32 1.1754944e-38, %v1816
  %v1818 = vsel %vm1815, %v1817, %v1813
  %v1819 = vmul.f32 1.0, %v1818
  %v1820 = vrcp.pop %v916
  %v1821 = vmul.f32 %v916, %v1820
  %v1822 = vsub.f32 1.0, %v1821
  %v1823 = vmul.f32 %v1820, %v1822
  %v1824 = vadd.f32 %v1820, %v1823
  %vm1825 = vweird.f32 %v916
  %vm1826 = vweird.f32 %v1820
  %vm1827 = vmor %vm1825, %vm1826
  %v1828 = vsel %vm1827, %v1820, %v1824
  %v1829 = vand.u32 2147483647, %v916
  %vm1830 = vcmp.eq.f32.partialorder %v1829, 8.507059e+37
  %v1831 = vand.u32 %v916, 2147483648
  %v1832 = vor.u32 1.1754944e-38, %v1831
  %v1833 = vsel %vm1830, %v1832, %v1828
  %v1834 = vmul.f32 1.0, %v1833
  %v1835 = vrcp.pop %v917
  %v1836 = vmul.f32 %v917, %v1835
  %v1837 = vsub.f32 1.0, %v1836
  %v1838 = vmul.f32 %v1835, %v1837
  %v1839 = vadd.f32 %v1835, %v1838
  %vm1840 = vweird.f32 %v917
  %vm1841 = vweird.f32 %v1835
  %vm1842 = vmor %vm1840, %vm1841
  %v1843 = vsel %vm1842, %v1835, %v1839
  %v1844 = vand.u32 2147483647, %v917
  %vm1845 = vcmp.eq.f32.partialorder %v1844, 8.507059e+37
  %v1846 = vand.u32 %v917, 2147483648
  %v1847 = vor.u32 1.1754944e-38, %v1846
  %v1848 = vsel %vm1845, %v1847, %v1843
  %v1849 = vmul.f32 1.0, %v1848
  %v1850 = vrcp.pop %v918
  %v1851 = vmul.f32 %v918, %v1850
  %v1852 = vsub.f32 1.0, %v1851
  %v1853 = vmul.f32 %v1850, %v1852
  %v1854 = vadd.f32 %v1850, %v1853
  %vm1855 = vweird.f32 %v918
  %vm1856 = vweird.f32 %v1850
  %vm1857 = vmor %vm1855, %vm1856
  %v1858 = vsel %vm1857, %v1850, %v1854
  %v1859 = vand.u32 2147483647, %v918
  %vm1860 = vcmp.eq.f32.partialorder %v1859, 8.507059e+37
  %v1861 = vand.u32 %v918, 2147483648
  %v1862 = vor.u32 1.1754944e-38, %v1861
  %v1863 = vsel %vm1860, %v1862, %v1858
  %v1864 = vmul.f32 1.0, %v1863
  %v1865 = vrcp.pop %v919
  %v1866 = vmul.f32 %v919, %v1865
  %v1867 = vsub.f32 1.0, %v1866
  %v1868 = vmul.f32 %v1865, %v1867
  %v1869 = vadd.f32 %v1865, %v1868
  %vm1870 = vweird.f32 %v919
  %vm1871 = vweird.f32 %v1865
  %vm1872 = vmor %vm1870, %vm1871
  %v1873 = vsel %vm1872, %v1865, %v1869
  %v1874 = vand.u32 2147483647, %v919
  %vm1875 = vcmp.eq.f32.partialorder %v1874, 8.507059e+37
  %v1876 = vand.u32 %v919, 2147483648
  %v1877 = vor.u32 1.1754944e-38, %v1876
  %v1878 = vsel %vm1875, %v1877, %v1873
  %v1879 = vmul.f32 1.0, %v1878
  %v1880 = vmul.f32 %v934, 2.0
  %v1881 = vmul.f32 %v949, 2.0
  %v1882 = vmul.f32 %v964, 2.0
  %v1883 = vmul.f32 %v979, 2.0
  %v1884 = vmul.f32 %v994, 2.0
  %v1885 = vmul.f32 %v1009, 2.0
  %v1886 = vmul.f32 %v1024, 2.0
  %v1887 = vmul.f32 %v1039, 2.0
  %v1888 = vmul.f32 %v1054, 2.0
  %v1889 = vmul.f32 %v1069, 2.0
  %v1890 = vmul.f32 %v1084, 2.0
  %v1891 = vmul.f32 %v1099, 2.0
  %v1892 = vmul.f32 %v1114, 2.0
  %v1893 = vmul.f32 %v1129, 2.0
  %v1894 = vmul.f32 %v1144, 2.0
  %v1895 = vmul.f32 %v1159, 2.0
  %v1896 = vmul.f32 %v1174, 2.0
  %v1897 = vmul.f32 %v1189, 2.0
  %v1898 = vmul.f32 %v1204, 2.0
  %v1899 = vmul.f32 %v1219, 2.0
  %v1900 = vmul.f32 %v1234, 2.0
  %v1901 = vmul.f32 %v1249, 2.0
  %v1902 = vmul.f32 %v1264, 2.0
  %v1903 = vmul.f32 %v1279, 2.0
  %v1904 = vmul.f32 %v1294, 2.0
  %v1905 = vmul.f32 %v1309, 2.0
  %v1906 = vmul.f32 %v1324, 2.0
  %v1907 = vmul.f32 %v1339, 2.0
  %v1908 = vmul.f32 %v1354, 2.0
  %v1909 = vmul.f32 %v1369, 2.0
  %v1910 = vmul.f32 %v1384, 2.0
  %v1911 = vmul.f32 %v1399, 2.0
  %v1912 = vmul.f32 %v1414, 2.0
  %v1913 = vmul.f32 %v1429, 2.0
  %v1914 = vmul.f32 %v1444, 2.0
  %v1915 = vmul.f32 %v1459, 2.0
  %v1916 = vmul.f32 %v1474, 2.0
  %v1917 = vmul.f32 %v1489, 2.0
  %v1918 = vmul.f32 %v1504, 2.0
  %v1919 = vmul.f32 %v1519, 2.0
  %v1920 = vmul.f32 %v1534, 2.0
  %v1921 = vmul.f32 %v1549, 2.0
  %v1922 = vmul.f32 %v1564, 2.0
  %v1923 = vmul.f32 %v1579, 2.0
  %v1924 = vmul.f32 %v1594, 2.0
  %v1925 = vmul.f32 %v1609, 2.0
  %v1926 = vmul.f32 %v1624, 2.0
  %v1927 = vmul.f32 %v1639, 2.0
  %v1928 = vmul.f32 %v1654, 2.0
  %v1929 = vmul.f32 %v1669, 2.0
  %v1930 = vmul.f32 %v1684, 2.0
  %v1931 = vmul.f32 %v1699, 2.0
  %v1932 = vmul.f32 %v1714, 2.0
  %v1933 = vmul.f32 %v1729, 2.0
  %v1934 = vmul.f32 %v1744, 2.0
  %v1935 = vmul.f32 %v1759, 2.0
  %v1936 = vmul.f32 %v1774, 2.0
  %v1937 = vmul.f32 %v1789, 2.0
  %v1938 = vmul.f32 %v1804, 2.0
  %v1939 = vmul.f32 %v1819, 2.0
  %v1940 = vmul.f32 %v1834, 2.0
  %v1941 = vmul.f32 %v1849, 2.0
  %v1942 = vmul.f32 %v1864, 2.0
  %v1943 = vmul.f32 %v1879, 2.0
  %v1944 = vsel %vm535, %v600, %v1880
  %v1945 = vsel %vm535, %v601, %v1881
  %v1946 = vsel %vm535, %v602, %v1882
  %v1947 = vsel %vm535, %v603, %v1883
  %v1948 = vsel %vm535, %v604, %v1884
  %v1949 = vsel %vm535, %v605, %v1885
  %v1950 = vsel %vm535, %v606, %v1886
  %v1951 = vsel %vm535, %v607, %v1887
  %v1952 = vsel %vm535, %v608, %v1888
  %v1953 = vsel %vm535, %v609, %v1889
  %v1954 = vsel %vm535, %v610, %v1890
  %v1955 = vsel %vm535, %v611, %v1891
  %v1956 = vsel %vm535, %v612, %v1892
  %v1957 = vsel %vm535, %v613, %v1893
  %v1958 = vsel %vm535, %v614, %v1894
  %v1959 = vsel %vm535, %v615, %v1895
  %v1960 = vsel %vm535, %v616, %v1896
  %v1961 = vsel %vm535, %v617, %v1897
  %v1962 = vsel %vm535, %v618, %v1898
  %v1963 = vsel %vm535, %v619, %v1899
  %v1964 = vsel %vm535, %v620, %v1900
  %v1965 = vsel %vm535, %v621, %v1901
  %v1966 = vsel %vm535, %v622, %v1902
  %v1967 = vsel %vm535, %v623, %v1903
  %v1968 = vsel %vm535, %v624, %v1904
  %v1969 = vsel %vm535, %v625, %v1905
  %v1970 = vsel %vm535, %v626, %v1906
  %v1971 = vsel %vm535, %v627, %v1907
  %v1972 = vsel %vm535, %v628, %v1908
  %v1973 = vsel %vm535, %v629, %v1909
  %v1974 = vsel %vm535, %v630, %v1910
  %v1975 = vsel %vm535, %v631, %v1911
  %v1976 = vsel %vm535, %v632, %v1912
  %v1977 = vsel %vm535, %v633, %v1913
  %v1978 = vsel %vm535, %v634, %v1914
  %v1979 = vsel %vm535, %v635, %v1915
  %v1980 = vsel %vm535, %v636, %v1916
  %v1981 = vsel %vm535, %v637, %v1917
  %v1982 = vsel %vm535, %v638, %v1918
  %v1983 = vsel %vm535, %v639, %v1919
  %v1984 = vsel %vm535, %v640, %v1920
  %v1985 = vsel %vm535, %v641, %v1921
  %v1986 = vsel %vm535, %v642, %v1922
  %v1987 = vsel %vm535, %v643, %v1923
  %v1988 = vsel %vm535, %v644, %v1924
  %v1989 = vsel %vm535, %v645, %v1925
  %v1990 = vsel %vm535, %v646, %v1926
  %v1991 = vsel %vm535, %v647, %v1927
  %v1992 = vsel %vm535, %v648, %v1928
  %v1993 = vsel %vm535, %v649, %v1929
  %v1994 = vsel %vm535, %v650, %v1930
  %v1995 = vsel %vm535, %v651, %v1931
  %v1996 = vsel %vm535, %v652, %v1932
  %v1997 = vsel %vm535, %v653, %v1933
  %v1998 = vsel %vm535, %v654, %v1934
  %v1999 = vsel %vm535, %v655, %v1935
  %v2000 = vsel %vm535, %v656, %v1936
  %v2001 = vsel %vm535, %v657, %v1937
  %v2002 = vsel %vm535, %v658, %v1938
  %v2003 = vsel %vm535, %v659, %v1939
  %v2004 = vsel %vm535, %v660, %v1940
  %v2005 = vsel %vm535, %v661, %v1941
  %v2006 = vsel %vm535, %v662, %v1942
  %v2007 = vsel %vm535, %v663, %v1943
  %2008 = vst [vmem:[%s3] sm:$0xff] %v1944
  %2009 = vst [vmem:[%s3 + $0x8] sm:$0xff] %v1945
  %2010 = vst [vmem:[%s3 + $0x10] sm:$0xff] %v1946
  %2011 = vst [vmem:[%s3 + $0x18] sm:$0xff] %v1947
  %2012 = vst [vmem:[%s3 + $0x20] sm:$0xff] %v1948
  %2013 = vst [vmem:[%s3 + $0x28] sm:$0xff] %v1949
  %2014 = vst [vmem:[%s3 + $0x30] sm:$0xff] %v1950
  %2015 = vst [vmem:[%s3 + $0x38] sm:$0xff] %v1951
  %2016 = vst [vmem:[%s3 + $0x40] sm:$0xff] %v1952
  %2017 = vst [vmem:[%s3 + $0x48] sm:$0xff] %v1953
  %2018 = vst [vmem:[%s3 + $0x50] sm:$0xff] %v1954
  %2019 = vst [vmem:[%s3 + $0x58] sm:$0xff] %v1955
  %2020 = vst [vmem:[%s3 + $0x60] sm:$0xff] %v1956
  %2021 = vst [vmem:[%s3 + $0x68] sm:$0xff] %v1957
  %2022 = vst [vmem:[%s3 + $0x70] sm:$0xff] %v1958
  %2023 = vst [vmem:[%s3 + $0x78] sm:$0xff] %v1959
  %2024 = vst [vmem:[%s3 + $0x80] sm:$0xff] %v1960
  %2025 = vst [vmem:[%s3 + $0x88] sm:$0xff] %v1961
  %2026 = vst [vmem:[%s3 + $0x90] sm:$0xff] %v1962
  %2027 = vst [vmem:[%s3 + $0x98] sm:$0xff] %v1963
  %2028 = vst [vmem:[%s3 + $0xa0] sm:$0xff] %v1964
  %2029 = vst [vmem:[%s3 + $0xa8] sm:$0xff] %v1965
  %2030 = vst [vmem:[%s3 + $0xb0] sm:$0xff] %v1966
  %2031 = vst [vmem:[%s3 + $0xb8] sm:$0xff] %v1967
  %2032 = vst [vmem:[%s3 + $0xc0] sm:$0xff] %v1968
  %2033 = vst [vmem:[%s3 + $0xc8] sm:$0xff] %v1969
  %2034 = vst [vmem:[%s3 + $0xd0] sm:$0xff] %v1970
  %2035 = vst [vmem:[%s3 + $0xd8] sm:$0xff] %v1971
  %2036 = vst [vmem:[%s3 + $0xe0] sm:$0xff] %v1972
  %2037 = vst [vmem:[%s3 + $0xe8] sm:$0xff] %v1973
  %2038 = vst [vmem:[%s3 + $0xf0] sm:$0xff] %v1974
  %2039 = vst [vmem:[%s3 + $0xf8] sm:$0xff] %v1975
  %2040 = vst [vmem:[%s3 + $0x100] sm:$0xff] %v1976
  %2041 = vst [vmem:[%s3 + $0x108] sm:$0xff] %v1977
  %2042 = vst [vmem:[%s3 + $0x110] sm:$0xff] %v1978
  %2043 = vst [vmem:[%s3 + $0x118] sm:$0xff] %v1979
  %2044 = vst [vmem:[%s3 + $0x120] sm:$0xff] %v1980
  %2045 = vst [vmem:[%s3 + $0x128] sm:$0xff] %v1981
  %2046 = vst [vmem:[%s3 + $0x130] sm:$0xff] %v1982
  %2047 = vst [vmem:[%s3 + $0x138] sm:$0xff] %v1983
  %2048 = vst [vmem:[%s3 + $0x140] sm:$0xff] %v1984
  %2049 = vst [vmem:[%s3 + $0x148] sm:$0xff] %v1985
  %2050 = vst [vmem:[%s3 + $0x150] sm:$0xff] %v1986
  %2051 = vst [vmem:[%s3 + $0x158] sm:$0xff] %v1987
  %2052 = vst [vmem:[%s3 + $0x160] sm:$0xff] %v1988
  %2053 = vst [vmem:[%s3 + $0x168] sm:$0xff] %v1989
  %2054 = vst [vmem:[%s3 + $0x170] sm:$0xff] %v1990
  %2055 = vst [vmem:[%s3 + $0x178] sm:$0xff] %v1991
  %2056 = vst [vmem:[%s3 + $0x180] sm:$0xff] %v1992
  %2057 = vst [vmem:[%s3 + $0x188] sm:$0xff] %v1993
  %2058 = vst [vmem:[%s3 + $0x190] sm:$0xff] %v1994
  %2059 = vst [vmem:[%s3 + $0x198] sm:$0xff] %v1995
  %2060 = vst [vmem:[%s3 + $0x1a0] sm:$0xff] %v1996
  %2061 = vst [vmem:[%s3 + $0x1a8] sm:$0xff] %v1997
  %2062 = vst [vmem:[%s3 + $0x1b0] sm:$0xff] %v1998
  %2063 = vst [vmem:[%s3 + $0x1b8] sm:$0xff] %v1999
  %2064 = vst [vmem:[%s3 + $0x1c0] sm:$0xff] %v2000
  %2065 = vst [vmem:[%s3 + $0x1c8] sm:$0xff] %v2001
  %2066 = vst [vmem:[%s3 + $0x1d0] sm:$0xff] %v2002
  %2067 = vst [vmem:[%s3 + $0x1d8] sm:$0xff] %v2003
  %2068 = vst [vmem:[%s3 + $0x1e0] sm:$0xff] %v2004
  %2069 = vst [vmem:[%s3 + $0x1e8] sm:$0xff] %v2005
  %2070 = vst [vmem:[%s3 + $0x1f0] sm:$0xff] %v2006
  %2071 = vst [vmem:[%s3 + $0x1f8] sm:$0xff] %v2007
  // Predicated region
  $region14: #{dft_forward.3} parent=0 // pred_check
    _
  $region15: #{dft_forward.3} parent=0 // pred_check_branch
    %2073 = sbr.rel (0) target = $region17
  $region16: #{dft_forward.3} parent=0 // pred_region
    _
  $region17: #{dft_forward.3} parent=0 // pred_fallthru
    _
  // Predicated region
  $region18: #{dft_forward.3} parent=0 // pred_check
    _
  $region19: #{dft_forward.3} parent=0 // pred_check_branch
    %2075 = sbr.rel (0) target = $region21
  $region20: #{dft_forward.3} parent=0 // pred_region
    _
  $region21: #{dft_forward.3} parent=0 // pred_fallthru
    _

// kernel: dft_forward.5
$region0: #{dft_forward.5}
  #allocation0 [shape = 'u32[]', space=smem, size = 0x4, offset = 0x4, fixed_abs, tag = 'smem constant byte address 0x4 - core index']
  #allocation1 [shape = 'u32[72,128]{1,0:T(1,128)}', space=vmem, size = 0x9000, scoped, tag = 'internal scratch']
  %s0 = inlined_call_operand.vmem [shape: f32[512,128], index: 0, kind: input, shape index: {}]
  %s1 = inlined_call_operand.vmem [shape: f32[1,128], index: 1, kind: input, shape index: {}]
  %s2 = inlined_call_operand.vmem [shape: f32[1,128], index: 2, kind: input, shape index: {}]
  %s3 = inlined_call_operand.vmem [shape: f32[512,128], index: 3, kind: output, shape index: {}]
  %s4 = sld [smem:[#allocation0]]
  $region22: #{dft_forward.5} parent=0
    _
  %s6 = ssub.s32 1, %s4
  %s7 = scalar_select 0, %s6, %s4
  // Predicated region
  $region2: #{dft_forward.5} parent=0 // pred_check
    _
  $region3: #{dft_forward.5} parent=0 // pred_check_branch
    %9 = sbr.rel (0) target = $region5
  $region4: #{dft_forward.5} parent=0 // pred_region
    _
  $region5: #{dft_forward.5} parent=0 // pred_fallthru
    _
  // Predicated region
  $region6: #{dft_forward.5} parent=0 // pred_check
    _
  $region7: #{dft_forward.5} parent=0 // pred_check_branch
    %11 = sbr.rel (0) target = $region9
  $region8: #{dft_forward.5} parent=0 // pred_region
    _
  $region9: #{dft_forward.5} parent=0 // pred_fallthru
    _
  // Predicated region
  $region10: #{dft_forward.5} parent=0 // pred_check
    _
  $region11: #{dft_forward.5} parent=0 // pred_check_branch
    %13 = sbr.rel (0) target = $region13
  $region12: #{dft_forward.5} parent=0 // pred_region
    _
  $region13: #{dft_forward.5} parent=0 // pred_fallthru
    _
  %v14 = vld [vmem:[%s0] sm:$0xff]
  %v15 = vld [vmem:[%s0 + $0x8] sm:$0xff]
  %v16 = vld [vmem:[%s0 + $0x10] sm:$0xff]
  %v17 = vld [vmem:[%s0 + $0x18] sm:$0xff]
  %v18 = vld [vmem:[%s0 + $0x20] sm:$0xff]
  %v19 = vld [vmem:[%s0 + $0x28] sm:$0xff]
  %v20 = vld [vmem:[%s0 + $0x30] sm:$0xff]
  %v21 = vld [vmem:[%s0 + $0x38] sm:$0xff]
  %v22 = vld [vmem:[%s0 + $0x40] sm:$0xff]
  %v23 = vld [vmem:[%s0 + $0x48] sm:$0xff]
  %v24 = vld [vmem:[%s0 + $0x50] sm:$0xff]
  %v25 = vld [vmem:[%s0 + $0x58] sm:$0xff]
  %v26 = vld [vmem:[%s0 + $0x60] sm:$0xff]
  %v27 = vld [vmem:[%s0 + $0x68] sm:$0xff]
  %v28 = vld [vmem:[%s0 + $0x70] sm:$0xff]
  %v29 = vld [vmem:[%s0 + $0x78] sm:$0xff]
  %v30 = vld [vmem:[%s0 + $0x80] sm:$0xff]
  %v31 = vld [vmem:[%s0 + $0x88] sm:$0xff]
  %v32 = vld [vmem:[%s0 + $0x90] sm:$0xff]
  %v33 = vld [vmem:[%s0 + $0x98] sm:$0xff]
  %v34 = vld [vmem:[%s0 + $0xa0] sm:$0xff]
  %v35 = vld [vmem:[%s0 + $0xa8] sm:$0xff]
  %v36 = vld [vmem:[%s0 + $0xb0] sm:$0xff]
  %v37 = vld [vmem:[%s0 + $0xb8] sm:$0xff]
  %v38 = vld [vmem:[%s0 + $0xc0] sm:$0xff]
  %v39 = vld [vmem:[%s0 + $0xc8] sm:$0xff]
  %v40 = vld [vmem:[%s0 + $0xd0] sm:$0xff]
  %v41 = vld [vmem:[%s0 + $0xd8] sm:$0xff]
  %v42 = vld [vmem:[%s0 + $0xe0] sm:$0xff]
  %v43 = vld [vmem:[%s0 + $0xe8] sm:$0xff]
  %v44 = vld [vmem:[%s0 + $0xf0] sm:$0xff]
  %v45 = vld [vmem:[%s0 + $0xf8] sm:$0xff]
  %v46 = vld [vmem:[%s0 + $0x100] sm:$0xff]
  %v47 = vld [vmem:[%s0 + $0x108] sm:$0xff]
  %v48 = vld [vmem:[%s0 + $0x110] sm:$0xff]
  %v49 = vld [vmem:[%s0 + $0x118] sm:$0xff]
  %v50 = vld [vmem:[%s0 + $0x120] sm:$0xff]
  %v51 = vld [vmem:[%s0 + $0x128] sm:$0xff]
  %v52 = vld [vmem:[%s0 + $0x130] sm:$0xff]
  %v53 = vld [vmem:[%s0 + $0x138] sm:$0xff]
  %v54 = vld [vmem:[%s0 + $0x140] sm:$0xff]
  %v55 = vld [vmem:[%s0 + $0x148] sm:$0xff]
  %v56 = vld [vmem:[%s0 + $0x150] sm:$0xff]
  %v57 = vld [vmem:[%s0 + $0x158] sm:$0xff]
  %v58 = vld [vmem:[%s0 + $0x160] sm:$0xff]
  %v59 = vld [vmem:[%s0 + $0x168] sm:$0xff]
  %v60 = vld [vmem:[%s0 + $0x170] sm:$0xff]
  %v61 = vld [vmem:[%s0 + $0x178] sm:$0xff]
  %v62 = vld [vmem:[%s0 + $0x180] sm:$0xff]
  %v63 = vld [vmem:[%s0 + $0x188] sm:$0xff]
  %v64 = vld [vmem:[%s0 + $0x190] sm:$0xff]
  %v65 = vld [vmem:[%s0 + $0x198] sm:$0xff]
  %v66 = vld [vmem:[%s0 + $0x1a0] sm:$0xff]
  %v67 = vld [vmem:[%s0 + $0x1a8] sm:$0xff]
  %v68 = vld [vmem:[%s0 + $0x1b0] sm:$0xff]
  %v69 = vld [vmem:[%s0 + $0x1b8] sm:$0xff]
  %v70 = vld [vmem:[%s0 + $0x1c0] sm:$0xff]
  %v71 = vld [vmem:[%s0 + $0x1c8] sm:$0xff]
  %v72 = vld [vmem:[%s0 + $0x1d0] sm:$0xff]
  %v73 = vld [vmem:[%s0 + $0x1d8] sm:$0xff]
  %v74 = vld [vmem:[%s0 + $0x1e0] sm:$0xff]
  %v75 = vld [vmem:[%s0 + $0x1e8] sm:$0xff]
  %v76 = vld [vmem:[%s0 + $0x1f0] sm:$0xff]
  %v77 = vld [vmem:[%s0 + $0x1f8] sm:$0xff]
  %v78 = vld [vmem:[%s1] sm:$0x1]
  %v80 = vperm.slane %v78, 0
  %v82 = vmul.f32 %v14, %v80
  %v83 = vmul.f32 %v15, %v80
  %v84 = vmul.f32 %v16, %v80
  %v85 = vmul.f32 %v17, %v80
  %v86 = vmul.f32 %v18, %v80
  %v87 = vmul.f32 %v19, %v80
  %v88 = vmul.f32 %v20, %v80
  %v89 = vmul.f32 %v21, %v80
  %v90 = vmul.f32 %v22, %v80
  %v91 = vmul.f32 %v23, %v80
  %v92 = vmul.f32 %v24, %v80
  %v93 = vmul.f32 %v25, %v80
  %v94 = vmul.f32 %v26, %v80
  %v95 = vmul.f32 %v27, %v80
  %v96 = vmul.f32 %v28, %v80
  %v97 = vmul.f32 %v29, %v80
  %v98 = vmul.f32 %v30, %v80
  %v99 = vmul.f32 %v31, %v80
  %v100 = vmul.f32 %v32, %v80
  %v101 = vmul.f32 %v33, %v80
  %v102 = vmul.f32 %v34, %v80
  %v103 = vmul.f32 %v35, %v80
  %v104 = vmul.f32 %v36, %v80
  %v105 = vmul.f32 %v37, %v80
  %v106 = vmul.f32 %v38, %v80
  %v107 = vmul.f32 %v39, %v80
  %v108 = vmul.f32 %v40, %v80
  %v109 = vmul.f32 %v41, %v80
  %v110 = vmul.f32 %v42, %v80
  %v111 = vmul.f32 %v43, %v80
  %v112 = vmul.f32 %v44, %v80
  %v113 = vmul.f32 %v45, %v80
  %v114 = vmul.f32 %v46, %v80
  %v115 = vmul.f32 %v47, %v80
  %v116 = vmul.f32 %v48, %v80
  %v117 = vmul.f32 %v49, %v80
  %v118 = vmul.f32 %v50, %v80
  %v119 = vmul.f32 %v51, %v80
  %v120 = vmul.f32 %v52, %v80
  %v121 = vmul.f32 %v53, %v80
  %v122 = vmul.f32 %v54, %v80
  %v123 = vmul.f32 %v55, %v80
  %v124 = vmul.f32 %v56, %v80
  %v125 = vmul.f32 %v57, %v80
  %v126 = vmul.f32 %v58, %v80
  %v127 = vmul.f32 %v59, %v80
  %v128 = vmul.f32 %v60, %v80
  %v129 = vmul.f32 %v61, %v80
  %v130 = vmul.f32 %v62, %v80
  %v131 = vmul.f32 %v63, %v80
  %v132 = vmul.f32 %v64, %v80
  %v133 = vmul.f32 %v65, %v80
  %v134 = vmul.f32 %v66, %v80
  %v135 = vmul.f32 %v67, %v80
  %v136 = vmul.f32 %v68, %v80
  %v137 = vmul.f32 %v69, %v80
  %v138 = vmul.f32 %v70, %v80
  %v139 = vmul.f32 %v71, %v80
  %v140 = vmul.f32 %v72, %v80
  %v141 = vmul.f32 %v73, %v80
  %v142 = vmul.f32 %v74, %v80
  %v143 = vmul.f32 %v75, %v80
  %v144 = vmul.f32 %v76, %v80
  %v145 = vmul.f32 %v77, %v80
  %v146 = vld [vmem:[%s2] sm:$0x1]
  %v148 = vperm.slane %v146, 0
  %v150 = vadd.f32 %v82, %v148
  %v151 = vadd.f32 %v83, %v148
  %v152 = vadd.f32 %v84, %v148
  %v153 = vadd.f32 %v85, %v148
  %v154 = vadd.f32 %v86, %v148
  %v155 = vadd.f32 %v87, %v148
  %v156 = vadd.f32 %v88, %v148
  %v157 = vadd.f32 %v89, %v148
  %v158 = vadd.f32 %v90, %v148
  %v159 = vadd.f32 %v91, %v148
  %v160 = vadd.f32 %v92, %v148
  %v161 = vadd.f32 %v93, %v148
  %v162 = vadd.f32 %v94, %v148
  %v163 = vadd.f32 %v95, %v148
  %v164 = vadd.f32 %v96, %v148
  %v165 = vadd.f32 %v97, %v148
  %v166 = vadd.f32 %v98, %v148
  %v167 = vadd.f32 %v99, %v148
  %v168 = vadd.f32 %v100, %v148
  %v169 = vadd.f32 %v101, %v148
  %v170 = vadd.f32 %v102, %v148
  %v171 = vadd.f32 %v103, %v148
  %v172 = vadd.f32 %v104, %v148
  %v173 = vadd.f32 %v105, %v148
  %v174 = vadd.f32 %v106, %v148
  %v175 = vadd.f32 %v107, %v148
  %v176 = vadd.f32 %v108, %v148
  %v177 = vadd.f32 %v109, %v148
  %v178 = vadd.f32 %v110, %v148
  %v179 = vadd.f32 %v111, %v148
  %v180 = vadd.f32 %v112, %v148
  %v181 = vadd.f32 %v113, %v148
  %v182 = vadd.f32 %v114, %v148
  %v183 = vadd.f32 %v115, %v148
  %v184 = vadd.f32 %v116, %v148
  %v185 = vadd.f32 %v117, %v148
  %v186 = vadd.f32 %v118, %v148
  %v187 = vadd.f32 %v119, %v148
  %v188 = vadd.f32 %v120, %v148
  %v189 = vadd.f32 %v121, %v148
  %v190 = vadd.f32 %v122, %v148
  %v191 = vadd.f32 %v123, %v148
  %v192 = vadd.f32 %v124, %v148
  %v193 = vadd.f32 %v125, %v148
  %v194 = vadd.f32 %v126, %v148
  %v195 = vadd.f32 %v127, %v148
  %v196 = vadd.f32 %v128, %v148
  %v197 = vadd.f32 %v129, %v148
  %v198 = vadd.f32 %v130, %v148
  %v199 = vadd.f32 %v131, %v148
  %v200 = vadd.f32 %v132, %v148
  %v201 = vadd.f32 %v133, %v148
  %v202 = vadd.f32 %v134, %v148
  %v203 = vadd.f32 %v135, %v148
  %v204 = vadd.f32 %v136, %v148
  %v205 = vadd.f32 %v137, %v148
  %v206 = vadd.f32 %v138, %v148
  %v207 = vadd.f32 %v139, %v148
  %v208 = vadd.f32 %v140, %v148
  %v209 = vadd.f32 %v141, %v148
  %v210 = vadd.f32 %v142, %v148
  %v211 = vadd.f32 %v143, %v148
  %v212 = vadd.f32 %v144, %v148
  %v213 = vadd.f32 %v145, %v148
  %v214 = vmul.f32 %v150, 0.5
  %v215 = vmul.f32 %v151, 0.5
  %v216 = vmul.f32 %v152, 0.5
  %v217 = vmul.f32 %v153, 0.5
  %v218 = vmul.f32 %v154, 0.5
  %v219 = vmul.f32 %v155, 0.5
  %v220 = vmul.f32 %v156, 0.5
  %v221 = vmul.f32 %v157, 0.5
  %v222 = vmul.f32 %v158, 0.5
  %v223 = vmul.f32 %v159, 0.5
  %v224 = vmul.f32 %v160, 0.5
  %v225 = vmul.f32 %v161, 0.5
  %v226 = vmul.f32 %v162, 0.5
  %v227 = vmul.f32 %v163, 0.5
  %v228 = vmul.f32 %v164, 0.5
  %v229 = vmul.f32 %v165, 0.5
  %v230 = vmul.f32 %v166, 0.5
  %v231 = vmul.f32 %v167, 0.5
  %v232 = vmul.f32 %v168, 0.5
  %v233 = vmul.f32 %v169, 0.5
  %v234 = vmul.f32 %v170, 0.5
  %v235 = vmul.f32 %v171, 0.5
  %v236 = vmul.f32 %v172, 0.5
  %v237 = vmul.f32 %v173, 0.5
  %v238 = vmul.f32 %v174, 0.5
  %v239 = vmul.f32 %v175, 0.5
  %v240 = vmul.f32 %v176, 0.5
  %v241 = vmul.f32 %v177, 0.5
  %v242 = vmul.f32 %v178, 0.5
  %v243 = vmul.f32 %v179, 0.5
  %v244 = vmul.f32 %v180, 0.5
  %v245 = vmul.f32 %v181, 0.5
  %v246 = vmul.f32 %v182, 0.5
  %v247 = vmul.f32 %v183, 0.5
  %v248 = vmul.f32 %v184, 0.5
  %v249 = vmul.f32 %v185, 0.5
  %v250 = vmul.f32 %v186, 0.5
  %v251 = vmul.f32 %v187, 0.5
  %v252 = vmul.f32 %v188, 0.5
  %v253 = vmul.f32 %v189, 0.5
  %v254 = vmul.f32 %v190, 0.5
  %v255 = vmul.f32 %v191, 0.5
  %v256 = vmul.f32 %v192, 0.5
  %v257 = vmul.f32 %v193, 0.5
  %v258 = vmul.f32 %v194, 0.5
  %v259 = vmul.f32 %v195, 0.5
  %v260 = vmul.f32 %v196, 0.5
  %v261 = vmul.f32 %v197, 0.5
  %v262 = vmul.f32 %v198, 0.5
  %v263 = vmul.f32 %v199, 0.5
  %v264 = vmul.f32 %v200, 0.5
  %v265 = vmul.f32 %v201, 0.5
  %v266 = vmul.f32 %v202, 0.5
  %v267 = vmul.f32 %v203, 0.5
  %v268 = vmul.f32 %v204, 0.5
  %v269 = vmul.f32 %v205, 0.5
  %v270 = vmul.f32 %v206, 0.5
  %v271 = vmul.f32 %v207, 0.5
  %v272 = vmul.f32 %v208, 0.5
  %v273 = vmul.f32 %v209, 0.5
  %v274 = vmul.f32 %v210, 0.5
  %v275 = vmul.f32 %v211, 0.5
  %v276 = vmul.f32 %v212, 0.5
  %v277 = vmul.f32 %v213, 0.5
  %v278 = vmul.f32 %v150, 0.044715
  %v279 = vmul.f32 %v151, 0.044715
  %v280 = vmul.f32 %v152, 0.044715
  %v281 = vmul.f32 %v153, 0.044715
  %v282 = vmul.f32 %v154, 0.044715
  %v283 = vmul.f32 %v155, 0.044715
  %v284 = vmul.f32 %v156, 0.044715
  %v285 = vmul.f32 %v157, 0.044715
  %v286 = vmul.f32 %v158, 0.044715
  %v287 = vmul.f32 %v159, 0.044715
  %v288 = vmul.f32 %v160, 0.044715
  %v289 = vmul.f32 %v161, 0.044715
  %v290 = vmul.f32 %v162, 0.044715
  %v291 = vmul.f32 %v163, 0.044715
  %v292 = vmul.f32 %v164, 0.044715
  %v293 = vmul.f32 %v165, 0.044715
  %v294 = vmul.f32 %v166, 0.044715
  %v295 = vmul.f32 %v167, 0.044715
  %v296 = vmul.f32 %v168, 0.044715
  %v297 = vmul.f32 %v169, 0.044715
  %v298 = vmul.f32 %v170, 0.044715
  %v299 = vmul.f32 %v171, 0.044715
  %v300 = vmul.f32 %v172, 0.044715
  %v301 = vmul.f32 %v173, 0.044715
  %v302 = vmul.f32 %v174, 0.044715
  %v303 = vmul.f32 %v175, 0.044715
  %v304 = vmul.f32 %v176, 0.044715
  %v305 = vmul.f32 %v177, 0.044715
  %v306 = vmul.f32 %v178, 0.044715
  %v307 = vmul.f32 %v179, 0.044715
  %v308 = vmul.f32 %v180, 0.044715
  %v309 = vmul.f32 %v181, 0.044715
  %v310 = vmul.f32 %v182, 0.044715
  %v311 = vmul.f32 %v183, 0.044715
  %v312 = vmul.f32 %v184, 0.044715
  %v313 = vmul.f32 %v185, 0.044715
  %v314 = vmul.f32 %v186, 0.044715
  %v315 = vmul.f32 %v187, 0.044715
  %v316 = vmul.f32 %v188, 0.044715
  %v317 = vmul.f32 %v189, 0.044715
  %v318 = vmul.f32 %v190, 0.044715
  %v319 = vmul.f32 %v191, 0.044715
  %v320 = vmul.f32 %v192, 0.044715
  %v321 = vmul.f32 %v193, 0.044715
  %v322 = vmul.f32 %v194, 0.044715
  %v323 = vmul.f32 %v195, 0.044715
  %v324 = vmul.f32 %v196, 0.044715
  %v325 = vmul.f32 %v197, 0.044715
  %v326 = vmul.f32 %v198, 0.044715
  %v327 = vmul.f32 %v199, 0.044715
  %v328 = vmul.f32 %v200, 0.044715
  %v329 = vmul.f32 %v201, 0.044715
  %v330 = vmul.f32 %v202, 0.044715
  %v331 = vmul.f32 %v203, 0.044715
  %v332 = vmul.f32 %v204, 0.044715
  %v333 = vmul.f32 %v205, 0.044715
  %v334 = vmul.f32 %v206, 0.044715
  %v335 = vmul.f32 %v207, 0.044715
  %v336 = vmul.f32 %v208, 0.044715
  %v337 = vmul.f32 %v209, 0.044715
  %v338 = vmul.f32 %v210, 0.044715
  %v339 = vmul.f32 %v211, 0.044715
  %v340 = vmul.f32 %v212, 0.044715
  %v341 = vmul.f32 %v213, 0.044715
  %v342 = vmul.f32 %v278, %v150
  %v343 = vmul.f32 %v279, %v151
  %v344 = vmul.f32 %v280, %v152
  %v345 = vmul.f32 %v281, %v153
  %v346 = vmul.f32 %v282, %v154
  %v347 = vmul.f32 %v283, %v155
  %v348 = vmul.f32 %v284, %v156
  %v349 = vmul.f32 %v285, %v157
  %v350 = vmul.f32 %v286, %v158
  %v351 = vmul.f32 %v287, %v159
  %v352 = vmul.f32 %v288, %v160
  %v353 = vmul.f32 %v289, %v161
  %v354 = vmul.f32 %v290, %v162
  %v355 = vmul.f32 %v291, %v163
  %v356 = vmul.f32 %v292, %v164
  %v357 = vmul.f32 %v293, %v165
  %v358 = vmul.f32 %v294, %v166
  %v359 = vmul.f32 %v295, %v167
  %v360 = vmul.f32 %v296, %v168
  %v361 = vmul.f32 %v297, %v169
  %v362 = vmul.f32 %v298, %v170
  %v363 = vmul.f32 %v299, %v171
  %v364 = vmul.f32 %v300, %v172
  %v365 = vmul.f32 %v301, %v173
  %v366 = vmul.f32 %v302, %v174
  %v367 = vmul.f32 %v303, %v175
  %v368 = vmul.f32 %v304, %v176
  %v369 = vmul.f32 %v305, %v177
  %v370 = vmul.f32 %v306, %v178
  %v371 = vmul.f32 %v307, %v179
  %v372 = vmul.f32 %v308, %v180
  %v373 = vmul.f32 %v309, %v181
  %v374 = vmul.f32 %v310, %v182
  %v375 = vmul.f32 %v311, %v183
  %v376 = vmul.f32 %v312, %v184
  %v377 = vmul.f32 %v313, %v185
  %v378 = vmul.f32 %v314, %v186
  %v379 = vmul.f32 %v315, %v187
  %v380 = vmul.f32 %v316, %v188
  %v381 = vmul.f32 %v317, %v189
  %v382 = vmul.f32 %v318, %v190
  %v383 = vmul.f32 %v319, %v191
  %v384 = vmul.f32 %v320, %v192
  %v385 = vmul.f32 %v321, %v193
  %v386 = vmul.f32 %v322, %v194
  %v387 = vmul.f32 %v323, %v195
  %v388 = vmul.f32 %v324, %v196
  %v389 = vmul.f32 %v325, %v197
  %v390 = vmul.f32 %v326, %v198
  %v391 = vmul.f32 %v327, %v199
  %v392 = vmul.f32 %v328, %v200
  %v393 = vmul.f32 %v329, %v201
  %v394 = vmul.f32 %v330, %v202
  %v395 = vmul.f32 %v331, %v203
  %v396 = vmul.f32 %v332, %v204
  %v397 = vmul.f32 %v333, %v205
  %v398 = vmul.f32 %v334, %v206
  %v399 = vmul.f32 %v335, %v207
  %v400 = vmul.f32 %v336, %v208
  %v401 = vmul.f32 %v337, %v209
  %v402 = vmul.f32 %v338, %v210
  %v403 = vmul.f32 %v339, %v211
  %v404 = vmul.f32 %v340, %v212
  %v405 = vmul.f32 %v341, %v213
  %v406 = vmul.f32 %v342, %v150
  %v407 = vmul.f32 %v343, %v151
  %v408 = vmul.f32 %v344, %v152
  %v409 = vmul.f32 %v345, %v153
  %v410 = vmul.f32 %v346, %v154
  %v411 = vmul.f32 %v347, %v155
  %v412 = vmul.f32 %v348, %v156
  %v413 = vmul.f32 %v349, %v157
  %v414 = vmul.f32 %v350, %v158
  %v415 = vmul.f32 %v351, %v159
  %v416 = vmul.f32 %v352, %v160
  %v417 = vmul.f32 %v353, %v161
  %v418 = vmul.f32 %v354, %v162
  %v419 = vmul.f32 %v355, %v163
  %v420 = vmul.f32 %v356, %v164
  %v421 = vmul.f32 %v357, %v165
  %v422 = vmul.f32 %v358, %v166
  %v423 = vmul.f32 %v359, %v167
  %v424 = vmul.f32 %v360, %v168
  %v425 = vmul.f32 %v361, %v169
  %v426 = vmul.f32 %v362, %v170
  %v427 = vmul.f32 %v363, %v171
  %v428 = vmul.f32 %v364, %v172
  %v429 = vmul.f32 %v365, %v173
  %v430 = vmul.f32 %v366, %v174
  %v431 = vmul.f32 %v367, %v175
  %v432 = vmul.f32 %v368, %v176
  %v433 = vmul.f32 %v369, %v177
  %v434 = vmul.f32 %v370, %v178
  %v435 = vmul.f32 %v371, %v179
  %v436 = vmul.f32 %v372, %v180
  %v437 = vmul.f32 %v373, %v181
  %v438 = vmul.f32 %v374, %v182
  %v439 = vmul.f32 %v375, %v183
  %v440 = vmul.f32 %v376, %v184
  %v441 = vmul.f32 %v377, %v185
  %v442 = vmul.f32 %v378, %v186
  %v443 = vmul.f32 %v379, %v187
  %v444 = vmul.f32 %v380, %v188
  %v445 = vmul.f32 %v381, %v189
  %v446 = vmul.f32 %v382, %v190
  %v447 = vmul.f32 %v383, %v191
  %v448 = vmul.f32 %v384, %v192
  %v449 = vmul.f32 %v385, %v193
  %v450 = vmul.f32 %v386, %v194
  %v451 = vmul.f32 %v387, %v195
  %v452 = vmul.f32 %v388, %v196
  %v453 = vmul.f32 %v389, %v197
  %v454 = vmul.f32 %v390, %v198
  %v455 = vmul.f32 %v391, %v199
  %v456 = vmul.f32 %v392, %v200
  %v457 = vmul.f32 %v393, %v201
  %v458 = vmul.f32 %v394, %v202
  %v459 = vmul.f32 %v395, %v203
  %v460 = vmul.f32 %v396, %v204
  %v461 = vmul.f32 %v397, %v205
  %v462 = vmul.f32 %v398, %v206
  %v463 = vmul.f32 %v399, %v207
  %v464 = vmul.f32 %v400, %v208
  %v465 = vmul.f32 %v401, %v209
  %v466 = vmul.f32 %v402, %v210
  %v467 = vmul.f32 %v403, %v211
  %v468 = vmul.f32 %v404, %v212
  %v469 = vmul.f32 %v405, %v213
  %v470 = vadd.f32 %v150, %v406
  %v471 = vadd.f32 %v151, %v407
  %v472 = vadd.f32 %v152, %v408
  %v473 = vadd.f32 %v153, %v409
  %v474 = vadd.f32 %v154, %v410
  %v475 = vadd.f32 %v155, %v411
  %v476 = vadd.f32 %v156, %v412
  %v477 = vadd.f32 %v157, %v413
  %v478 = vadd.f32 %v158, %v414
  %v479 = vadd.f32 %v159, %v415
  %v480 = vadd.f32 %v160, %v416
  %v481 = vadd.f32 %v161, %v417
  %v482 = vadd.f32 %v162, %v418
  %v483 = vadd.f32 %v163, %v419
  %v484 = vadd.f32 %v164, %v420
  %v485 = vadd.f32 %v165, %v421
  %v486 = vadd.f32 %v166, %v422
  %v487 = vadd.f32 %v167, %v423
  %v488 = vadd.f32 %v168, %v424
  %v489 = vadd.f32 %v169, %v425
  %v490 = vadd.f32 %v170, %v426
  %v491 = vadd.f32 %v171, %v427
  %v492 = vadd.f32 %v172, %v428
  %v493 = vadd.f32 %v173, %v429
  %v494 = vadd.f32 %v174, %v430
  %v495 = vadd.f32 %v175, %v431
  %v496 = vadd.f32 %v176, %v432
  %v497 = vadd.f32 %v177, %v433
  %v498 = vadd.f32 %v178, %v434
  %v499 = vadd.f32 %v179, %v435
  %v500 = vadd.f32 %v180, %v436
  %v501 = vadd.f32 %v181, %v437
  %v502 = vadd.f32 %v182, %v438
  %v503 = vadd.f32 %v183, %v439
  %v504 = vadd.f32 %v184, %v440
  %v505 = vadd.f32 %v185, %v441
  %v506 = vadd.f32 %v186, %v442
  %v507 = vadd.f32 %v187, %v443
  %v508 = vadd.f32 %v188, %v444
  %v509 = vadd.f32 %v189, %v445
  %v510 = vadd.f32 %v190, %v446
  %v511 = vadd.f32 %v191, %v447
  %v512 = vadd.f32 %v192, %v448
  %v513 = vadd.f32 %v193, %v449
  %v514 = vadd.f32 %v194, %v450
  %v515 = vadd.f32 %v195, %v451
  %v516 = vadd.f32 %v196, %v452
  %v517 = vadd.f32 %v197, %v453
  %v518 = vadd.f32 %v198, %v454
  %v519 = vadd.f32 %v199, %v455
  %v520 = vadd.f32 %v200, %v456
  %v521 = vadd.f32 %v201, %v457
  %v522 = vadd.f32 %v202, %v458
  %v523 = vadd.f32 %v203, %v459
  %v524 = vadd.f32 %v204, %v460
  %v525 = vadd.f32 %v205, %v461
  %v526 = vadd.f32 %v206, %v462
  %v527 = vadd.f32 %v207, %v463
  %v528 = vadd.f32 %v208, %v464
  %v529 = vadd.f32 %v209, %v465
  %v530 = vadd.f32 %v210, %v466
  %v531 = vadd.f32 %v211, %v467
  %v532 = vadd.f32 %v212, %v468
  %v533 = vadd.f32 %v213, %v469
  %v534 = vmul.f32 %v470, 0.7978846
  %v535 = vmul.f32 %v471, 0.7978846
  %v536 = vmul.f32 %v472, 0.7978846
  %v537 = vmul.f32 %v473, 0.7978846
  %v538 = vmul.f32 %v474, 0.7978846
  %v539 = vmul.f32 %v475, 0.7978846
  %v540 = vmul.f32 %v476, 0.7978846
  %v541 = vmul.f32 %v477, 0.7978846
  %v542 = vmul.f32 %v478, 0.7978846
  %v543 = vmul.f32 %v479, 0.7978846
  %v544 = vmul.f32 %v480, 0.7978846
  %v545 = vmul.f32 %v481, 0.7978846
  %v546 = vmul.f32 %v482, 0.7978846
  %v547 = vmul.f32 %v483, 0.7978846
  %v548 = vmul.f32 %v484, 0.7978846
  %v549 = vmul.f32 %v485, 0.7978846
  %v550 = vmul.f32 %v486, 0.7978846
  %v551 = vmul.f32 %v487, 0.7978846
  %v552 = vmul.f32 %v488, 0.7978846
  %v553 = vmul.f32 %v489, 0.7978846
  %v554 = vmul.f32 %v490, 0.7978846
  %v555 = vmul.f32 %v491, 0.7978846
  %v556 = vmul.f32 %v492, 0.7978846
  %v557 = vmul.f32 %v493, 0.7978846
  %v558 = vmul.f32 %v494, 0.7978846
  %v559 = vmul.f32 %v495, 0.7978846
  %v560 = vmul.f32 %v496, 0.7978846
  %v561 = vmul.f32 %v497, 0.7978846
  %v562 = vmul.f32 %v498, 0.7978846
  %v563 = vmul.f32 %v499, 0.7978846
  %v564 = vmul.f32 %v500, 0.7978846
  %v565 = vmul.f32 %v501, 0.7978846
  %v566 = vmul.f32 %v502, 0.7978846
  %v567 = vmul.f32 %v503, 0.7978846
  %v568 = vmul.f32 %v504, 0.7978846
  %v569 = vmul.f32 %v505, 0.7978846
  %v570 = vmul.f32 %v506, 0.7978846
  %v571 = vmul.f32 %v507, 0.7978846
  %v572 = vmul.f32 %v508, 0.7978846
  %v573 = vmul.f32 %v509, 0.7978846
  %v574 = vmul.f32 %v510, 0.7978846
  %v575 = vmul.f32 %v511, 0.7978846
  %v576 = vmul.f32 %v512, 0.7978846
  %v577 = vmul.f32 %v513, 0.7978846
  %v578 = vmul.f32 %v514, 0.7978846
  %v579 = vmul.f32 %v515, 0.7978846
  %v580 = vmul.f32 %v516, 0.7978846
  %v581 = vmul.f32 %v517, 0.7978846
  %v582 = vmul.f32 %v518, 0.7978846
  %v583 = vmul.f32 %v519, 0.7978846
  %v584 = vmul.f32 %v520, 0.7978846
  %v585 = vmul.f32 %v521, 0.7978846
  %v586 = vmul.f32 %v522, 0.7978846
  %v587 = vmul.f32 %v523, 0.7978846
  %v588 = vmul.f32 %v524, 0.7978846
  %v589 = vmul.f32 %v525, 0.7978846
  %v590 = vmul.f32 %v526, 0.7978846
  %v591 = vmul.f32 %v527, 0.7978846
  %v592 = vmul.f32 %v528, 0.7978846
  %v593 = vmul.f32 %v529, 0.7978846
  %v594 = vmul.f32 %v530, 0.7978846
  %v595 = vmul.f32 %v531, 0.7978846
  %v596 = vmul.f32 %v532, 0.7978846
  %v597 = vmul.f32 %v533, 0.7978846
  %v598 = vtanh.pop %v534
  %v599 = vtanh.pop %v535
  %v600 = vtanh.pop %v536
  %v601 = vtanh.pop %v537
  %v602 = vtanh.pop %v538
  %v603 = vtanh.pop %v539
  %v604 = vtanh.pop %v540
  %v605 = vtanh.pop %v541
  %v606 = vtanh.pop %v542
  %v607 = vtanh.pop %v543
  %v608 = vtanh.pop %v544
  %v609 = vtanh.pop %v545
  %v610 = vtanh.pop %v546
  %v611 = vtanh.pop %v547
  %v612 = vtanh.pop %v548
  %v613 = vtanh.pop %v549
  %v614 = vtanh.pop %v550
  %v615 = vtanh.pop %v551
  %v616 = vtanh.pop %v552
  %v617 = vtanh.pop %v553
  %v618 = vtanh.pop %v554
  %v619 = vtanh.pop %v555
  %v620 = vtanh.pop %v556
  %v621 = vtanh.pop %v557
  %v622 = vtanh.pop %v558
  %v623 = vtanh.pop %v559
  %v624 = vtanh.pop %v560
  %v625 = vtanh.pop %v561
  %v626 = vtanh.pop %v562
  %v627 = vtanh.pop %v563
  %v628 = vtanh.pop %v564
  %v629 = vtanh.pop %v565
  %v630 = vtanh.pop %v566
  %v631 = vtanh.pop %v567
  %v632 = vtanh.pop %v568
  %v633 = vtanh.pop %v569
  %v634 = vtanh.pop %v570
  %v635 = vtanh.pop %v571
  %v636 = vtanh.pop %v572
  %v637 = vtanh.pop %v573
  %v638 = vtanh.pop %v574
  %v639 = vtanh.pop %v575
  %v640 = vtanh.pop %v576
  %v641 = vtanh.pop %v577
  %v642 = vtanh.pop %v578
  %v643 = vtanh.pop %v579
  %v644 = vtanh.pop %v580
  %v645 = vtanh.pop %v581
  %v646 = vtanh.pop %v582
  %v647 = vtanh.pop %v583
  %v648 = vtanh.pop %v584
  %v649 = vtanh.pop %v585
  %v650 = vtanh.pop %v586
  %v651 = vtanh.pop %v587
  %v652 = vtanh.pop %v588
  %v653 = vtanh.pop %v589
  %v654 = vtanh.pop %v590
  %v655 = vtanh.pop %v591
  %v656 = vtanh.pop %v592
  %v657 = vtanh.pop %v593
  %v658 = vtanh.pop %v594
  %v659 = vtanh.pop %v595
  %v660 = vtanh.pop %v596
  %v661 = vtanh.pop %v597
  %v662 = vadd.f32 %v598, 1.0
  %v663 = vadd.f32 %v599, 1.0
  %v664 = vadd.f32 %v600, 1.0
  %v665 = vadd.f32 %v601, 1.0
  %v666 = vadd.f32 %v602, 1.0
  %v667 = vadd.f32 %v603, 1.0
  %v668 = vadd.f32 %v604, 1.0
  %v669 = vadd.f32 %v605, 1.0
  %v670 = vadd.f32 %v606, 1.0
  %v671 = vadd.f32 %v607, 1.0
  %v672 = vadd.f32 %v608, 1.0
  %v673 = vadd.f32 %v609, 1.0
  %v674 = vadd.f32 %v610, 1.0
  %v675 = vadd.f32 %v611, 1.0
  %v676 = vadd.f32 %v612, 1.0
  %v677 = vadd.f32 %v613, 1.0
  %v678 = vadd.f32 %v614, 1.0
  %v679 = vadd.f32 %v615, 1.0
  %v680 = vadd.f32 %v616, 1.0
  %v681 = vadd.f32 %v617, 1.0
  %v682 = vadd.f32 %v618, 1.0
  %v683 = vadd.f32 %v619, 1.0
  %v684 = vadd.f32 %v620, 1.0
  %v685 = vadd.f32 %v621, 1.0
  %v686 = vadd.f32 %v622, 1.0
  %v687 = vadd.f32 %v623, 1.0
  %v688 = vadd.f32 %v624, 1.0
  %v689 = vadd.f32 %v625, 1.0
  %v690 = vadd.f32 %v626, 1.0
  %v691 = vadd.f32 %v627, 1.0
  %v692 = vadd.f32 %v628, 1.0
  %v693 = vadd.f32 %v629, 1.0
  %v694 = vadd.f32 %v630, 1.0
  %v695 = vadd.f32 %v631, 1.0
  %v696 = vadd.f32 %v632, 1.0
  %v697 = vadd.f32 %v633, 1.0
  %v698 = vadd.f32 %v634, 1.0
  %v699 = vadd.f32 %v635, 1.0
  %v700 = vadd.f32 %v636, 1.0
  %v701 = vadd.f32 %v637, 1.0
  %v702 = vadd.f32 %v638, 1.0
  %v703 = vadd.f32 %v639, 1.0
  %v704 = vadd.f32 %v640, 1.0
  %v705 = vadd.f32 %v641, 1.0
  %v706 = vadd.f32 %v642, 1.0
  %v707 = vadd.f32 %v643, 1.0
  %v708 = vadd.f32 %v644, 1.0
  %v709 = vadd.f32 %v645, 1.0
  %v710 = vadd.f32 %v646, 1.0
  %v711 = vadd.f32 %v647, 1.0
  %v712 = vadd.f32 %v648, 1.0
  %v713 = vadd.f32 %v649, 1.0
  %v714 = vadd.f32 %v650, 1.0
  %v715 = vadd.f32 %v651, 1.0
  %v716 = vadd.f32 %v652, 1.0
  %v717 = vadd.f32 %v653, 1.0
  %v718 = vadd.f32 %v654, 1.0
  %v719 = vadd.f32 %v655, 1.0
  %v720 = vadd.f32 %v656, 1.0
  %v721 = vadd.f32 %v657, 1.0
  %v722 = vadd.f32 %v658, 1.0
  %v723 = vadd.f32 %v659, 1.0
  %v724 = vadd.f32 %v660, 1.0
  %v725 = vadd.f32 %v661, 1.0
  %v726 = vmul.f32 %v214, %v662
  %v727 = vmul.f32 %v215, %v663
  %v728 = vmul.f32 %v216, %v664
  %v729 = vmul.f32 %v217, %v665
  %v730 = vmul.f32 %v218, %v666
  %v731 = vmul.f32 %v219, %v667
  %v732 = vmul.f32 %v220, %v668
  %v733 = vmul.f32 %v221, %v669
  %v734 = vmul.f32 %v222, %v670
  %v735 = vmul.f32 %v223, %v671
  %v736 = vmul.f32 %v224, %v672
  %v737 = vmul.f32 %v225, %v673
  %v738 = vmul.f32 %v226, %v674
  %v739 = vmul.f32 %v227, %v675
  %v740 = vmul.f32 %v228, %v676
  %v741 = vmul.f32 %v229, %v677
  %v742 = vmul.f32 %v230, %v678
  %v743 = vmul.f32 %v231, %v679
  %v744 = vmul.f32 %v232, %v680
  %v745 = vmul.f32 %v233, %v681
  %v746 = vmul.f32 %v234, %v682
  %v747 = vmul.f32 %v235, %v683
  %v748 = vmul.f32 %v236, %v684
  %v749 = vmul.f32 %v237, %v685
  %v750 = vmul.f32 %v238, %v686
  %v751 = vmul.f32 %v239, %v687
  %v752 = vmul.f32 %v240, %v688
  %v753 = vmul.f32 %v241, %v689
  %v754 = vmul.f32 %v242, %v690
  %v755 = vmul.f32 %v243, %v691
  %v756 = vmul.f32 %v244, %v692
  %v757 = vmul.f32 %v245, %v693
  %v758 = vmul.f32 %v246, %v694
  %v759 = vmul.f32 %v247, %v695
  %v760 = vmul.f32 %v248, %v696
  %v761 = vmul.f32 %v249, %v697
  %v762 = vmul.f32 %v250, %v698
  %v763 = vmul.f32 %v251, %v699
  %v764 = vmul.f32 %v252, %v700
  %v765 = vmul.f32 %v253, %v701
  %v766 = vmul.f32 %v254, %v702
  %v767 = vmul.f32 %v255, %v703
  %v768 = vmul.f32 %v256, %v704
  %v769 = vmul.f32 %v257, %v705
  %v770 = vmul.f32 %v258, %v706
  %v771 = vmul.f32 %v259, %v707
  %v772 = vmul.f32 %v260, %v708
  %v773 = vmul.f32 %v261, %v709
  %v774 = vmul.f32 %v262, %v710
  %v775 = vmul.f32 %v263, %v711
  %v776 = vmul.f32 %v264, %v712
  %v777 = vmul.f32 %v265, %v713
  %v778 = vmul.f32 %v266, %v714
  %v779 = vmul.f32 %v267, %v715
  %v780 = vmul.f32 %v268, %v716
  %v781 = vmul.f32 %v269, %v717
  %v782 = vmul.f32 %v270, %v718
  %v783 = vmul.f32 %v271, %v719
  %v784 = vmul.f32 %v272, %v720
  %v785 = vmul.f32 %v273, %v721
  %v786 = vmul.f32 %v274, %v722
  %v787 = vmul.f32 %v275, %v723
  %v788 = vmul.f32 %v276, %v724
  %v789 = vmul.f32 %v277, %v725
  %790 = vst [vmem:[%s3] sm:$0xff] %v726
  %791 = vst [vmem:[%s3 + $0x8] sm:$0xff] %v727
  %792 = vst [vmem:[%s3 + $0x10] sm:$0xff] %v728
  %793 = vst [vmem:[%s3 + $0x18] sm:$0xff] %v729
  %794 = vst [vmem:[%s3 + $0x20] sm:$0xff] %v730
  %795 = vst [vmem:[%s3 + $0x28] sm:$0xff] %v731
  %796 = vst [vmem:[%s3 + $0x30] sm:$0xff] %v732
  %797 = vst [vmem:[%s3 + $0x38] sm:$0xff] %v733
  %798 = vst [vmem:[%s3 + $0x40] sm:$0xff] %v734
  %799 = vst [vmem:[%s3 + $0x48] sm:$0xff] %v735
  %800 = vst [vmem:[%s3 + $0x50] sm:$0xff] %v736
  %801 = vst [vmem:[%s3 + $0x58] sm:$0xff] %v737
  %802 = vst [vmem:[%s3 + $0x60] sm:$0xff] %v738
  %803 = vst [vmem:[%s3 + $0x68] sm:$0xff] %v739
  %804 = vst [vmem:[%s3 + $0x70] sm:$0xff] %v740
  %805 = vst [vmem:[%s3 + $0x78] sm:$0xff] %v741
  %806 = vst [vmem:[%s3 + $0x80] sm:$0xff] %v742
  %807 = vst [vmem:[%s3 + $0x88] sm:$0xff] %v743
  %808 = vst [vmem:[%s3 + $0x90] sm:$0xff] %v744
  %809 = vst [vmem:[%s3 + $0x98] sm:$0xff] %v745
  %810 = vst [vmem:[%s3 + $0xa0] sm:$0xff] %v746
  %811 = vst [vmem:[%s3 + $0xa8] sm:$0xff] %v747
  %812 = vst [vmem:[%s3 + $0xb0] sm:$0xff] %v748
  %813 = vst [vmem:[%s3 + $0xb8] sm:$0xff] %v749
  %814 = vst [vmem:[%s3 + $0xc0] sm:$0xff] %v750
  %815 = vst [vmem:[%s3 + $0xc8] sm:$0xff] %v751
  %816 = vst [vmem:[%s3 + $0xd0] sm:$0xff] %v752
  %817 = vst [vmem:[%s3 + $0xd8] sm:$0xff] %v753
  %818 = vst [vmem:[%s3 + $0xe0] sm:$0xff] %v754
  %819 = vst [vmem:[%s3 + $0xe8] sm:$0xff] %v755
  %820 = vst [vmem:[%s3 + $0xf0] sm:$0xff] %v756
  %821 = vst [vmem:[%s3 + $0xf8] sm:$0xff] %v757
  %822 = vst [vmem:[%s3 + $0x100] sm:$0xff] %v758
  %823 = vst [vmem:[%s3 + $0x108] sm:$0xff] %v759
  %824 = vst [vmem:[%s3 + $0x110] sm:$0xff] %v760
  %825 = vst [vmem:[%s3 + $0x118] sm:$0xff] %v761
  %826 = vst [vmem:[%s3 + $0x120] sm:$0xff] %v762
  %827 = vst [vmem:[%s3 + $0x128] sm:$0xff] %v763
  %828 = vst [vmem:[%s3 + $0x130] sm:$0xff] %v764
  %829 = vst [vmem:[%s3 + $0x138] sm:$0xff] %v765
  %830 = vst [vmem:[%s3 + $0x140] sm:$0xff] %v766
  %831 = vst [vmem:[%s3 + $0x148] sm:$0xff] %v767
  %832 = vst [vmem:[%s3 + $0x150] sm:$0xff] %v768
  %833 = vst [vmem:[%s3 + $0x158] sm:$0xff] %v769
  %834 = vst [vmem:[%s3 + $0x160] sm:$0xff] %v770
  %835 = vst [vmem:[%s3 + $0x168] sm:$0xff] %v771
  %836 = vst [vmem:[%s3 + $0x170] sm:$0xff] %v772
  %837 = vst [vmem:[%s3 + $0x178] sm:$0xff] %v773
  %838 = vst [vmem:[%s3 + $0x180] sm:$0xff] %v774
  %839 = vst [vmem:[%s3 + $0x188] sm:$0xff] %v775
  %840 = vst [vmem:[%s3 + $0x190] sm:$0xff] %v776
  %841 = vst [vmem:[%s3 + $0x198] sm:$0xff] %v777
  %842 = vst [vmem:[%s3 + $0x1a0] sm:$0xff] %v778
  %843 = vst [vmem:[%s3 + $0x1a8] sm:$0xff] %v779
  %844 = vst [vmem:[%s3 + $0x1b0] sm:$0xff] %v780
  %845 = vst [vmem:[%s3 + $0x1b8] sm:$0xff] %v781
  %846 = vst [vmem:[%s3 + $0x1c0] sm:$0xff] %v782
  %847 = vst [vmem:[%s3 + $0x1c8] sm:$0xff] %v783
  %848 = vst [vmem:[%s3 + $0x1d0] sm:$0xff] %v784
  %849 = vst [vmem:[%s3 + $0x1d8] sm:$0xff] %v785
  %850 = vst [vmem:[%s3 + $0x1e0] sm:$0xff] %v786
  %851 = vst [vmem:[%s3 + $0x1e8] sm:$0xff] %v787
  %852 = vst [vmem:[%s3 + $0x1f0] sm:$0xff] %v788
  %853 = vst [vmem:[%s3 + $0x1f8] sm:$0xff] %v789
  // Predicated region
  $region14: #{dft_forward.5} parent=0 // pred_check
    _
  $region15: #{dft_forward.5} parent=0 // pred_check_branch
    %855 = sbr.rel (0) target = $region17
  $region16: #{dft_forward.5} parent=0 // pred_region
    _
  $region17: #{dft_forward.5} parent=0 // pred_fallthru
    _
  // Predicated region
  $region18: #{dft_forward.5} parent=0 // pred_check
    _
  $region19: #{dft_forward.5} parent=0 // pred_check_branch
    %857 = sbr.rel (0) target = $region21
  $region20: #{dft_forward.5} parent=0 // pred_region
    _
  $region21: #{dft_forward.5} parent=0 // pred_fallthru
    _

// kernel: dft_forward.4
$region0: #{dft_forward.4}
  #allocation0 [shape = 'u32[]', space=smem, size = 0x4, offset = 0x4, fixed_abs, tag = 'smem constant byte address 0x4 - core index']
  #allocation1 [shape = 'u32[72,128]{1,0:T(1,128)}', space=vmem, size = 0x9000, scoped, tag = 'internal scratch']
  %s0 = inlined_call_operand.vmem [shape: bf16[512,36], index: 0, kind: input, shape index: {}]
  %s1 = inlined_call_operand.vmem [shape: bf16[36,128], index: 1, kind: input, shape index: {}]
  %s2 = inlined_call_operand.vmem [shape: f32[1,128], index: 2, kind: input, shape index: {}]
  %s3 = inlined_call_operand.vmem [shape: f32[512,128], index: 3, kind: output, shape index: {0}]
  %s4 = inlined_call_operand.vmem [shape: f32[8,128], index: 4, kind: output, shape index: {1}]
  %s5 = inlined_call_operand.vmem [shape: f32[8,128], index: 5, kind: output, shape index: {2}]
  %6 = xla_tuple %s3, %s4, %s5
  %s7 = sld [smem:[#allocation0]]
  $region38: #{dft_forward.4} parent=0
    _
  %s9 = ssub.s32 1, %s7
  %s10 = scalar_select 0, %s9, %s7
  // Predicated region
  $region2: #{dft_forward.4} parent=0 // pred_check
    _
  $region3: #{dft_forward.4} parent=0 // pred_check_branch
    %12 = sbr.rel (0) target = $region5
  $region4: #{dft_forward.4} parent=0 // pred_region
    _
  $region5: #{dft_forward.4} parent=0 // pred_fallthru
    _
  // Predicated region
  $region6: #{dft_forward.4} parent=0 // pred_check
    _
  $region7: #{dft_forward.4} parent=0 // pred_check_branch
    %14 = sbr.rel (0) target = $region9
  $region8: #{dft_forward.4} parent=0 // pred_region
    _
  $region9: #{dft_forward.4} parent=0 // pred_fallthru
    _
  // Predicated region
  $region10: #{dft_forward.4} parent=0 // pred_check
    _
  $region11: #{dft_forward.4} parent=0 // pred_check_branch
    %16 = sbr.rel (0) target = $region13
  $region12: #{dft_forward.4} parent=0 // pred_region
    _
  $region13: #{dft_forward.4} parent=0 // pred_fallthru
    _
  %v18 = vld [vmem:[%s0] sm:$0xf]
  %v19 = vld [vmem:[%s0 + $0x4] sm:$0xf]
  %v20 = vld [vmem:[%s0 + $0x8] sm:$0xf]
  %v21 = vld [vmem:[%s0 + $0xc] sm:$0xf]
  %v22 = vld [vmem:[%s0 + $0x10] sm:$0xf]
  %v23 = vld [vmem:[%s0 + $0x14] sm:$0xf]
  %v24 = vld [vmem:[%s0 + $0x18] sm:$0xf]
  %v25 = vld [vmem:[%s0 + $0x1c] sm:$0xf]
  %v26 = vld [vmem:[%s0 + $0x20] sm:$0xf]
  %v27 = vld [vmem:[%s0 + $0x24] sm:$0xf]
  %v28 = vld [vmem:[%s0 + $0x28] sm:$0xf]
  %v29 = vld [vmem:[%s0 + $0x2c] sm:$0xf]
  %v30 = vld [vmem:[%s0 + $0x30] sm:$0xf]
  %v31 = vld [vmem:[%s0 + $0x34] sm:$0xf]
  %v32 = vld [vmem:[%s0 + $0x38] sm:$0xf]
  %v33 = vld [vmem:[%s0 + $0x3c] sm:$0xf]
  %v34 = vld [vmem:[%s0 + $0x40] sm:$0xf]
  %v35 = vld [vmem:[%s0 + $0x44] sm:$0xf]
  %v36 = vld [vmem:[%s0 + $0x48] sm:$0xf]
  %v37 = vld [vmem:[%s0 + $0x4c] sm:$0xf]
  %v38 = vld [vmem:[%s0 + $0x50] sm:$0xf]
  %v39 = vld [vmem:[%s0 + $0x54] sm:$0xf]
  %v40 = vld [vmem:[%s0 + $0x58] sm:$0xf]
  %v41 = vld [vmem:[%s0 + $0x5c] sm:$0xf]
  %v42 = vld [vmem:[%s0 + $0x60] sm:$0xf]
  %v43 = vld [vmem:[%s0 + $0x64] sm:$0xf]
  %v44 = vld [vmem:[%s0 + $0x68] sm:$0xf]
  %v45 = vld [vmem:[%s0 + $0x6c] sm:$0xf]
  %v46 = vld [vmem:[%s0 + $0x70] sm:$0xf]
  %v47 = vld [vmem:[%s0 + $0x74] sm:$0xf]
  %v48 = vld [vmem:[%s0 + $0x78] sm:$0xf]
  %v49 = vld [vmem:[%s0 + $0x7c] sm:$0xf]
  %v50 = vld [vmem:[%s0 + $0x80] sm:$0xf]
  %v51 = vld [vmem:[%s0 + $0x84] sm:$0xf]
  %v52 = vld [vmem:[%s0 + $0x88] sm:$0xf]
  %v53 = vld [vmem:[%s0 + $0x8c] sm:$0xf]
  %v54 = vld [vmem:[%s0 + $0x90] sm:$0xf]
  %v55 = vld [vmem:[%s0 + $0x94] sm:$0xf]
  %v56 = vld [vmem:[%s0 + $0x98] sm:$0xf]
  %v57 = vld [vmem:[%s0 + $0x9c] sm:$0xf]
  %v58 = vld [vmem:[%s0 + $0xa0] sm:$0xf]
  %v59 = vld [vmem:[%s0 + $0xa4] sm:$0xf]
  %v60 = vld [vmem:[%s0 + $0xa8] sm:$0xf]
  %v61 = vld [vmem:[%s0 + $0xac] sm:$0xf]
  %v62 = vld [vmem:[%s0 + $0xb0] sm:$0xf]
  %v63 = vld [vmem:[%s0 + $0xb4] sm:$0xf]
  %v64 = vld [vmem:[%s0 + $0xb8] sm:$0xf]
  %v65 = vld [vmem:[%s0 + $0xbc] sm:$0xf]
  %v66 = vld [vmem:[%s0 + $0xc0] sm:$0xf]
  %v67 = vld [vmem:[%s0 + $0xc4] sm:$0xf]
  %v68 = vld [vmem:[%s0 + $0xc8] sm:$0xf]
  %v69 = vld [vmem:[%s0 + $0xcc] sm:$0xf]
  %v70 = vld [vmem:[%s0 + $0xd0] sm:$0xf]
  %v71 = vld [vmem:[%s0 + $0xd4] sm:$0xf]
  %v72 = vld [vmem:[%s0 + $0xd8] sm:$0xf]
  %v73 = vld [vmem:[%s0 + $0xdc] sm:$0xf]
  %v74 = vld [vmem:[%s0 + $0xe0] sm:$0xf]
  %v75 = vld [vmem:[%s0 + $0xe4] sm:$0xf]
  %v76 = vld [vmem:[%s0 + $0xe8] sm:$0xf]
  %v77 = vld [vmem:[%s0 + $0xec] sm:$0xf]
  %v78 = vld [vmem:[%s0 + $0xf0] sm:$0xf]
  %v79 = vld [vmem:[%s0 + $0xf4] sm:$0xf]
  %v80 = vld [vmem:[%s0 + $0xf8] sm:$0xf]
  %v81 = vld [vmem:[%s0 + $0xfc] sm:$0xf]
  %v82 = vld [vmem:[%s1] sm:$0xf]
  %v83 = vld [vmem:[%s1 + $0x4] sm:$0xf]
  %v84 = vld [vmem:[%s1 + $0x8] sm:$0xf]
  %v85 = vld [vmem:[%s1 + $0xc] sm:$0xf]
  %v86 = vld [vmem:[%s1 + $0x10] sm:$0x3]
  %v87 = vld [vmem:[%s2] sm:$0x1]
  %v89 = vperm.slane %v87, 0
  %v155 = vunpack.c.l.b16 %v18
  %v156 = vunpack.c.l.b16 %v19
  %v157 = vunpack.c.l.b16 %v20
  %v158 = vunpack.c.l.b16 %v21
  %v159 = vunpack.c.l.b16 %v22
  %v160 = vunpack.c.l.b16 %v23
  %v161 = vunpack.c.l.b16 %v24
  %v162 = vunpack.c.l.b16 %v25
  %v163 = vunpack.c.l.b16 %v26
  %v164 = vunpack.c.l.b16 %v27
  %v165 = vunpack.c.l.b16 %v28
  %v166 = vunpack.c.l.b16 %v29
  %v167 = vunpack.c.l.b16 %v30
  %v168 = vunpack.c.l.b16 %v31
  %v169 = vunpack.c.l.b16 %v32
  %v170 = vunpack.c.l.b16 %v33
  %v171 = vunpack.c.l.b16 %v34
  %v172 = vunpack.c.l.b16 %v35
  %v173 = vunpack.c.l.b16 %v36
  %v174 = vunpack.c.l.b16 %v37
  %v175 = vunpack.c.l.b16 %v38
  %v176 = vunpack.c.l.b16 %v39
  %v177 = vunpack.c.l.b16 %v40
  %v178 = vunpack.c.l.b16 %v41
  %v179 = vunpack.c.l.b16 %v42
  %v180 = vunpack.c.l.b16 %v43
  %v181 = vunpack.c.l.b16 %v44
  %v182 = vunpack.c.l.b16 %v45
  %v183 = vunpack.c.l.b16 %v46
  %v184 = vunpack.c.l.b16 %v47
  %v185 = vunpack.c.l.b16 %v48
  %v186 = vunpack.c.l.b16 %v49
  %v187 = vunpack.c.l.b16 %v50
  %v188 = vunpack.c.l.b16 %v51
  %v189 = vunpack.c.l.b16 %v52
  %v190 = vunpack.c.l.b16 %v53
  %v191 = vunpack.c.l.b16 %v54
  %v192 = vunpack.c.l.b16 %v55
  %v193 = vunpack.c.l.b16 %v56
  %v194 = vunpack.c.l.b16 %v57
  %v195 = vunpack.c.l.b16 %v58
  %v196 = vunpack.c.l.b16 %v59
  %v197 = vunpack.c.l.b16 %v60
  %v198 = vunpack.c.l.b16 %v61
  %v199 = vunpack.c.l.b16 %v62
  %v200 = vunpack.c.l.b16 %v63
  %v201 = vunpack.c.l.b16 %v64
  %v202 = vunpack.c.l.b16 %v65
  %v203 = vunpack.c.l.b16 %v66
  %v204 = vunpack.c.l.b16 %v67
  %v205 = vunpack.c.l.b16 %v68
  %v206 = vunpack.c.l.b16 %v69
  %v207 = vunpack.c.l.b16 %v70
  %v208 = vunpack.c.l.b16 %v71
  %v209 = vunpack.c.l.b16 %v72
  %v210 = vunpack.c.l.b16 %v73
  %v211 = vunpack.c.l.b16 %v74
  %v212 = vunpack.c.l.b16 %v75
  %v213 = vunpack.c.l.b16 %v76
  %v214 = vunpack.c.l.b16 %v77
  %v215 = vunpack.c.l.b16 %v78
  %v216 = vunpack.c.l.b16 %v79
  %v217 = vunpack.c.l.b16 %v80
  %v218 = vunpack.c.l.b16 %v81
  %v219 = vpack.c.b16 %v156, %v155
  %v220 = vpack.c.b16 %v158, %v157
  %v221 = vpack.c.b16 %v160, %v159
  %v222 = vpack.c.b16 %v162, %v161
  %v223 = vpack.c.b16 %v164, %v163
  %v224 = vpack.c.b16 %v166, %v165
  %v225 = vpack.c.b16 %v168, %v167
  %v226 = vpack.c.b16 %v170, %v169
  %v227 = vpack.c.b16 %v172, %v171
  %v228 = vpack.c.b16 %v174, %v173
  %v229 = vpack.c.b16 %v176, %v175
  %v230 = vpack.c.b16 %v178, %v177
  %v231 = vpack.c.b16 %v180, %v179
  %v232 = vpack.c.b16 %v182, %v181
  %v233 = vpack.c.b16 %v184, %v183
  %v234 = vpack.c.b16 %v186, %v185
  %v235 = vpack.c.b16 %v188, %v187
  %v236 = vpack.c.b16 %v190, %v189
  %v237 = vpack.c.b16 %v192, %v191
  %v238 = vpack.c.b16 %v194, %v193
  %v239 = vpack.c.b16 %v196, %v195
  %v240 = vpack.c.b16 %v198, %v197
  %v241 = vpack.c.b16 %v200, %v199
  %v242 = vpack.c.b16 %v202, %v201
  %v243 = vpack.c.b16 %v204, %v203
  %v244 = vpack.c.b16 %v206, %v205
  %v245 = vpack.c.b16 %v208, %v207
  %v246 = vpack.c.b16 %v210, %v209
  %v247 = vpack.c.b16 %v212, %v211
  %v248 = vpack.c.b16 %v214, %v213
  %v249 = vpack.c.b16 %v216, %v215
  %v250 = vpack.c.b16 %v218, %v217
  %v256 = vunpack.c.l.b16 %v82
  %v257 = vunpack.c.l.b16 %v83
  %v258 = vunpack.c.l.b16 %v84
  %v259 = vunpack.c.l.b16 %v85
  %v260 = vunpack.c.l.b16 %v86
  %v261 = vpack.c.b16 %v257, %v256
  %v262 = vpack.c.b16 %v259, %v258
  %v263 = vpack.c.b16 %v260, %v260
  %vm266 = vcmask 293888
  %v268 = vsel %vm266, %v219, 0
  %v271 = vsel %vm266, %v220, 0
  %v274 = vsel %vm266, %v221, 0
  %v277 = vsel %vm266, %v222, 0
  %v280 = vsel %vm266, %v223, 0
  %v283 = vsel %vm266, %v224, 0
  %v286 = vsel %vm266, %v225, 0
  %v289 = vsel %vm266, %v226, 0
  %v292 = vsel %vm266, %v227, 0
  %v295 = vsel %vm266, %v228, 0
  %v298 = vsel %vm266, %v229, 0
  %v301 = vsel %vm266, %v230, 0
  %v304 = vsel %vm266, %v231, 0
  %v307 = vsel %vm266, %v232, 0
  %v310 = vsel %vm266, %v233, 0
  %v313 = vsel %vm266, %v234, 0
  %v316 = vsel %vm266, %v235, 0
  %v319 = vsel %vm266, %v236, 0
  %v322 = vsel %vm266, %v237, 0
  %v325 = vsel %vm266, %v238, 0
  %v328 = vsel %vm266, %v239, 0
  %v331 = vsel %vm266, %v240, 0
  %v334 = vsel %vm266, %v241, 0
  %v337 = vsel %vm266, %v242, 0
  %v340 = vsel %vm266, %v243, 0
  %v343 = vsel %vm266, %v244, 0
  %v346 = vsel %vm266, %v245, 0
  %v349 = vsel %vm266, %v246, 0
  %v352 = vsel %vm266, %v247, 0
  %v355 = vsel %vm266, %v248, 0
  %v358 = vsel %vm266, %v249, 0
  %v361 = vsel %vm266, %v250, 0
  %vm363 = vcmask 1041408
  %v365 = vsel %vm363, %v263, 0
  %367 = vmatpush.bf16.msra.mxu0 0
  %368 = vmatpush.bf16.msra.mxu0 0
  %369 = vmatpush.bf16.msra.mxu0 0
  %370 = vmatpush.bf16.msra.mxu0 0
  %371 = vmatpush.bf16.msra.mxu0 0
  %372 = vmatpush.bf16.msra.mxu0 %v365
  %373 = vmatpush.bf16.msra.mxu0 %v262
  %374 = vmatpush.bf16.msra.mxu0 %v261
  %375 = vmatmul.bf16.gmra.mxu0 %v268
  %v376 = vpop.f32.mrf.mxu0
  %v377 = vadd.f32 %v89, %v376
  %v378 = vpop.f32.mrf.mxu0
  %v379 = vadd.f32 %v89, %v378
  %380 = vmatmul.bf16.gmra.mxu0 %v271
  %v381 = vpop.f32.mrf.mxu0
  %v382 = vadd.f32 %v89, %v381
  %v383 = vpop.f32.mrf.mxu0
  %v384 = vadd.f32 %v89, %v383
  %385 = vmatmul.bf16.gmra.mxu0 %v274
  %v386 = vpop.f32.mrf.mxu0
  %v387 = vadd.f32 %v89, %v386
  %v388 = vpop.f32.mrf.mxu0
  %v389 = vadd.f32 %v89, %v388
  %390 = vmatmul.bf16.gmra.mxu0 %v277
  %v391 = vpop.f32.mrf.mxu0
  %v392 = vadd.f32 %v89, %v391
  %v393 = vpop.f32.mrf.mxu0
  %v394 = vadd.f32 %v89, %v393
  %395 = vmatmul.bf16.gmra.mxu0 %v280
  %v396 = vpop.f32.mrf.mxu0
  %v397 = vadd.f32 %v89, %v396
  %v398 = vpop.f32.mrf.mxu0
  %v399 = vadd.f32 %v89, %v398
  %400 = vmatmul.bf16.gmra.mxu0 %v283
  %v401 = vpop.f32.mrf.mxu0
  %v402 = vadd.f32 %v89, %v401
  %v403 = vpop.f32.mrf.mxu0
  %v404 = vadd.f32 %v89, %v403
  %405 = vmatmul.bf16.gmra.mxu0 %v286
  %v406 = vpop.f32.mrf.mxu0
  %v407 = vadd.f32 %v89, %v406
  %v408 = vpop.f32.mrf.mxu0
  %v409 = vadd.f32 %v89, %v408
  %410 = vmatmul.bf16.gmra.mxu0 %v289
  %v411 = vpop.f32.mrf.mxu0
  %v412 = vadd.f32 %v89, %v411
  %v413 = vpop.f32.mrf.mxu0
  %v414 = vadd.f32 %v89, %v413
  %415 = vmatmul.bf16.gmra.mxu0 %v292
  %v416 = vpop.f32.mrf.mxu0
  %v417 = vadd.f32 %v89, %v416
  %v418 = vpop.f32.mrf.mxu0
  %v419 = vadd.f32 %v89, %v418
  %420 = vmatmul.bf16.gmra.mxu0 %v295
  %v421 = vpop.f32.mrf.mxu0
  %v422 = vadd.f32 %v89, %v421
  %v423 = vpop.f32.mrf.mxu0
  %v424 = vadd.f32 %v89, %v423
  %425 = vmatmul.bf16.gmra.mxu0 %v298
  %v426 = vpop.f32.mrf.mxu0
  %v427 = vadd.f32 %v89, %v426
  %v428 = vpop.f32.mrf.mxu0
  %v429 = vadd.f32 %v89, %v428
  %430 = vmatmul.bf16.gmra.mxu0 %v301
  %v431 = vpop.f32.mrf.mxu0
  %v432 = vadd.f32 %v89, %v431
  %v433 = vpop.f32.mrf.mxu0
  %v434 = vadd.f32 %v89, %v433
  %435 = vmatmul.bf16.gmra.mxu0 %v304
  %v436 = vpop.f32.mrf.mxu0
  %v437 = vadd.f32 %v89, %v436
  %v438 = vpop.f32.mrf.mxu0
  %v439 = vadd.f32 %v89, %v438
  %440 = vmatmul.bf16.gmra.mxu0 %v307
  %v441 = vpop.f32.mrf.mxu0
  %v442 = vadd.f32 %v89, %v441
  %v443 = vpop.f32.mrf.mxu0
  %v444 = vadd.f32 %v89, %v443
  %445 = vmatmul.bf16.gmra.mxu0 %v310
  %v446 = vpop.f32.mrf.mxu0
  %v447 = vadd.f32 %v89, %v446
  %v448 = vpop.f32.mrf.mxu0
  %v449 = vadd.f32 %v89, %v448
  %450 = vmatmul.bf16.gmra.mxu0 %v313
  %v451 = vpop.f32.mrf.mxu0
  %v452 = vadd.f32 %v89, %v451
  %v453 = vpop.f32.mrf.mxu0
  %v454 = vadd.f32 %v89, %v453
  %455 = vmatmul.bf16.gmra.mxu0 %v316
  %v456 = vpop.f32.mrf.mxu0
  %v457 = vadd.f32 %v89, %v456
  %v458 = vpop.f32.mrf.mxu0
  %v459 = vadd.f32 %v89, %v458
  %460 = vmatmul.bf16.gmra.mxu0 %v319
  %v461 = vpop.f32.mrf.mxu0
  %v462 = vadd.f32 %v89, %v461
  %v463 = vpop.f32.mrf.mxu0
  %v464 = vadd.f32 %v89, %v463
  %465 = vmatmul.bf16.gmra.mxu0 %v322
  %v466 = vpop.f32.mrf.mxu0
  %v467 = vadd.f32 %v89, %v466
  %v468 = vpop.f32.mrf.mxu0
  %v469 = vadd.f32 %v89, %v468
  %470 = vmatmul.bf16.gmra.mxu0 %v325
  %v471 = vpop.f32.mrf.mxu0
  %v472 = vadd.f32 %v89, %v471
  %v473 = vpop.f32.mrf.mxu0
  %v474 = vadd.f32 %v89, %v473
  %475 = vmatmul.bf16.gmra.mxu0 %v328
  %v476 = vpop.f32.mrf.mxu0
  %v477 = vadd.f32 %v89, %v476
  %v478 = vpop.f32.mrf.mxu0
  %v479 = vadd.f32 %v89, %v478
  %480 = vmatmul.bf16.gmra.mxu0 %v331
  %v481 = vpop.f32.mrf.mxu0
  %v482 = vadd.f32 %v89, %v481
  %v483 = vpop.f32.mrf.mxu0
  %v484 = vadd.f32 %v89, %v483
  %485 = vmatmul.bf16.gmra.mxu0 %v334
  %v486 = vpop.f32.mrf.mxu0
  %v487 = vadd.f32 %v89, %v486
  %v488 = vpop.f32.mrf.mxu0
  %v489 = vadd.f32 %v89, %v488
  %490 = vmatmul.bf16.gmra.mxu0 %v337
  %v491 = vpop.f32.mrf.mxu0
  %v492 = vadd.f32 %v89, %v491
  %v493 = vpop.f32.mrf.mxu0
  %v494 = vadd.f32 %v89, %v493
  %495 = vmatmul.bf16.gmra.mxu0 %v340
  %v496 = vpop.f32.mrf.mxu0
  %v497 = vadd.f32 %v89, %v496
  %v498 = vpop.f32.mrf.mxu0
  %v499 = vadd.f32 %v89, %v498
  %500 = vmatmul.bf16.gmra.mxu0 %v343
  %v501 = vpop.f32.mrf.mxu0
  %v502 = vadd.f32 %v89, %v501
  %v503 = vpop.f32.mrf.mxu0
  %v504 = vadd.f32 %v89, %v503
  %505 = vmatmul.bf16.gmra.mxu0 %v346
  %v506 = vpop.f32.mrf.mxu0
  %v507 = vadd.f32 %v89, %v506
  %v508 = vpop.f32.mrf.mxu0
  %v509 = vadd.f32 %v89, %v508
  %510 = vmatmul.bf16.gmra.mxu0 %v349
  %v511 = vpop.f32.mrf.mxu0
  %v512 = vadd.f32 %v89, %v511
  %v513 = vpop.f32.mrf.mxu0
  %v514 = vadd.f32 %v89, %v513
  %515 = vmatmul.bf16.gmra.mxu0 %v352
  %v516 = vpop.f32.mrf.mxu0
  %v517 = vadd.f32 %v89, %v516
  %v518 = vpop.f32.mrf.mxu0
  %v519 = vadd.f32 %v89, %v518
  %520 = vmatmul.bf16.gmra.mxu0 %v355
  %v521 = vpop.f32.mrf.mxu0
  %v522 = vadd.f32 %v89, %v521
  %v523 = vpop.f32.mrf.mxu0
  %v524 = vadd.f32 %v89, %v523
  %525 = vmatmul.bf16.gmra.mxu0 %v358
  %v526 = vpop.f32.mrf.mxu0
  %v527 = vadd.f32 %v89, %v526
  %v528 = vpop.f32.mrf.mxu0
  %v529 = vadd.f32 %v89, %v528
  %530 = vmatmul.bf16.gmra.mxu0 %v361
  %v531 = vpop.f32.mrf.mxu0
  %v532 = vadd.f32 %v89, %v531
  %v533 = vpop.f32.mrf.mxu0
  %v534 = vadd.f32 %v89, %v533
  %535 = vdwg.mxu0
  %536 = vst [vmem:[%s3] sm:$0xff] %v377
  %537 = vst [vmem:[%s3 + $0x8] sm:$0xff] %v379
  %538 = vst [vmem:[%s3 + $0x10] sm:$0xff] %v382
  %539 = vst [vmem:[%s3 + $0x18] sm:$0xff] %v384
  %540 = vst [vmem:[%s3 + $0x20] sm:$0xff] %v387
  %541 = vst [vmem:[%s3 + $0x28] sm:$0xff] %v389
  %542 = vst [vmem:[%s3 + $0x30] sm:$0xff] %v392
  %543 = vst [vmem:[%s3 + $0x38] sm:$0xff] %v394
  %544 = vst [vmem:[%s3 + $0x40] sm:$0xff] %v397
  %545 = vst [vmem:[%s3 + $0x48] sm:$0xff] %v399
  %546 = vst [vmem:[%s3 + $0x50] sm:$0xff] %v402
  %547 = vst [vmem:[%s3 + $0x58] sm:$0xff] %v404
  %548 = vst [vmem:[%s3 + $0x60] sm:$0xff] %v407
  %549 = vst [vmem:[%s3 + $0x68] sm:$0xff] %v409
  %550 = vst [vmem:[%s3 + $0x70] sm:$0xff] %v412
  %551 = vst [vmem:[%s3 + $0x78] sm:$0xff] %v414
  %552 = vst [vmem:[%s3 + $0x80] sm:$0xff] %v417
  %553 = vst [vmem:[%s3 + $0x88] sm:$0xff] %v419
  %554 = vst [vmem:[%s3 + $0x90] sm:$0xff] %v422
  %555 = vst [vmem:[%s3 + $0x98] sm:$0xff] %v424
  %556 = vst [vmem:[%s3 + $0xa0] sm:$0xff] %v427
  %557 = vst [vmem:[%s3 + $0xa8] sm:$0xff] %v429
  %558 = vst [vmem:[%s3 + $0xb0] sm:$0xff] %v432
  %559 = vst [vmem:[%s3 + $0xb8] sm:$0xff] %v434
  %560 = vst [vmem:[%s3 + $0xc0] sm:$0xff] %v437
  %561 = vst [vmem:[%s3 + $0xc8] sm:$0xff] %v439
  %562 = vst [vmem:[%s3 + $0xd0] sm:$0xff] %v442
  %563 = vst [vmem:[%s3 + $0xd8] sm:$0xff] %v444
  %564 = vst [vmem:[%s3 + $0xe0] sm:$0xff] %v447
  %565 = vst [vmem:[%s3 + $0xe8] sm:$0xff] %v449
  %566 = vst [vmem:[%s3 + $0xf0] sm:$0xff] %v452
  %567 = vst [vmem:[%s3 + $0xf8] sm:$0xff] %v454
  %568 = vst [vmem:[%s3 + $0x100] sm:$0xff] %v457
  %569 = vst [vmem:[%s3 + $0x108] sm:$0xff] %v459
  %570 = vst [vmem:[%s3 + $0x110] sm:$0xff] %v462
  %571 = vst [vmem:[%s3 + $0x118] sm:$0xff] %v464
  %572 = vst [vmem:[%s3 + $0x120] sm:$0xff] %v467
  %573 = vst [vmem:[%s3 + $0x128] sm:$0xff] %v469
  %574 = vst [vmem:[%s3 + $0x130] sm:$0xff] %v472
  %575 = vst [vmem:[%s3 + $0x138] sm:$0xff] %v474
  %576 = vst [vmem:[%s3 + $0x140] sm:$0xff] %v477
  %577 = vst [vmem:[%s3 + $0x148] sm:$0xff] %v479
  %578 = vst [vmem:[%s3 + $0x150] sm:$0xff] %v482
  %579 = vst [vmem:[%s3 + $0x158] sm:$0xff] %v484
  %580 = vst [vmem:[%s3 + $0x160] sm:$0xff] %v487
  %581 = vst [vmem:[%s3 + $0x168] sm:$0xff] %v489
  %582 = vst [vmem:[%s3 + $0x170] sm:$0xff] %v492
  %583 = vst [vmem:[%s3 + $0x178] sm:$0xff] %v494
  %584 = vst [vmem:[%s3 + $0x180] sm:$0xff] %v497
  %585 = vst [vmem:[%s3 + $0x188] sm:$0xff] %v499
  %586 = vst [vmem:[%s3 + $0x190] sm:$0xff] %v502
  %587 = vst [vmem:[%s3 + $0x198] sm:$0xff] %v504
  %588 = vst [vmem:[%s3 + $0x1a0] sm:$0xff] %v507
  %589 = vst [vmem:[%s3 + $0x1a8] sm:$0xff] %v509
  %590 = vst [vmem:[%s3 + $0x1b0] sm:$0xff] %v512
  %591 = vst [vmem:[%s3 + $0x1b8] sm:$0xff] %v514
  %592 = vst [vmem:[%s3 + $0x1c0] sm:$0xff] %v517
  %593 = vst [vmem:[%s3 + $0x1c8] sm:$0xff] %v519
  %594 = vst [vmem:[%s3 + $0x1d0] sm:$0xff] %v522
  %595 = vst [vmem:[%s3 + $0x1d8] sm:$0xff] %v524
  %596 = vst [vmem:[%s3 + $0x1e0] sm:$0xff] %v527
  %597 = vst [vmem:[%s3 + $0x1e8] sm:$0xff] %v529
  %598 = vst [vmem:[%s3 + $0x1f0] sm:$0xff] %v532
  %599 = vst [vmem:[%s3 + $0x1f8] sm:$0xff] %v534
  %s600 = smul.u32 0, 512
  %v601 = vlaneseq
  %v602 = vshrl.u32 %v601, 7
  %v603 = vadd.s32 %v602, 8
  %v604 = vadd.s32 %v602, 16
  %v605 = vadd.s32 %v602, 24
  %v606 = vadd.s32 %v602, 32
  %v607 = vadd.s32 %v602, 40
  %v608 = vadd.s32 %v602, 48
  %v609 = vadd.s32 %v602, 56
  %v610 = vadd.s32 %v602, 64
  %v611 = vadd.s32 %v602, 72
  %v612 = vadd.s32 %v602, 80
  %v613 = vadd.s32 %v602, 88
  %v614 = vadd.s32 %v602, 96
  %v615 = vadd.s32 %v602, 104
  %v616 = vadd.s32 %v602, 112
  %v617 = vadd.s32 %v602, 120
  %v618 = vadd.s32 %v602, 128
  %v619 = vadd.s32 %v602, 136
  %v620 = vadd.s32 %v602, 144
  %v621 = vadd.s32 %v602, 152
  %v622 = vadd.s32 %v602, 160
  %v623 = vadd.s32 %v602, 168
  %v624 = vadd.s32 %v602, 176
  %v625 = vadd.s32 %v602, 184
  %v626 = vadd.s32 %v602, 192
  %v627 = vadd.s32 %v602, 200
  %v628 = vadd.s32 %v602, 208
  %v629 = vadd.s32 %v602, 216
  %v630 = vadd.s32 %v602, 224
  %v631 = vadd.s32 %v602, 232
  %v632 = vadd.s32 %v602, 240
  %v633 = vadd.s32 %v602, 248
  %v634 = vadd.s32 %v602, 256
  %v635 = vadd.s32 %v602, 264
  %v636 = vadd.s32 %v602, 272
  %v637 = vadd.s32 %v602, 280
  %v638 = vadd.s32 %v602, 288
  %v639 = vadd.s32 %v602, 296
  %v640 = vadd.s32 %v602, 304
  %v641 = vadd.s32 %v602, 312
  %v642 = vadd.s32 %v602, 320
  %v643 = vadd.s32 %v602, 328
  %v644 = vadd.s32 %v602, 336
  %v645 = vadd.s32 %v602, 344
  %v646 = vadd.s32 %v602, 352
  %v647 = vadd.s32 %v602, 360
  %v648 = vadd.s32 %v602, 368
  %v649 = vadd.s32 %v602, 376
  %v650 = vadd.s32 %v602, 384
  %v651 = vadd.s32 %v602, 392
  %v652 = vadd.s32 %v602, 400
  %v653 = vadd.s32 %v602, 408
  %v654 = vadd.s32 %v602, 416
  %v655 = vadd.s32 %v602, 424
  %v656 = vadd.s32 %v602, 432
  %v657 = vadd.s32 %v602, 440
  %v658 = vadd.s32 %v602, 448
  %v659 = vadd.s32 %v602, 456
  %v660 = vadd.s32 %v602, 464
  %v661 = vadd.s32 %v602, 472
  %v662 = vadd.s32 %v602, 480
  %v663 = vadd.s32 %v602, 488
  %v664 = vadd.s32 %v602, 496
  %v665 = vadd.s32 %v602, 504
  %v666 = vstv %s600
  %v667 = vadd.s32 %v666, %v602
  %v668 = vadd.s32 %v666, %v603
  %v669 = vadd.s32 %v666, %v604
  %v670 = vadd.s32 %v666, %v605
  %v671 = vadd.s32 %v666, %v606
  %v672 = vadd.s32 %v666, %v607
  %v673 = vadd.s32 %v666, %v608
  %v674 = vadd.s32 %v666, %v609
  %v675 = vadd.s32 %v666, %v610
  %v676 = vadd.s32 %v666, %v611
  %v677 = vadd.s32 %v666, %v612
  %v678 = vadd.s32 %v666, %v613
  %v679 = vadd.s32 %v666, %v614
  %v680 = vadd.s32 %v666, %v615
  %v681 = vadd.s32 %v666, %v616
  %v682 = vadd.s32 %v666, %v617
  %v683 = vadd.s32 %v666, %v618
  %v684 = vadd.s32 %v666, %v619
  %v685 = vadd.s32 %v666, %v620
  %v686 = vadd.s32 %v666, %v621
  %v687 = vadd.s32 %v666, %v622
  %v688 = vadd.s32 %v666, %v623
  %v689 = vadd.s32 %v666, %v624
  %v690 = vadd.s32 %v666, %v625
  %v691 = vadd.s32 %v666, %v626
  %v692 = vadd.s32 %v666, %v627
  %v693 = vadd.s32 %v666, %v628
  %v694 = vadd.s32 %v666, %v629
  %v695 = vadd.s32 %v666, %v630
  %v696 = vadd.s32 %v666, %v631
  %v697 = vadd.s32 %v666, %v632
  %v698 = vadd.s32 %v666, %v633
  %v699 = vadd.s32 %v666, %v634
  %v700 = vadd.s32 %v666, %v635
  %v701 = vadd.s32 %v666, %v636
  %v702 = vadd.s32 %v666, %v637
  %v703 = vadd.s32 %v666, %v638
  %v704 = vadd.s32 %v666, %v639
  %v705 = vadd.s32 %v666, %v640
  %v706 = vadd.s32 %v666, %v641
  %v707 = vadd.s32 %v666, %v642
  %v708 = vadd.s32 %v666, %v643
  %v709 = vadd.s32 %v666, %v644
  %v710 = vadd.s32 %v666, %v645
  %v711 = vadd.s32 %v666, %v646
  %v712 = vadd.s32 %v666, %v647
  %v713 = vadd.s32 %v666, %v648
  %v714 = vadd.s32 %v666, %v649
  %v715 = vadd.s32 %v666, %v650
  %v716 = vadd.s32 %v666, %v651
  %v717 = vadd.s32 %v666, %v652
  %v718 = vadd.s32 %v666, %v653
  %v719 = vadd.s32 %v666, %v654
  %v720 = vadd.s32 %v666, %v655
  %v721 = vadd.s32 %v666, %v656
  %v722 = vadd.s32 %v666, %v657
  %v723 = vadd.s32 %v666, %v658
  %v724 = vadd.s32 %v666, %v659
  %v725 = vadd.s32 %v666, %v660
  %v726 = vadd.s32 %v666, %v661
  %v727 = vadd.s32 %v666, %v662
  %v728 = vadd.s32 %v666, %v663
  %v729 = vadd.s32 %v666, %v664
  %v730 = vadd.s32 %v666, %v665
  %vm731 = vcmp.lt.s32.totalorder %v667, 512
  %vm732 = vcmp.lt.s32.totalorder %v668, 512
  %vm733 = vcmp.lt.s32.totalorder %v669, 512
  %vm734 = vcmp.lt.s32.totalorder %v670, 512
  %vm735 = vcmp.lt.s32.totalorder %v671, 512
  %vm736 = vcmp.lt.s32.totalorder %v672, 512
  %vm737 = vcmp.lt.s32.totalorder %v673, 512
  %vm738 = vcmp.lt.s32.totalorder %v674, 512
  %vm739 = vcmp.lt.s32.totalorder %v675, 512
  %vm740 = vcmp.lt.s32.totalorder %v676, 512
  %vm741 = vcmp.lt.s32.totalorder %v677, 512
  %vm742 = vcmp.lt.s32.totalorder %v678, 512
  %vm743 = vcmp.lt.s32.totalorder %v679, 512
  %vm744 = vcmp.lt.s32.totalorder %v680, 512
  %vm745 = vcmp.lt.s32.totalorder %v681, 512
  %vm746 = vcmp.lt.s32.totalorder %v682, 512
  %vm747 = vcmp.lt.s32.totalorder %v683, 512
  %vm748 = vcmp.lt.s32.totalorder %v684, 512
  %vm749 = vcmp.lt.s32.totalorder %v685, 512
  %vm750 = vcmp.lt.s32.totalorder %v686, 512
  %vm751 = vcmp.lt.s32.totalorder %v687, 512
  %vm752 = vcmp.lt.s32.totalorder %v688, 512
  %vm753 = vcmp.lt.s32.totalorder %v689, 512
  %vm754 = vcmp.lt.s32.totalorder %v690, 512
  %vm755 = vcmp.lt.s32.totalorder %v691, 512
  %vm756 = vcmp.lt.s32.totalorder %v692, 512
  %vm757 = vcmp.lt.s32.totalorder %v693, 512
  %vm758 = vcmp.lt.s32.totalorder %v694, 512
  %vm759 = vcmp.lt.s32.totalorder %v695, 512
  %vm760 = vcmp.lt.s32.totalorder %v696, 512
  %vm761 = vcmp.lt.s32.totalorder %v697, 512
  %vm762 = vcmp.lt.s32.totalorder %v698, 512
  %vm763 = vcmp.lt.s32.totalorder %v699, 512
  %vm764 = vcmp.lt.s32.totalorder %v700, 512
  %vm765 = vcmp.lt.s32.totalorder %v701, 512
  %vm766 = vcmp.lt.s32.totalorder %v702, 512
  %vm767 = vcmp.lt.s32.totalorder %v703, 512
  %vm768 = vcmp.lt.s32.totalorder %v704, 512
  %vm769 = vcmp.lt.s32.totalorder %v705, 512
  %vm770 = vcmp.lt.s32.totalorder %v706, 512
  %vm771 = vcmp.lt.s32.totalorder %v707, 512
  %vm772 = vcmp.lt.s32.totalorder %v708, 512
  %vm773 = vcmp.lt.s32.totalorder %v709, 512
  %vm774 = vcmp.lt.s32.totalorder %v710, 512
  %vm775 = vcmp.lt.s32.totalorder %v711, 512
  %vm776 = vcmp.lt.s32.totalorder %v712, 512
  %vm777 = vcmp.lt.s32.totalorder %v713, 512
  %vm778 = vcmp.lt.s32.totalorder %v714, 512
  %vm779 = vcmp.lt.s32.totalorder %v715, 512
  %vm780 = vcmp.lt.s32.totalorder %v716, 512
  %vm781 = vcmp.lt.s32.totalorder %v717, 512
  %vm782 = vcmp.lt.s32.totalorder %v718, 512
  %vm783 = vcmp.lt.s32.totalorder %v719, 512
  %vm784 = vcmp.lt.s32.totalorder %v720, 512
  %vm785 = vcmp.lt.s32.totalorder %v721, 512
  %vm786 = vcmp.lt.s32.totalorder %v722, 512
  %vm787 = vcmp.lt.s32.totalorder %v723, 512
  %vm788 = vcmp.lt.s32.totalorder %v724, 512
  %vm789 = vcmp.lt.s32.totalorder %v725, 512
  %vm790 = vcmp.lt.s32.totalorder %v726, 512
  %vm791 = vcmp.lt.s32.totalorder %v727, 512
  %vm792 = vcmp.lt.s32.totalorder %v728, 512
  %vm793 = vcmp.lt.s32.totalorder %v729, 512
  %vm794 = vcmp.lt.s32.totalorder %v730, 512
  %v795 = vsel %vm731, %v377, 0.0
  %v796 = vsel %vm732, %v379, 0.0
  %v797 = vsel %vm733, %v382, 0.0
  %v798 = vsel %vm734, %v384, 0.0
  %v799 = vsel %vm735, %v387, 0.0
  %v800 = vsel %vm736, %v389, 0.0
  %v801 = vsel %vm737, %v392, 0.0
  %v802 = vsel %vm738, %v394, 0.0
  %v803 = vsel %vm739, %v397, 0.0
  %v804 = vsel %vm740, %v399, 0.0
  %v805 = vsel %vm741, %v402, 0.0
  %v806 = vsel %vm742, %v404, 0.0
  %v807 = vsel %vm743, %v407, 0.0
  %v808 = vsel %vm744, %v409, 0.0
  %v809 = vsel %vm745, %v412, 0.0
  %v810 = vsel %vm746, %v414, 0.0
  %v811 = vsel %vm747, %v417, 0.0
  %v812 = vsel %vm748, %v419, 0.0
  %v813 = vsel %vm749, %v422, 0.0
  %v814 = vsel %vm750, %v424, 0.0
  %v815 = vsel %vm751, %v427, 0.0
  %v816 = vsel %vm752, %v429, 0.0
  %v817 = vsel %vm753, %v432, 0.0
  %v818 = vsel %vm754, %v434, 0.0
  %v819 = vsel %vm755, %v437, 0.0
  %v820 = vsel %vm756, %v439, 0.0
  %v821 = vsel %vm757, %v442, 0.0
  %v822 = vsel %vm758, %v444, 0.0
  %v823 = vsel %vm759, %v447, 0.0
  %v824 = vsel %vm760, %v449, 0.0
  %v825 = vsel %vm761, %v452, 0.0
  %v826 = vsel %vm762, %v454, 0.0
  %v827 = vsel %vm763, %v457, 0.0
  %v828 = vsel %vm764, %v459, 0.0
  %v829 = vsel %vm765, %v462, 0.0
  %v830 = vsel %vm766, %v464, 0.0
  %v831 = vsel %vm767, %v467, 0.0
  %v832 = vsel %vm768, %v469, 0.0
  %v833 = vsel %vm769, %v472, 0.0
  %v834 = vsel %vm770, %v474, 0.0
  %v835 = vsel %vm771, %v477, 0.0
  %v836 = vsel %vm772, %v479, 0.0
  %v837 = vsel %vm773, %v482, 0.0
  %v838 = vsel %vm774, %v484, 0.0
  %v839 = vsel %vm775, %v487, 0.0
  %v840 = vsel %vm776, %v489, 0.0
  %v841 = vsel %vm777, %v492, 0.0
  %v842 = vsel %vm778, %v494, 0.0
  %v843 = vsel %vm779, %v497, 0.0
  %v844 = vsel %vm780, %v499, 0.0
  %v845 = vsel %vm781, %v502, 0.0
  %v846 = vsel %vm782, %v504, 0.0
  %v847 = vsel %vm783, %v507, 0.0
  %v848 = vsel %vm784, %v509, 0.0
  %v849 = vsel %vm785, %v512, 0.0
  %v850 = vsel %vm786, %v514, 0.0
  %v851 = vsel %vm787, %v517, 0.0
  %v852 = vsel %vm788, %v519, 0.0
  %v853 = vsel %vm789, %v522, 0.0
  %v854 = vsel %vm790, %v524, 0.0
  %v855 = vsel %vm791, %v527, 0.0
  %v856 = vsel %vm792, %v529, 0.0
  %v857 = vsel %vm793, %v532, 0.0
  %v858 = vsel %vm794, %v534, 0.0
  %v859 = vadd.f32 %v795, %v796
  %v860 = vadd.f32 %v859, %v797
  %v861 = vadd.f32 %v860, %v798
  %v862 = vadd.f32 %v861, %v799
  %v863 = vadd.f32 %v862, %v800
  %v864 = vadd.f32 %v863, %v801
  %v865 = vadd.f32 %v864, %v802
  %v866 = vrot.slane %v865, 4
  %v867 = vadd.f32 %v865, %v866
  %v868 = vrot.slane %v867, 2
  %v869 = vadd.f32 %v867, %v868
  %v870 = vrot.slane %v869, 1
  %v871 = vadd.f32 %v869, %v870
  %v872 = vadd.f32 %v803, %v804
  %v873 = vadd.f32 %v872, %v805
  %v874 = vadd.f32 %v873, %v806
  %v875 = vadd.f32 %v874, %v807
  %v876 = vadd.f32 %v875, %v808
  %v877 = vadd.f32 %v876, %v809
  %v878 = vadd.f32 %v877, %v810
  %v879 = vrot.slane %v878, 4
  %v880 = vadd.f32 %v878, %v879
  %v881 = vrot.slane %v880, 2
  %v882 = vadd.f32 %v880, %v881
  %v883 = vrot.slane %v882, 1
  %v884 = vadd.f32 %v882, %v883
  %v885 = vadd.f32 %v811, %v812
  %v886 = vadd.f32 %v885, %v813
  %v887 = vadd.f32 %v886, %v814
  %v888 = vadd.f32 %v887, %v815
  %v889 = vadd.f32 %v888, %v816
  %v890 = vadd.f32 %v889, %v817
  %v891 = vadd.f32 %v890, %v818
  %v892 = vrot.slane %v891, 4
  %v893 = vadd.f32 %v891, %v892
  %v894 = vrot.slane %v893, 2
  %v895 = vadd.f32 %v893, %v894
  %v896 = vrot.slane %v895, 1
  %v897 = vadd.f32 %v895, %v896
  %v898 = vadd.f32 %v819, %v820
  %v899 = vadd.f32 %v898, %v821
  %v900 = vadd.f32 %v899, %v822
  %v901 = vadd.f32 %v900, %v823
  %v902 = vadd.f32 %v901, %v824
  %v903 = vadd.f32 %v902, %v825
  %v904 = vadd.f32 %v903, %v826
  %v905 = vrot.slane %v904, 4
  %v906 = vadd.f32 %v904, %v905
  %v907 = vrot.slane %v906, 2
  %v908 = vadd.f32 %v906, %v907
  %v909 = vrot.slane %v908, 1
  %v910 = vadd.f32 %v908, %v909
  %v911 = vadd.f32 %v827, %v828
  %v912 = vadd.f32 %v911, %v829
  %v913 = vadd.f32 %v912, %v830
  %v914 = vadd.f32 %v913, %v831
  %v915 = vadd.f32 %v914, %v832
  %v916 = vadd.f32 %v915, %v833
  %v917 = vadd.f32 %v916, %v834
  %v918 = vrot.slane %v917, 4
  %v919 = vadd.f32 %v917, %v918
  %v920 = vrot.slane %v919, 2
  %v921 = vadd.f32 %v919, %v920
  %v922 = vrot.slane %v921, 1
  %v923 = vadd.f32 %v921, %v922
  %v924 = vadd.f32 %v835, %v836
  %v925 = vadd.f32 %v924, %v837
  %v926 = vadd.f32 %v925, %v838
  %v927 = vadd.f32 %v926, %v839
  %v928 = vadd.f32 %v927, %v840
  %v929 = vadd.f32 %v928, %v841
  %v930 = vadd.f32 %v929, %v842
  %v931 = vrot.slane %v930, 4
  %v932 = vadd.f32 %v930, %v931
  %v933 = vrot.slane %v932, 2
  %v934 = vadd.f32 %v932, %v933
  %v935 = vrot.slane %v934, 1
  %v936 = vadd.f32 %v934, %v935
  %v937 = vadd.f32 %v843, %v844
  %v938 = vadd.f32 %v937, %v845
  %v939 = vadd.f32 %v938, %v846
  %v940 = vadd.f32 %v939, %v847
  %v941 = vadd.f32 %v940, %v848
  %v942 = vadd.f32 %v941, %v849
  %v943 = vadd.f32 %v942, %v850
  %v944 = vrot.slane %v943, 4
  %v945 = vadd.f32 %v943, %v944
  %v946 = vrot.slane %v945, 2
  %v947 = vadd.f32 %v945, %v946
  %v948 = vrot.slane %v947, 1
  %v949 = vadd.f32 %v947, %v948
  %v950 = vadd.f32 %v851, %v852
  %v951 = vadd.f32 %v950, %v853
  %v952 = vadd.f32 %v951, %v854
  %v953 = vadd.f32 %v952, %v855
  %v954 = vadd.f32 %v953, %v856
  %v955 = vadd.f32 %v954, %v857
  %v956 = vadd.f32 %v955, %v858
  %v957 = vrot.slane %v956, 4
  %v958 = vadd.f32 %v956, %v957
  %v959 = vrot.slane %v958, 2
  %v960 = vadd.f32 %v958, %v959
  %v961 = vrot.slane %v960, 1
  %v962 = vadd.f32 %v960, %v961
  %vm971 = vcmask 1041409
  %v972 = vsel %vm971, %v884, %v871
  %vm973 = vcmask 1042434
  %v974 = vsel %vm973, %v897, %v972
  %vm975 = vcmask 1043459
  %v976 = vsel %vm975, %v910, %v974
  %vm977 = vcmask 1044484
  %v978 = vsel %vm977, %v923, %v976
  %vm979 = vcmask 1045509
  %v980 = vsel %vm979, %v936, %v978
  %vm981 = vcmask 1046534
  %v982 = vsel %vm981, %v949, %v980
  %vm983 = vcmask 1047559
  %v984 = vsel %vm983, %v962, %v982
  %986 = vst [vmem:[%s4] sm:$0xff] %v984
  %v987 = vmul.f32 %v795, %v795
  %v988 = vmul.f32 %v796, %v796
  %v989 = vmul.f32 %v797, %v797
  %v990 = vmul.f32 %v798, %v798
  %v991 = vmul.f32 %v799, %v799
  %v992 = vmul.f32 %v800, %v800
  %v993 = vmul.f32 %v801, %v801
  %v994 = vmul.f32 %v802, %v802
  %v995 = vmul.f32 %v803, %v803
  %v996 = vmul.f32 %v804, %v804
  %v997 = vmul.f32 %v805, %v805
  %v998 = vmul.f32 %v806, %v806
  %v999 = vmul.f32 %v807, %v807
  %v1000 = vmul.f32 %v808, %v808
  %v1001 = vmul.f32 %v809, %v809
  %v1002 = vmul.f32 %v810, %v810
  %v1003 = vmul.f32 %v811, %v811
  %v1004 = vmul.f32 %v812, %v812
  %v1005 = vmul.f32 %v813, %v813
  %v1006 = vmul.f32 %v814, %v814
  %v1007 = vmul.f32 %v815, %v815
  %v1008 = vmul.f32 %v816, %v816
  %v1009 = vmul.f32 %v817, %v817
  %v1010 = vmul.f32 %v818, %v818
  %v1011 = vmul.f32 %v819, %v819
  %v1012 = vmul.f32 %v820, %v820
  %v1013 = vmul.f32 %v821, %v821
  %v1014 = vmul.f32 %v822, %v822
  %v1015 = vmul.f32 %v823, %v823
  %v1016 = vmul.f32 %v824, %v824
  %v1017 = vmul.f32 %v825, %v825
  %v1018 = vmul.f32 %v826, %v826
  %v1019 = vmul.f32 %v827, %v827
  %v1020 = vmul.f32 %v828, %v828
  %v1021 = vmul.f32 %v829, %v829
  %v1022 = vmul.f32 %v830, %v830
  %v1023 = vmul.f32 %v831, %v831
  %v1024 = vmul.f32 %v832, %v832
  %v1025 = vmul.f32 %v833, %v833
  %v1026 = vmul.f32 %v834, %v834
  %v1027 = vmul.f32 %v835, %v835
  %v1028 = vmul.f32 %v836, %v836
  %v1029 = vmul.f32 %v837, %v837
  %v1030 = vmul.f32 %v838, %v838
  %v1031 = vmul.f32 %v839, %v839
  %v1032 = vmul.f32 %v840, %v840
  %v1033 = vmul.f32 %v841, %v841
  %v1034 = vmul.f32 %v842, %v842
  %v1035 = vmul.f32 %v843, %v843
  %v1036 = vmul.f32 %v844, %v844
  %v1037 = vmul.f32 %v845, %v845
  %v1038 = vmul.f32 %v846, %v846
  %v1039 = vmul.f32 %v847, %v847
  %v1040 = vmul.f32 %v848, %v848
  %v1041 = vmul.f32 %v849, %v849
  %v1042 = vmul.f32 %v850, %v850
  %v1043 = vmul.f32 %v851, %v851
  %v1044 = vmul.f32 %v852, %v852
  %v1045 = vmul.f32 %v853, %v853
  %v1046 = vmul.f32 %v854, %v854
  %v1047 = vmul.f32 %v855, %v855
  %v1048 = vmul.f32 %v856, %v856
  %v1049 = vmul.f32 %v857, %v857
  %v1050 = vmul.f32 %v858, %v858
  %v1051 = vadd.f32 %v987, %v988
  %v1052 = vadd.f32 %v1051, %v989
  %v1053 = vadd.f32 %v1052, %v990
  %v1054 = vadd.f32 %v1053, %v991
  %v1055 = vadd.f32 %v1054, %v992
  %v1056 = vadd.f32 %v1055, %v993
  %v1057 = vadd.f32 %v1056, %v994
  %v1058 = vrot.slane %v1057, 4
  %v1059 = vadd.f32 %v1057, %v1058
  %v1060 = vrot.slane %v1059, 2
  %v1061 = vadd.f32 %v1059, %v1060
  %v1062 = vrot.slane %v1061, 1
  %v1063 = vadd.f32 %v1061, %v1062
  %v1064 = vadd.f32 %v995, %v996
  %v1065 = vadd.f32 %v1064, %v997
  %v1066 = vadd.f32 %v1065, %v998
  %v1067 = vadd.f32 %v1066, %v999
  %v1068 = vadd.f32 %v1067, %v1000
  %v1069 = vadd.f32 %v1068, %v1001
  %v1070 = vadd.f32 %v1069, %v1002
  %v1071 = vrot.slane %v1070, 4
  %v1072 = vadd.f32 %v1070, %v1071
  %v1073 = vrot.slane %v1072, 2
  %v1074 = vadd.f32 %v1072, %v1073
  %v1075 = vrot.slane %v1074, 1
  %v1076 = vadd.f32 %v1074, %v1075
  %v1077 = vadd.f32 %v1003, %v1004
  %v1078 = vadd.f32 %v1077, %v1005
  %v1079 = vadd.f32 %v1078, %v1006
  %v1080 = vadd.f32 %v1079, %v1007
  %v1081 = vadd.f32 %v1080, %v1008
  %v1082 = vadd.f32 %v1081, %v1009
  %v1083 = vadd.f32 %v1082, %v1010
  %v1084 = vrot.slane %v1083, 4
  %v1085 = vadd.f32 %v1083, %v1084
  %v1086 = vrot.slane %v1085, 2
  %v1087 = vadd.f32 %v1085, %v1086
  %v1088 = vrot.slane %v1087, 1
  %v1089 = vadd.f32 %v1087, %v1088
  %v1090 = vadd.f32 %v1011, %v1012
  %v1091 = vadd.f32 %v1090, %v1013
  %v1092 = vadd.f32 %v1091, %v1014
  %v1093 = vadd.f32 %v1092, %v1015
  %v1094 = vadd.f32 %v1093, %v1016
  %v1095 = vadd.f32 %v1094, %v1017
  %v1096 = vadd.f32 %v1095, %v1018
  %v1097 = vrot.slane %v1096, 4
  %v1098 = vadd.f32 %v1096, %v1097
  %v1099 = vrot.slane %v1098, 2
  %v1100 = vadd.f32 %v1098, %v1099
  %v1101 = vrot.slane %v1100, 1
  %v1102 = vadd.f32 %v1100, %v1101
  %v1103 = vadd.f32 %v1019, %v1020
  %v1104 = vadd.f32 %v1103, %v1021
  %v1105 = vadd.f32 %v1104, %v1022
  %v1106 = vadd.f32 %v1105, %v1023
  %v1107 = vadd.f32 %v1106, %v1024
  %v1108 = vadd.f32 %v1107, %v1025
  %v1109 = vadd.f32 %v1108, %v1026
  %v1110 = vrot.slane %v1109, 4
  %v1111 = vadd.f32 %v1109, %v1110
  %v1112 = vrot.slane %v1111, 2
  %v1113 = vadd.f32 %v1111, %v1112
  %v1114 = vrot.slane %v1113, 1
  %v1115 = vadd.f32 %v1113, %v1114
  %v1116 = vadd.f32 %v1027, %v1028
  %v1117 = vadd.f32 %v1116, %v1029
  %v1118 = vadd.f32 %v1117, %v1030
  %v1119 = vadd.f32 %v1118, %v1031
  %v1120 = vadd.f32 %v1119, %v1032
  %v1121 = vadd.f32 %v1120, %v1033
  %v1122 = vadd.f32 %v1121, %v1034
  %v1123 = vrot.slane %v1122, 4
  %v1124 = vadd.f32 %v1122, %v1123
  %v1125 = vrot.slane %v1124, 2
  %v1126 = vadd.f32 %v1124, %v1125
  %v1127 = vrot.slane %v1126, 1
  %v1128 = vadd.f32 %v1126, %v1127
  %v1129 = vadd.f32 %v1035, %v1036
  %v1130 = vadd.f32 %v1129, %v1037
  %v1131 = vadd.f32 %v1130, %v1038
  %v1132 = vadd.f32 %v1131, %v1039
  %v1133 = vadd.f32 %v1132, %v1040
  %v1134 = vadd.f32 %v1133, %v1041
  %v1135 = vadd.f32 %v1134, %v1042
  %v1136 = vrot.slane %v1135, 4
  %v1137 = vadd.f32 %v1135, %v1136
  %v1138 = vrot.slane %v1137, 2
  %v1139 = vadd.f32 %v1137, %v1138
  %v1140 = vrot.slane %v1139, 1
  %v1141 = vadd.f32 %v1139, %v1140
  %v1142 = vadd.f32 %v1043, %v1044
  %v1143 = vadd.f32 %v1142, %v1045
  %v1144 = vadd.f32 %v1143, %v1046
  %v1145 = vadd.f32 %v1144, %v1047
  %v1146 = vadd.f32 %v1145, %v1048
  %v1147 = vadd.f32 %v1146, %v1049
  %v1148 = vadd.f32 %v1147, %v1050
  %v1149 = vrot.slane %v1148, 4
  %v1150 = vadd.f32 %v1148, %v1149
  %v1151 = vrot.slane %v1150, 2
  %v1152 = vadd.f32 %v1150, %v1151
  %v1153 = vrot.slane %v1152, 1
  %v1154 = vadd.f32 %v1152, %v1153
  %v1163 = vsel %vm971, %v1076, %v1063
  %v1164 = vsel %vm973, %v1089, %v1163
  %v1165 = vsel %vm975, %v1102, %v1164
  %v1166 = vsel %vm977, %v1115, %v1165
  %v1167 = vsel %vm979, %v1128, %v1166
  %v1168 = vsel %vm981, %v1141, %v1167
  %v1169 = vsel %vm983, %v1154, %v1168
  %1171 = vst [vmem:[%s5] sm:$0xff] %v1169
  // Predicated region
  $region14: #{dft_forward.4} parent=0 // pred_check
    _
  $region15: #{dft_forward.4} parent=0 // pred_check_branch
    %1173 = sbr.rel (0) target = $region17
  $region16: #{dft_forward.4} parent=0 // pred_region
    _
  $region17: #{dft_forward.4} parent=0 // pred_fallthru
    _
  // Predicated region
  $region18: #{dft_forward.4} parent=0 // pred_check
    _
  $region19: #{dft_forward.4} parent=0 // pred_check_branch
    %1175 = sbr.rel (0) target = $region21
  $region20: #{dft_forward.4} parent=0 // pred_region
    _
  $region21: #{dft_forward.4} parent=0 // pred_fallthru
    _
  // Predicated region
  $region22: #{dft_forward.4} parent=0 // pred_check
    _
  $region23: #{dft_forward.4} parent=0 // pred_check_branch
    %1177 = sbr.rel (0) target = $region25
  $region24: #{dft_forward.4} parent=0 // pred_region
    _
  $region25: #{dft_forward.4} parent=0 // pred_fallthru
    _
  // Predicated region
  $region26: #{dft_forward.4} parent=0 // pred_check
    _
  $region27: #{dft_forward.4} parent=0 // pred_check_branch
    %1179 = sbr.rel (0) target = $region29
  $region28: #{dft_forward.4} parent=0 // pred_region
    _
  $region29: #{dft_forward.4} parent=0 // pred_fallthru
    _
  // Predicated region
  $region30: #{dft_forward.4} parent=0 // pred_check
    _
  $region31: #{dft_forward.4} parent=0 // pred_check_branch
    %1181 = sbr.rel (0) target = $region33
  $region32: #{dft_forward.4} parent=0 // pred_region
    _
  $region33: #{dft_forward.4} parent=0 // pred_fallthru
    _
  // Predicated region
  $region34: #{dft_forward.4} parent=0 // pred_check
    _
  $region35: #{dft_forward.4} parent=0 // pred_check_branch
    %1183 = sbr.rel (0) target = $region37
  $region36: #{dft_forward.4} parent=0 // pred_region
    _
  $region37: #{dft_forward.4} parent=0 // pred_fallthru
    _

</llo_original>
